<compile_context>
chip_gen: v7x
topology: tpu7x:2x2x1
jax: 0.10.0
libtpu: 0.0.40
codegen_flags: <defaults>
</compile_context>

<pallas_src>
import functools

import jax
import jax.numpy as jnp
from jax.experimental import pallas as pl
from jax.experimental.pallas import tpu as pltpu

N_RNN_CELL = 128          # n_RNN_cell
N_LAYERS_RNN = 2          # n_layers_RNN
NCLASS = 10               # nclass
FRAME = 128               # samples per w2v frame (stand-in encoder)
CPAD = 128                # lane-padded class dimension
SUBLANE = 8


def _round_up(x, m):
    return ((x + m - 1) // m) * m


def _time_chunk(T, bp, target_rows=512):
    """Largest divisor c of T with c*bp <= target_rows (at least 1)."""
    max_c = max(1, target_rows // bp)
    best = 1
    for c in range(1, min(T, max_c) + 1):
        if T % c == 0:
            best = c
    return best


# ---------------------------------------------------------------------------
# shared bidirectional GRU recurrence (runs inside a layer kernel).
# GI (input-to-hidden gates) already sits in VMEM scratch; only h_prev @ W_hh
# and the gate nonlinearities remain per time step.  PyTorch nn.GRU gate
# equations (b_hn inside r * (W_hn h + b_hn), both biases folded into GI/GH).
# ---------------------------------------------------------------------------
def _run_bigru(gi_f_sc, gi_b_sc, whh_f_ref, whh_b_ref, bhh_f_ref, bhh_b_ref,
               out_f_ref, out_b_ref, *, hidden, seq_len, bp):
    H, T, BP = hidden, seq_len, bp
    whh_f = whh_f_ref[...]          # bf16, resident across the loop
    whh_b = whh_b_ref[...]
    bhh_f = bhh_f_ref[...]
    bhh_b = bhh_b_ref[...]

    def gates(gi, gh, h_prev):
        r = jax.nn.sigmoid(gi[:, 0:H] + gh[:, 0:H])
        z = jax.nn.sigmoid(gi[:, H:2 * H] + gh[:, H:2 * H])
        n = jnp.tanh(gi[:, 2 * H:3 * H] + r * gh[:, 2 * H:3 * H])
        return (1.0 - z) * n + z * h_prev

    def step(t, carry):
        h_f, h_b = carry
        gi_f = gi_f_sc[t]                      # (BP, 3H) f32
        gi_b = gi_b_sc[T - 1 - t]
        gh_f = jnp.dot(h_f.astype(jnp.bfloat16), whh_f,
                       preferred_element_type=jnp.float32) + bhh_f
        gh_b = jnp.dot(h_b.astype(jnp.bfloat16), whh_b,
                       preferred_element_type=jnp.float32) + bhh_b
        h_f = gates(gi_f, gh_f, h_f)
        h_b = gates(gi_b, gh_b, h_b)
        out_f_ref[t] = h_f.astype(out_f_ref.dtype)
        out_b_ref[T - 1 - t] = h_b.astype(out_b_ref.dtype)
        return h_f, h_b

    h0 = jnp.zeros((BP, H), jnp.float32)
    jax.lax.fori_loop(0, T, step, (h0, h0))


# ---------------------------------------------------------------------------
# layer 0: fused w2v stand-in projection + ReLU + input-to-hidden projection
# (both directions, one MXU batched matmul each) + full time recurrence.
# ---------------------------------------------------------------------------
def _bigru0_kernel(frames_ref, w2v_w_ref, w2v_b_ref,
                   wih_f_ref, bih_f_ref, wih_b_ref, bih_b_ref,
                   whh_f_ref, whh_b_ref, bhh_f_ref, bhh_b_ref,
                   out_f_ref, out_b_ref,
                   gi_f_sc, gi_b_sc, *, hidden, seq_len, bp):
    H, T, BP = hidden, seq_len, bp
    x = frames_ref[...].astype(jnp.bfloat16)                     # (T*BP, FRAME)
    feat = jnp.dot(x, w2v_w_ref[...],
                   preferred_element_type=jnp.float32) + w2v_b_ref[...]
    feat = jnp.maximum(feat, 0.0).astype(jnp.bfloat16)           # self.activation
    gi_f_sc[...] = (jnp.dot(feat, wih_f_ref[...],
                            preferred_element_type=jnp.float32)
                    + bih_f_ref[...]).reshape(T, BP, 3 * H)
    gi_b_sc[...] = (jnp.dot(feat, wih_b_ref[...],
                            preferred_element_type=jnp.float32)
                    + bih_b_ref[...]).reshape(T, BP, 3 * H)
    _run_bigru(gi_f_sc, gi_b_sc, whh_f_ref, whh_b_ref, bhh_f_ref, bhh_b_ref,
               out_f_ref, out_b_ref, hidden=H, seq_len=T, bp=BP)


def _bigru_layer0(frames, w2v_w, w2v_b, p, *, T, BP):
    H = N_RNN_CELL
    bf16 = jnp.bfloat16
    kernel = functools.partial(_bigru0_kernel, hidden=H, seq_len=T, bp=BP)
    return pl.pallas_call(
        kernel,
        out_shape=(jax.ShapeDtypeStruct((T, BP, H), bf16),
                   jax.ShapeDtypeStruct((T, BP, H), bf16)),
        scratch_shapes=[pltpu.VMEM((T, BP, 3 * H), jnp.float32),
                        pltpu.VMEM((T, BP, 3 * H), jnp.float32)],
    )(frames, w2v_w, w2v_b,
      p['w_ih_f'].astype(bf16), p['b_ih_f'],
      p['w_ih_b'].astype(bf16), p['b_ih_b'],
      p['w_hh_f'].astype(bf16), p['w_hh_b'].astype(bf16),
      p['b_hh_f'], p['b_hh_b'])


# ---------------------------------------------------------------------------
# layers >= 1: input-to-hidden projection from the previous layer's fwd/bwd
# halves (sum of two half matmuls == matmul with lane-concatenated input),
# fused with the full time recurrence.
# ---------------------------------------------------------------------------
def _bigruN_kernel(xf_ref, xb_ref,
                   wih_f_ref, bih_f_ref, wih_b_ref, bih_b_ref,
                   whh_f_ref, whh_b_ref, bhh_f_ref, bhh_b_ref,
                   out_f_ref, out_b_ref,
                   gi_f_sc, gi_b_sc, *, hidden, seq_len, bp):
    H, T, BP = hidden, seq_len, bp
    rows = T * BP
    xf = xf_ref[...].reshape(rows, H)                            # bf16
    xb = xb_ref[...].reshape(rows, H)
    wf = wih_f_ref[...]
    wb = wih_b_ref[...]
    gi_f_sc[...] = (jnp.dot(xf, wf[:H], preferred_element_type=jnp.float32)
                    + jnp.dot(xb, wf[H:], preferred_element_type=jnp.float32)
                    + bih_f_ref[...]).reshape(T, BP, 3 * H)
    gi_b_sc[...] = (jnp.dot(xf, wb[:H], preferred_element_type=jnp.float32)
                    + jnp.dot(xb, wb[H:], preferred_element_type=jnp.float32)
                    + bih_b_ref[...]).reshape(T, BP, 3 * H)
    _run_bigru(gi_f_sc, gi_b_sc, whh_f_ref, whh_b_ref, bhh_f_ref, bhh_b_ref,
               out_f_ref, out_b_ref, hidden=H, seq_len=T, bp=BP)


def _bigru_layerN(xf, xb, p, *, T, BP):
    H = N_RNN_CELL
    bf16 = jnp.bfloat16
    kernel = functools.partial(_bigruN_kernel, hidden=H, seq_len=T, bp=BP)
    return pl.pallas_call(
        kernel,
        out_shape=(jax.ShapeDtypeStruct((T, BP, H), bf16),
                   jax.ShapeDtypeStruct((T, BP, H), bf16)),
        scratch_shapes=[pltpu.VMEM((T, BP, 3 * H), jnp.float32),
                        pltpu.VMEM((T, BP, 3 * H), jnp.float32)],
    )(xf, xb,
      p['w_ih_f'].astype(bf16), p['b_ih_f'],
      p['w_ih_b'].astype(bf16), p['b_ih_b'],
      p['w_hh_f'].astype(bf16), p['w_hh_b'].astype(bf16),
      p['b_hh_f'], p['b_hh_b'])


# ---------------------------------------------------------------------------
# classifier head: dense+sigmoid (strong), dense+softmax+clamp (attention),
# attention-weighted temporal pooling (weak) via in-kernel time reduction.
# Grid over time chunks; weak num/den accumulate in VMEM scratch.
# ---------------------------------------------------------------------------
def _head_kernel(xf_ref, xb_ref, wd_ref, bd_ref, ws_ref, bs_ref,
                 strong_ref, weak_ref, num_acc, den_acc, *, hidden, tch, bp):
    H = hidden
    i = pl.program_id(0)

    @pl.when(i == 0)
    def _():
        num_acc[...] = jnp.zeros_like(num_acc)
        den_acc[...] = jnp.zeros_like(den_acc)

    rows = tch * bp
    xf = xf_ref[...].reshape(rows, H).astype(jnp.bfloat16)
    xb = xb_ref[...].reshape(rows, H).astype(jnp.bfloat16)
    wd = wd_ref[...]
    ws = ws_ref[...]

    strong = jax.nn.sigmoid(
        jnp.dot(xf, wd[:H], preferred_element_type=jnp.float32)
        + jnp.dot(xb, wd[H:], preferred_element_type=jnp.float32)
        + bd_ref[...])
    logits = (jnp.dot(xf, ws[:H], preferred_element_type=jnp.float32)
              + jnp.dot(xb, ws[H:], preferred_element_type=jnp.float32)
              + bs_ref[...])                       # padded classes biased to -1e30
    sof = jax.nn.softmax(logits, axis=-1)
    sof = jnp.clip(sof, 1e-7, 1.0)

    num_acc[...] += (strong * sof).reshape(tch, bp, CPAD).sum(axis=0)
    den_acc[...] += sof.reshape(tch, bp, CPAD).sum(axis=0)
    strong_ref[...] = strong.reshape(tch, bp, CPAD)

    @pl.when(i == pl.num_programs(0) - 1)
    def _():
        weak_ref[...] = num_acc[...] * pl.reciprocal(den_acc[...], approx=True)


def _classifier_head(out_f, out_b, wd, bd, ws, bs, *, T, BP):
    H = N_RNN_CELL
    tch = _time_chunk(T, BP)
    xmap = lambda i: (i, 0, 0)
    cmap = lambda i: (0, 0)
    kernel = functools.partial(_head_kernel, hidden=H, tch=tch, bp=BP)
    return pl.pallas_call(
        kernel,
        out_shape=(jax.ShapeDtypeStruct((T, BP, CPAD), jnp.float32),
                   jax.ShapeDtypeStruct((BP, CPAD), jnp.float32)),
        grid_spec=pltpu.PrefetchScalarGridSpec(
            num_scalar_prefetch=0,
            grid=(T // tch,),
            in_specs=[
                pl.BlockSpec((tch, BP, H), xmap),
                pl.BlockSpec((tch, BP, H), xmap),
                pl.BlockSpec((2 * H, CPAD), cmap),
                pl.BlockSpec((1, CPAD), cmap),
                pl.BlockSpec((2 * H, CPAD), cmap),
                pl.BlockSpec((1, CPAD), cmap),
            ],
            out_specs=(pl.BlockSpec((tch, BP, CPAD), xmap),
                       pl.BlockSpec((BP, CPAD), cmap)),
            scratch_shapes=[pltpu.VMEM((BP, CPAD), jnp.float32),
                            pltpu.VMEM((BP, CPAD), jnp.float32)],
        ),
        compiler_params=pltpu.CompilerParams(dimension_semantics=("arbitrary",)),
    )(out_f, out_b, wd, bd, ws, bs)


# ---------------------------------------------------------------------------
# full forward (matches WRNN.forward with pad_mask=None, eval mode)
# ---------------------------------------------------------------------------
def wrnn_forward(x, params):
    B, L = x.shape
    T = L // FRAME
    BP = _round_up(max(B, SUBLANE), SUBLANE)          # sublane-full batch
    bf16 = jnp.bfloat16

    xp = x if BP == B else jnp.pad(x, ((0, BP - B), (0, 0)))
    # time-major frames [T*BP, FRAME] (single small permute of the raw audio)
    frames = jnp.transpose(xp.reshape(BP, T, FRAME), (1, 0, 2)).reshape(T * BP, FRAME)

    gru = params['gru']
    out_f, out_b = _bigru_layer0(frames, params['w2v_w'].astype(bf16),
                                 params['w2v_b'], gru[0], T=T, BP=BP)
    for layer in range(1, N_LAYERS_RNN):
        out_f, out_b = _bigru_layerN(out_f, out_b, gru[layer], T=T, BP=BP)

    # self.dropout: identity in eval mode
    # lane-pad classifier weights to CPAD output columns (softmax pad bias -1e30)
    pad_c = CPAD - NCLASS
    wd = jnp.pad(params['dense_w'], ((0, 0), (0, pad_c))).astype(bf16)
    bd = jnp.pad(params['dense_b'], ((0, 0), (0, pad_c)))
    ws = jnp.pad(params['dense_softmax_w'], ((0, 0), (0, pad_c))).astype(bf16)
    bs = jnp.pad(params['dense_softmax_b'], ((0, 0), (0, pad_c)),
                 constant_values=-1e30)

    strong_tm, weak_p = _classifier_head(out_f, out_b, wd, bd, ws, bs, T=T, BP=BP)
    strong = jnp.transpose(strong_tm[:, :B, :NCLASS], (1, 2, 0))   # [B, nclass, T]
    weak = weak_p[:B, :NCLASS]
    return strong, weak


# ---------------------------------------------------------------------------
# deterministic parameter init
# ---------------------------------------------------------------------------
def init_params(key):
    H = N_RNN_CELL
    keys = jax.random.split(key, 32)
    it = iter(keys)

    def u(k, shape, fan):
        bound = 1.0 / (fan ** 0.5)
        return jax.random.uniform(k, shape, jnp.float32, -bound, bound)

    params = {
        'w2v_w': u(next(it), (FRAME, H), FRAME),
        'w2v_b': u(next(it), (1, H), FRAME),
    }
    gru = []
    for layer in range(N_LAYERS_RNN):
        d_in = H if layer == 0 else 2 * H
        p = {}
        for d in ('f', 'b'):
            p[f'w_ih_{d}'] = u(next(it), (d_in, 3 * H), H)
            p[f'w_hh_{d}'] = u(next(it), (H, 3 * H), H)
            p[f'b_ih_{d}'] = u(next(it), (1, 3 * H), H)
            p[f'b_hh_{d}'] = u(next(it), (1, 3 * H), H)
        gru.append(p)
    params['gru'] = gru
    params['dense_w'] = u(next(it), (2 * H, NCLASS), 2 * H)
    params['dense_b'] = u(next(it), (1, NCLASS), 2 * H)
    params['dense_softmax_w'] = u(next(it), (2 * H, NCLASS), 2 * H)
    params['dense_softmax_b'] = u(next(it), (1, NCLASS), 2 * H)
    return params


if __name__ == "__main__":
    key = jax.random.PRNGKey(0)
    B, T = 2, 8
    L = T * FRAME
    k_x, k_p = jax.random.split(key)
    x = jax.random.normal(k_x, (B, L), dtype=jnp.float32)
    params = init_params(k_p)

    strong_t, weak = jax.jit(wrnn_forward)(x, params)
    jax.block_until_ready((strong_t, weak))

    assert strong_t.shape == (B, NCLASS, T)
    assert weak.shape == (B, NCLASS)
    assert bool(jnp.all(jnp.isfinite(strong_t))) and bool(jnp.all(jnp.isfinite(weak)))
    print("KERNEL_OK")
</pallas_src>

<mosaic_0001>
module attributes {stable_mosaic.version = 11 : i64} {
  func.func @_bigruN_kernel(%arg0: memref<8x8x128xbf16, #tpu.memory_space<vmem>>, %arg1: memref<8x8x128xbf16, #tpu.memory_space<vmem>>, %arg2: memref<256x384xbf16, #tpu.memory_space<vmem>>, %arg3: memref<1x384xf32, #tpu.memory_space<vmem>>, %arg4: memref<256x384xbf16, #tpu.memory_space<vmem>>, %arg5: memref<1x384xf32, #tpu.memory_space<vmem>>, %arg6: memref<128x384xbf16, #tpu.memory_space<vmem>>, %arg7: memref<128x384xbf16, #tpu.memory_space<vmem>>, %arg8: memref<1x384xf32, #tpu.memory_space<vmem>>, %arg9: memref<1x384xf32, #tpu.memory_space<vmem>>, %arg10: memref<8x8x128xbf16, #tpu.memory_space<vmem>>, %arg11: memref<8x8x128xbf16, #tpu.memory_space<vmem>>, %arg12: memref<8x8x384xf32, #tpu.memory_space<vmem>>, %arg13: memref<8x8x384xf32, #tpu.memory_space<vmem>>) attributes {dimension_semantics = [], scalar_prefetch = 0 : i64, scratch_operands = 2 : i64, tpu.core_type = #tpu.core_type<tc>} {
    %c0 = arith.constant 0 : index
    %c0_0 = arith.constant 0 : index
    %c0_1 = arith.constant 0 : index
    %0 = vector.load %arg0[%c0, %c0_0, %c0_1] : memref<8x8x128xbf16, #tpu.memory_space<vmem>>, vector<8x8x128xbf16>
    %1 = vector.shape_cast %0 : vector<8x8x128xbf16> to vector<64x128xbf16>
    %c0_2 = arith.constant 0 : index
    %c0_3 = arith.constant 0 : index
    %c0_4 = arith.constant 0 : index
    %2 = vector.load %arg1[%c0_2, %c0_3, %c0_4] : memref<8x8x128xbf16, #tpu.memory_space<vmem>>, vector<8x8x128xbf16>
    %3 = vector.shape_cast %2 : vector<8x8x128xbf16> to vector<64x128xbf16>
    %c0_5 = arith.constant 0 : index
    %c0_6 = arith.constant 0 : index
    %4 = vector.load %arg2[%c0_5, %c0_6] : memref<256x384xbf16, #tpu.memory_space<vmem>>, vector<256x384xbf16>
    %c0_7 = arith.constant 0 : index
    %c0_8 = arith.constant 0 : index
    %5 = vector.load %arg4[%c0_7, %c0_8] : memref<256x384xbf16, #tpu.memory_space<vmem>>, vector<256x384xbf16>
    %6 = vector.extract_strided_slice %4 {offsets = [0, 0], sizes = [128, 384], strides = [1, 1]} : vector<256x384xbf16> to vector<128x384xbf16>
    %cst = arith.constant dense<0.000000e+00> : vector<64x384xf32>
    %7 = tpu.matmul %1, %6, %cst {dimension_numbers = #tpu.dot_dimension_numbers<[1], [0], [0], [1], [0, 0, 1, 1], [], []>} : vector<64x128xbf16>, vector<128x384xbf16>, vector<64x384xf32> -> vector<64x384xf32>
    %8 = vector.extract_strided_slice %4 {offsets = [128, 0], sizes = [128, 384], strides = [1, 1]} : vector<256x384xbf16> to vector<128x384xbf16>
    %cst_9 = arith.constant dense<0.000000e+00> : vector<64x384xf32>
    %9 = tpu.matmul %3, %8, %cst_9 {dimension_numbers = #tpu.dot_dimension_numbers<[1], [0], [0], [1], [0, 0, 1, 1], [], []>} : vector<64x128xbf16>, vector<128x384xbf16>, vector<64x384xf32> -> vector<64x384xf32>
    %10 = arith.addf %7, %9 : vector<64x384xf32>
    %c0_10 = arith.constant 0 : index
    %c0_11 = arith.constant 0 : index
    %11 = vector.load %arg3[%c0_10, %c0_11] : memref<1x384xf32, #tpu.memory_space<vmem>>, vector<1x384xf32>
    %12 = vector.broadcast %11 : vector<1x384xf32> to vector<64x384xf32>
    %13 = arith.addf %10, %12 : vector<64x384xf32>
    %14 = vector.shape_cast %13 : vector<64x384xf32> to vector<8x8x384xf32>
    %c0_12 = arith.constant 0 : index
    %c0_13 = arith.constant 0 : index
    %c0_14 = arith.constant 0 : index
    %15 = vector.load %arg12[%c0_12, %c0_13, %c0_14] : memref<8x8x384xf32, #tpu.memory_space<vmem>>, vector<8x8x384xf32>
    tpu.vector_store %arg12[%c0_12, %c0_13, %c0_14], %14 {strides = array<i32>} : memref<8x8x384xf32, #tpu.memory_space<vmem>>, vector<8x8x384xf32>,
    %16 = vector.extract_strided_slice %5 {offsets = [0, 0], sizes = [128, 384], strides = [1, 1]} : vector<256x384xbf16> to vector<128x384xbf16>
    %cst_15 = arith.constant dense<0.000000e+00> : vector<64x384xf32>
    %17 = tpu.matmul %1, %16, %cst_15 {dimension_numbers = #tpu.dot_dimension_numbers<[1], [0], [0], [1], [0, 0, 1, 1], [], []>} : vector<64x128xbf16>, vector<128x384xbf16>, vector<64x384xf32> -> vector<64x384xf32>
    %18 = vector.extract_strided_slice %5 {offsets = [128, 0], sizes = [128, 384], strides = [1, 1]} : vector<256x384xbf16> to vector<128x384xbf16>
    %cst_16 = arith.constant dense<0.000000e+00> : vector<64x384xf32>
    %19 = tpu.matmul %3, %18, %cst_16 {dimension_numbers = #tpu.dot_dimension_numbers<[1], [0], [0], [1], [0, 0, 1, 1], [], []>} : vector<64x128xbf16>, vector<128x384xbf16>, vector<64x384xf32> -> vector<64x384xf32>
    %20 = arith.addf %17, %19 : vector<64x384xf32>
    %c0_17 = arith.constant 0 : index
    %c0_18 = arith.constant 0 : index
    %21 = vector.load %arg5[%c0_17, %c0_18] : memref<1x384xf32, #tpu.memory_space<vmem>>, vector<1x384xf32>
    %22 = vector.broadcast %21 : vector<1x384xf32> to vector<64x384xf32>
    %23 = arith.addf %20, %22 : vector<64x384xf32>
    %24 = vector.shape_cast %23 : vector<64x384xf32> to vector<8x8x384xf32>
    %c0_19 = arith.constant 0 : index
    %c0_20 = arith.constant 0 : index
    %c0_21 = arith.constant 0 : index
    %25 = vector.load %arg13[%c0_19, %c0_20, %c0_21] : memref<8x8x384xf32, #tpu.memory_space<vmem>>, vector<8x8x384xf32>
    tpu.vector_store %arg13[%c0_19, %c0_20, %c0_21], %24 {strides = array<i32>} : memref<8x8x384xf32, #tpu.memory_space<vmem>>, vector<8x8x384xf32>,
    %c0_22 = arith.constant 0 : index
    %c0_23 = arith.constant 0 : index
    %26 = vector.load %arg6[%c0_22, %c0_23] : memref<128x384xbf16, #tpu.memory_space<vmem>>, vector<128x384xbf16>
    %c0_24 = arith.constant 0 : index
    %c0_25 = arith.constant 0 : index
    %27 = vector.load %arg7[%c0_24, %c0_25] : memref<128x384xbf16, #tpu.memory_space<vmem>>, vector<128x384xbf16>
    %c0_26 = arith.constant 0 : index
    %c0_27 = arith.constant 0 : index
    %28 = vector.load %arg8[%c0_26, %c0_27] : memref<1x384xf32, #tpu.memory_space<vmem>>, vector<1x384xf32>
    %c0_28 = arith.constant 0 : index
    %c0_29 = arith.constant 0 : index
    %29 = vector.load %arg9[%c0_28, %c0_29] : memref<1x384xf32, #tpu.memory_space<vmem>>, vector<1x384xf32>
    %cst_30 = arith.constant 0.000000e+00 : f32
    %30 = vector.broadcast %cst_30 : f32 to vector<8x128xf32>
    %c0_i32 = arith.constant 0 : i32
    %c8_i32 = arith.constant 8 : i32
    %31 = arith.addi %c0_i32, %c8_i32 : i32
    %c1_i32 = arith.constant 1 : i32
    %32:2 = scf.for %arg14 = %c0_i32 to %31 step %c1_i32 iter_args(%arg15 = %30, %arg16 = %30) -> (vector<8x128xf32>, vector<8x128xf32>)  : i32 {
      %33 = arith.index_cast %arg14 : i32 to index
      %c0_32 = arith.constant 0 : index
      %c0_33 = arith.constant 0 : index
      %34 = vector.load %arg12[%33, %c0_32, %c0_33] : memref<8x8x384xf32, #tpu.memory_space<vmem>>, vector<1x8x384xf32>
      %35 = vector.shape_cast %34 : vector<1x8x384xf32> to vector<8x384xf32>
      %c7_i32 = arith.constant 7 : i32
      %36 = arith.subi %c7_i32, %arg14 : i32
      %37 = arith.index_cast %36 : i32 to index
      %c0_34 = arith.constant 0 : index
      %c0_35 = arith.constant 0 : index
      %38 = vector.load %arg13[%37, %c0_34, %c0_35] : memref<8x8x384xf32, #tpu.memory_space<vmem>>, vector<1x8x384xf32>
      %39 = vector.shape_cast %38 : vector<1x8x384xf32> to vector<8x384xf32>
      %40 = arith.truncf %arg15 : vector<8x128xf32> to vector<8x128xbf16>
      %cst_36 = arith.constant dense<0.000000e+00> : vector<8x384xf32>
      %41 = tpu.matmul %40, %26, %cst_36 {dimension_numbers = #tpu.dot_dimension_numbers<[1], [0], [0], [1], [0, 0, 1, 1], [], []>} : vector<8x128xbf16>, vector<128x384xbf16>, vector<8x384xf32> -> vector<8x384xf32>
      %42 = vector.broadcast %28 : vector<1x384xf32> to vector<8x384xf32>
      %43 = arith.addf %41, %42 : vector<8x384xf32>
      %44 = arith.truncf %arg16 : vector<8x128xf32> to vector<8x128xbf16>
      %cst_37 = arith.constant dense<0.000000e+00> : vector<8x384xf32>
      %45 = tpu.matmul %44, %27, %cst_37 {dimension_numbers = #tpu.dot_dimension_numbers<[1], [0], [0], [1], [0, 0, 1, 1], [], []>} : vector<8x128xbf16>, vector<128x384xbf16>, vector<8x384xf32> -> vector<8x384xf32>
      %46 = vector.broadcast %29 : vector<1x384xf32> to vector<8x384xf32>
      %47 = arith.addf %45, %46 : vector<8x384xf32>
      %48 = vector.extract_strided_slice %35 {offsets = [0, 0], sizes = [8, 128], strides = [1, 1]} : vector<8x384xf32> to vector<8x128xf32>
      %49 = vector.extract_strided_slice %43 {offsets = [0, 0], sizes = [8, 128], strides = [1, 1]} : vector<8x384xf32> to vector<8x128xf32>
      %50 = arith.addf %48, %49 : vector<8x128xf32>
      %51 = arith.negf %50 : vector<8x128xf32>
      %52 = math.exp %51 : vector<8x128xf32>
      %cst_38 = arith.constant 1.000000e+00 : f32
      %53 = vector.broadcast %cst_38 : f32 to vector<8x128xf32>
      %54 = arith.addf %53, %52 : vector<8x128xf32>
      %55 = arith.divf %53, %54 : vector<8x128xf32>
      %56 = vector.extract_strided_slice %35 {offsets = [0, 128], sizes = [8, 128], strides = [1, 1]} : vector<8x384xf32> to vector<8x128xf32>
      %57 = vector.extract_strided_slice %43 {offsets = [0, 128], sizes = [8, 128], strides = [1, 1]} : vector<8x384xf32> to vector<8x128xf32>
      %58 = arith.addf %56, %57 : vector<8x128xf32>
      %59 = arith.negf %58 : vector<8x128xf32>
      %60 = math.exp %59 : vector<8x128xf32>
      %cst_39 = arith.constant 1.000000e+00 : f32
      %61 = vector.broadcast %cst_39 : f32 to vector<8x128xf32>
      %62 = arith.addf %61, %60 : vector<8x128xf32>
      %63 = arith.divf %61, %62 : vector<8x128xf32>
      %64 = vector.extract_strided_slice %35 {offsets = [0, 256], sizes = [8, 128], strides = [1, 1]} : vector<8x384xf32> to vector<8x128xf32>
      %65 = vector.extract_strided_slice %43 {offsets = [0, 256], sizes = [8, 128], strides = [1, 1]} : vector<8x384xf32> to vector<8x128xf32>
      %66 = arith.mulf %55, %65 : vector<8x128xf32>
      %67 = arith.addf %64, %66 : vector<8x128xf32>
      %68 = math.tanh %67 : vector<8x128xf32>
      %cst_40 = arith.constant 1.000000e+00 : f32
      %69 = vector.broadcast %cst_40 : f32 to vector<8x128xf32>
      %70 = arith.subf %69, %63 : vector<8x128xf32>
      %71 = arith.mulf %70, %68 : vector<8x128xf32>
      %72 = arith.mulf %63, %arg15 : vector<8x128xf32>
      %73 = arith.addf %71, %72 : vector<8x128xf32>
      %74 = vector.extract_strided_slice %39 {offsets = [0, 0], sizes = [8, 128], strides = [1, 1]} : vector<8x384xf32> to vector<8x128xf32>
      %75 = vector.extract_strided_slice %47 {offsets = [0, 0], sizes = [8, 128], strides = [1, 1]} : vector<8x384xf32> to vector<8x128xf32>
      %76 = arith.addf %74, %75 : vector<8x128xf32>
      %77 = arith.negf %76 : vector<8x128xf32>
      %78 = math.exp %77 : vector<8x128xf32>
      %cst_41 = arith.constant 1.000000e+00 : f32
      %79 = vector.broadcast %cst_41 : f32 to vector<8x128xf32>
      %80 = arith.addf %79, %78 : vector<8x128xf32>
      %81 = arith.divf %79, %80 : vector<8x128xf32>
      %82 = vector.extract_strided_slice %39 {offsets = [0, 128], sizes = [8, 128], strides = [1, 1]} : vector<8x384xf32> to vector<8x128xf32>
      %83 = vector.extract_strided_slice %47 {offsets = [0, 128], sizes = [8, 128], strides = [1, 1]} : vector<8x384xf32> to vector<8x128xf32>
      %84 = arith.addf %82, %83 : vector<8x128xf32>
      %85 = arith.negf %84 : vector<8x128xf32>
      %86 = math.exp %85 : vector<8x128xf32>
      %cst_42 = arith.constant 1.000000e+00 : f32
      %87 = vector.broadcast %cst_42 : f32 to vector<8x128xf32>
      %88 = arith.addf %87, %86 : vector<8x128xf32>
      %89 = arith.divf %87, %88 : vector<8x128xf32>
      %90 = vector.extract_strided_slice %39 {offsets = [0, 256], sizes = [8, 128], strides = [1, 1]} : vector<8x384xf32> to vector<8x128xf32>
      %91 = vector.extract_strided_slice %47 {offsets = [0, 256], sizes = [8, 128], strides = [1, 1]} : vector<8x384xf32> to vector<8x128xf32>
      %92 = arith.mulf %81, %91 : vector<8x128xf32>
      %93 = arith.addf %90, %92 : vector<8x128xf32>
      %94 = math.tanh %93 : vector<8x128xf32>
      %cst_43 = arith.constant 1.000000e+00 : f32
      %95 = vector.broadcast %cst_43 : f32 to vector<8x128xf32>
      %96 = arith.subf %95, %89 : vector<8x128xf32>
      %97 = arith.mulf %96, %94 : vector<8x128xf32>
      %98 = arith.mulf %89, %arg16 : vector<8x128xf32>
      %99 = arith.addf %97, %98 : vector<8x128xf32>
      %100 = arith.truncf %73 : vector<8x128xf32> to vector<8x128xbf16>
      %101 = arith.index_cast %arg14 : i32 to index
      %c0_44 = arith.constant 0 : index
      %c0_45 = arith.constant 0 : index
      %102 = vector.load %arg10[%101, %c0_44, %c0_45] : memref<8x8x128xbf16, #tpu.memory_space<vmem>>, vector<1x8x128xbf16>
      %103 = vector.shape_cast %102 : vector<1x8x128xbf16> to vector<8x128xbf16>
      %104 = vector.shape_cast %100 : vector<8x128xbf16> to vector<1x8x128xbf16>
      tpu.vector_store %arg10[%101, %c0_44, %c0_45], %104 {strides = array<i32>} : memref<8x8x128xbf16, #tpu.memory_space<vmem>>, vector<1x8x128xbf16>,
      %105 = arith.truncf %99 : vector<8x128xf32> to vector<8x128xbf16>
      %c7_i32_46 = arith.constant 7 : i32
      %106 = arith.subi %c7_i32_46, %arg14 : i32
      %107 = arith.index_cast %106 : i32 to index
      %c0_47 = arith.constant 0 : index
      %c0_48 = arith.constant 0 : index
      %108 = vector.load %arg11[%107, %c0_47, %c0_48] : memref<8x8x128xbf16, #tpu.memory_space<vmem>>, vector<1x8x128xbf16>
      %109 = vector.shape_cast %108 : vector<1x8x128xbf16> to vector<8x128xbf16>
      %110 = vector.shape_cast %105 : vector<8x128xbf16> to vector<1x8x128xbf16>
      tpu.vector_store %arg11[%107, %c0_47, %c0_48], %110 {strides = array<i32>} : memref<8x8x128xbf16, #tpu.memory_space<vmem>>, vector<1x8x128xbf16>,
      scf.yield %73, %99 : vector<8x128xf32>, vector<8x128xf32>
    }
    %c8_i32_31 = arith.constant 8 : i32
    return
  }
}

module attributes {stable_mosaic.version = 11 : i64} {
  func.func @_bigru0_kernel(%arg0: memref<64x128xf32, #tpu.memory_space<vmem>>, %arg1: memref<128x128xbf16, #tpu.memory_space<vmem>>, %arg2: memref<1x128xf32, #tpu.memory_space<vmem>>, %arg3: memref<128x384xbf16, #tpu.memory_space<vmem>>, %arg4: memref<1x384xf32, #tpu.memory_space<vmem>>, %arg5: memref<128x384xbf16, #tpu.memory_space<vmem>>, %arg6: memref<1x384xf32, #tpu.memory_space<vmem>>, %arg7: memref<128x384xbf16, #tpu.memory_space<vmem>>, %arg8: memref<128x384xbf16, #tpu.memory_space<vmem>>, %arg9: memref<1x384xf32, #tpu.memory_space<vmem>>, %arg10: memref<1x384xf32, #tpu.memory_space<vmem>>, %arg11: memref<8x8x128xbf16, #tpu.memory_space<vmem>>, %arg12: memref<8x8x128xbf16, #tpu.memory_space<vmem>>, %arg13: memref<8x8x384xf32, #tpu.memory_space<vmem>>, %arg14: memref<8x8x384xf32, #tpu.memory_space<vmem>>) attributes {dimension_semantics = [], scalar_prefetch = 0 : i64, scratch_operands = 2 : i64, tpu.core_type = #tpu.core_type<tc>} {
    %c0 = arith.constant 0 : index
    %c0_0 = arith.constant 0 : index
    %0 = vector.load %arg0[%c0, %c0_0] : memref<64x128xf32, #tpu.memory_space<vmem>>, vector<64x128xf32>
    %1 = arith.truncf %0 : vector<64x128xf32> to vector<64x128xbf16>
    %c0_1 = arith.constant 0 : index
    %c0_2 = arith.constant 0 : index
    %2 = vector.load %arg1[%c0_1, %c0_2] : memref<128x128xbf16, #tpu.memory_space<vmem>>, vector<128x128xbf16>
    %cst = arith.constant dense<0.000000e+00> : vector<64x128xf32>
    %3 = tpu.matmul %1, %2, %cst {dimension_numbers = #tpu.dot_dimension_numbers<[1], [0], [0], [1], [0, 0, 1, 1], [], []>} : vector<64x128xbf16>, vector<128x128xbf16>, vector<64x128xf32> -> vector<64x128xf32>
    %c0_3 = arith.constant 0 : index
    %c0_4 = arith.constant 0 : index
    %4 = vector.load %arg2[%c0_3, %c0_4] : memref<1x128xf32, #tpu.memory_space<vmem>>, vector<1x128xf32>
    %5 = vector.broadcast %4 : vector<1x128xf32> to vector<64x128xf32>
    %6 = arith.addf %3, %5 : vector<64x128xf32>
    %cst_5 = arith.constant 0.000000e+00 : f32
    %7 = vector.broadcast %cst_5 : f32 to vector<64x128xf32>
    %8 = arith.maximumf %6, %7 : vector<64x128xf32>
    %9 = arith.truncf %8 : vector<64x128xf32> to vector<64x128xbf16>
    %c0_6 = arith.constant 0 : index
    %c0_7 = arith.constant 0 : index
    %10 = vector.load %arg3[%c0_6, %c0_7] : memref<128x384xbf16, #tpu.memory_space<vmem>>, vector<128x384xbf16>
    %cst_8 = arith.constant dense<0.000000e+00> : vector<64x384xf32>
    %11 = tpu.matmul %9, %10, %cst_8 {dimension_numbers = #tpu.dot_dimension_numbers<[1], [0], [0], [1], [0, 0, 1, 1], [], []>} : vector<64x128xbf16>, vector<128x384xbf16>, vector<64x384xf32> -> vector<64x384xf32>
    %c0_9 = arith.constant 0 : index
    %c0_10 = arith.constant 0 : index
    %12 = vector.load %arg4[%c0_9, %c0_10] : memref<1x384xf32, #tpu.memory_space<vmem>>, vector<1x384xf32>
    %13 = vector.broadcast %12 : vector<1x384xf32> to vector<64x384xf32>
    %14 = arith.addf %11, %13 : vector<64x384xf32>
    %15 = vector.shape_cast %14 : vector<64x384xf32> to vector<8x8x384xf32>
    %c0_11 = arith.constant 0 : index
    %c0_12 = arith.constant 0 : index
    %c0_13 = arith.constant 0 : index
    %16 = vector.load %arg13[%c0_11, %c0_12, %c0_13] : memref<8x8x384xf32, #tpu.memory_space<vmem>>, vector<8x8x384xf32>
    tpu.vector_store %arg13[%c0_11, %c0_12, %c0_13], %15 {strides = array<i32>} : memref<8x8x384xf32, #tpu.memory_space<vmem>>, vector<8x8x384xf32>,
    %c0_14 = arith.constant 0 : index
    %c0_15 = arith.constant 0 : index
    %17 = vector.load %arg5[%c0_14, %c0_15] : memref<128x384xbf16, #tpu.memory_space<vmem>>, vector<128x384xbf16>
    %cst_16 = arith.constant dense<0.000000e+00> : vector<64x384xf32>
    %18 = tpu.matmul %9, %17, %cst_16 {dimension_numbers = #tpu.dot_dimension_numbers<[1], [0], [0], [1], [0, 0, 1, 1], [], []>} : vector<64x128xbf16>, vector<128x384xbf16>, vector<64x384xf32> -> vector<64x384xf32>
    %c0_17 = arith.constant 0 : index
    %c0_18 = arith.constant 0 : index
    %19 = vector.load %arg6[%c0_17, %c0_18] : memref<1x384xf32, #tpu.memory_space<vmem>>, vector<1x384xf32>
    %20 = vector.broadcast %19 : vector<1x384xf32> to vector<64x384xf32>
    %21 = arith.addf %18, %20 : vector<64x384xf32>
    %22 = vector.shape_cast %21 : vector<64x384xf32> to vector<8x8x384xf32>
    %c0_19 = arith.constant 0 : index
    %c0_20 = arith.constant 0 : index
    %c0_21 = arith.constant 0 : index
    %23 = vector.load %arg14[%c0_19, %c0_20, %c0_21] : memref<8x8x384xf32, #tpu.memory_space<vmem>>, vector<8x8x384xf32>
    tpu.vector_store %arg14[%c0_19, %c0_20, %c0_21], %22 {strides = array<i32>} : memref<8x8x384xf32, #tpu.memory_space<vmem>>, vector<8x8x384xf32>,
    %c0_22 = arith.constant 0 : index
    %c0_23 = arith.constant 0 : index
    %24 = vector.load %arg7[%c0_22, %c0_23] : memref<128x384xbf16, #tpu.memory_space<vmem>>, vector<128x384xbf16>
    %c0_24 = arith.constant 0 : index
    %c0_25 = arith.constant 0 : index
    %25 = vector.load %arg8[%c0_24, %c0_25] : memref<128x384xbf16, #tpu.memory_space<vmem>>, vector<128x384xbf16>
    %c0_26 = arith.constant 0 : index
    %c0_27 = arith.constant 0 : index
    %26 = vector.load %arg9[%c0_26, %c0_27] : memref<1x384xf32, #tpu.memory_space<vmem>>, vector<1x384xf32>
    %c0_28 = arith.constant 0 : index
    %c0_29 = arith.constant 0 : index
    %27 = vector.load %arg10[%c0_28, %c0_29] : memref<1x384xf32, #tpu.memory_space<vmem>>, vector<1x384xf32>
    %cst_30 = arith.constant 0.000000e+00 : f32
    %28 = vector.broadcast %cst_30 : f32 to vector<8x128xf32>
    %c0_i32 = arith.constant 0 : i32
    %c8_i32 = arith.constant 8 : i32
    %29 = arith.addi %c0_i32, %c8_i32 : i32
    %c1_i32 = arith.constant 1 : i32
    %30:2 = scf.for %arg15 = %c0_i32 to %29 step %c1_i32 iter_args(%arg16 = %28, %arg17 = %28) -> (vector<8x128xf32>, vector<8x128xf32>)  : i32 {
      %31 = arith.index_cast %arg15 : i32 to index
      %c0_32 = arith.constant 0 : index
      %c0_33 = arith.constant 0 : index
      %32 = vector.load %arg13[%31, %c0_32, %c0_33] : memref<8x8x384xf32, #tpu.memory_space<vmem>>, vector<1x8x384xf32>
      %33 = vector.shape_cast %32 : vector<1x8x384xf32> to vector<8x384xf32>
      %c7_i32 = arith.constant 7 : i32
      %34 = arith.subi %c7_i32, %arg15 : i32
      %35 = arith.index_cast %34 : i32 to index
      %c0_34 = arith.constant 0 : index
      %c0_35 = arith.constant 0 : index
      %36 = vector.load %arg14[%35, %c0_34, %c0_35] : memref<8x8x384xf32, #tpu.memory_space<vmem>>, vector<1x8x384xf32>
      %37 = vector.shape_cast %36 : vector<1x8x384xf32> to vector<8x384xf32>
      %38 = arith.truncf %arg16 : vector<8x128xf32> to vector<8x128xbf16>
      %cst_36 = arith.constant dense<0.000000e+00> : vector<8x384xf32>
      %39 = tpu.matmul %38, %24, %cst_36 {dimension_numbers = #tpu.dot_dimension_numbers<[1], [0], [0], [1], [0, 0, 1, 1], [], []>} : vector<8x128xbf16>, vector<128x384xbf16>, vector<8x384xf32> -> vector<8x384xf32>
      %40 = vector.broadcast %26 : vector<1x384xf32> to vector<8x384xf32>
      %41 = arith.addf %39, %40 : vector<8x384xf32>
      %42 = arith.truncf %arg17 : vector<8x128xf32> to vector<8x128xbf16>
      %cst_37 = arith.constant dense<0.000000e+00> : vector<8x384xf32>
      %43 = tpu.matmul %42, %25, %cst_37 {dimension_numbers = #tpu.dot_dimension_numbers<[1], [0], [0], [1], [0, 0, 1, 1], [], []>} : vector<8x128xbf16>, vector<128x384xbf16>, vector<8x384xf32> -> vector<8x384xf32>
      %44 = vector.broadcast %27 : vector<1x384xf32> to vector<8x384xf32>
      %45 = arith.addf %43, %44 : vector<8x384xf32>
      %46 = vector.extract_strided_slice %33 {offsets = [0, 0], sizes = [8, 128], strides = [1, 1]} : vector<8x384xf32> to vector<8x128xf32>
      %47 = vector.extract_strided_slice %41 {offsets = [0, 0], sizes = [8, 128], strides = [1, 1]} : vector<8x384xf32> to vector<8x128xf32>
      %48 = arith.addf %46, %47 : vector<8x128xf32>
      %49 = arith.negf %48 : vector<8x128xf32>
      %50 = math.exp %49 : vector<8x128xf32>
      %cst_38 = arith.constant 1.000000e+00 : f32
      %51 = vector.broadcast %cst_38 : f32 to vector<8x128xf32>
      %52 = arith.addf %51, %50 : vector<8x128xf32>
      %53 = arith.divf %51, %52 : vector<8x128xf32>
      %54 = vector.extract_strided_slice %33 {offsets = [0, 128], sizes = [8, 128], strides = [1, 1]} : vector<8x384xf32> to vector<8x128xf32>
      %55 = vector.extract_strided_slice %41 {offsets = [0, 128], sizes = [8, 128], strides = [1, 1]} : vector<8x384xf32> to vector<8x128xf32>
      %56 = arith.addf %54, %55 : vector<8x128xf32>
      %57 = arith.negf %56 : vector<8x128xf32>
      %58 = math.exp %57 : vector<8x128xf32>
      %cst_39 = arith.constant 1.000000e+00 : f32
      %59 = vector.broadcast %cst_39 : f32 to vector<8x128xf32>
      %60 = arith.addf %59, %58 : vector<8x128xf32>
      %61 = arith.divf %59, %60 : vector<8x128xf32>
      %62 = vector.extract_strided_slice %33 {offsets = [0, 256], sizes = [8, 128], strides = [1, 1]} : vector<8x384xf32> to vector<8x128xf32>
      %63 = vector.extract_strided_slice %41 {offsets = [0, 256], sizes = [8, 128], strides = [1, 1]} : vector<8x384xf32> to vector<8x128xf32>
      %64 = arith.mulf %53, %63 : vector<8x128xf32>
      %65 = arith.addf %62, %64 : vector<8x128xf32>
      %66 = math.tanh %65 : vector<8x128xf32>
      %cst_40 = arith.constant 1.000000e+00 : f32
      %67 = vector.broadcast %cst_40 : f32 to vector<8x128xf32>
      %68 = arith.subf %67, %61 : vector<8x128xf32>
      %69 = arith.mulf %68, %66 : vector<8x128xf32>
      %70 = arith.mulf %61, %arg16 : vector<8x128xf32>
      %71 = arith.addf %69, %70 : vector<8x128xf32>
      %72 = vector.extract_strided_slice %37 {offsets = [0, 0], sizes = [8, 128], strides = [1, 1]} : vector<8x384xf32> to vector<8x128xf32>
      %73 = vector.extract_strided_slice %45 {offsets = [0, 0], sizes = [8, 128], strides = [1, 1]} : vector<8x384xf32> to vector<8x128xf32>
      %74 = arith.addf %72, %73 : vector<8x128xf32>
      %75 = arith.negf %74 : vector<8x128xf32>
      %76 = math.exp %75 : vector<8x128xf32>
      %cst_41 = arith.constant 1.000000e+00 : f32
      %77 = vector.broadcast %cst_41 : f32 to vector<8x128xf32>
      %78 = arith.addf %77, %76 : vector<8x128xf32>
      %79 = arith.divf %77, %78 : vector<8x128xf32>
      %80 = vector.extract_strided_slice %37 {offsets = [0, 128], sizes = [8, 128], strides = [1, 1]} : vector<8x384xf32> to vector<8x128xf32>
      %81 = vector.extract_strided_slice %45 {offsets = [0, 128], sizes = [8, 128], strides = [1, 1]} : vector<8x384xf32> to vector<8x128xf32>
      %82 = arith.addf %80, %81 : vector<8x128xf32>
      %83 = arith.negf %82 : vector<8x128xf32>
      %84 = math.exp %83 : vector<8x128xf32>
      %cst_42 = arith.constant 1.000000e+00 : f32
      %85 = vector.broadcast %cst_42 : f32 to vector<8x128xf32>
      %86 = arith.addf %85, %84 : vector<8x128xf32>
      %87 = arith.divf %85, %86 : vector<8x128xf32>
      %88 = vector.extract_strided_slice %37 {offsets = [0, 256], sizes = [8, 128], strides = [1, 1]} : vector<8x384xf32> to vector<8x128xf32>
      %89 = vector.extract_strided_slice %45 {offsets = [0, 256], sizes = [8, 128], strides = [1, 1]} : vector<8x384xf32> to vector<8x128xf32>
      %90 = arith.mulf %79, %89 : vector<8x128xf32>
      %91 = arith.addf %88, %90 : vector<8x128xf32>
      %92 = math.tanh %91 : vector<8x128xf32>
      %cst_43 = arith.constant 1.000000e+00 : f32
      %93 = vector.broadcast %cst_43 : f32 to vector<8x128xf32>
      %94 = arith.subf %93, %87 : vector<8x128xf32>
      %95 = arith.mulf %94, %92 : vector<8x128xf32>
      %96 = arith.mulf %87, %arg17 : vector<8x128xf32>
      %97 = arith.addf %95, %96 : vector<8x128xf32>
      %98 = arith.truncf %71 : vector<8x128xf32> to vector<8x128xbf16>
      %99 = arith.index_cast %arg15 : i32 to index
      %c0_44 = arith.constant 0 : index
      %c0_45 = arith.constant 0 : index
      %100 = vector.load %arg11[%99, %c0_44, %c0_45] : memref<8x8x128xbf16, #tpu.memory_space<vmem>>, vector<1x8x128xbf16>
      %101 = vector.shape_cast %100 : vector<1x8x128xbf16> to vector<8x128xbf16>
      %102 = vector.shape_cast %98 : vector<8x128xbf16> to vector<1x8x128xbf16>
      tpu.vector_store %arg11[%99, %c0_44, %c0_45], %102 {strides = array<i32>} : memref<8x8x128xbf16, #tpu.memory_space<vmem>>, vector<1x8x128xbf16>,
      %103 = arith.truncf %97 : vector<8x128xf32> to vector<8x128xbf16>
      %c7_i32_46 = arith.constant 7 : i32
      %104 = arith.subi %c7_i32_46, %arg15 : i32
      %105 = arith.index_cast %104 : i32 to index
      %c0_47 = arith.constant 0 : index
      %c0_48 = arith.constant 0 : index
      %106 = vector.load %arg12[%105, %c0_47, %c0_48] : memref<8x8x128xbf16, #tpu.memory_space<vmem>>, vector<1x8x128xbf16>
      %107 = vector.shape_cast %106 : vector<1x8x128xbf16> to vector<8x128xbf16>
      %108 = vector.shape_cast %103 : vector<8x128xbf16> to vector<1x8x128xbf16>
      tpu.vector_store %arg12[%105, %c0_47, %c0_48], %108 {strides = array<i32>} : memref<8x8x128xbf16, #tpu.memory_space<vmem>>, vector<1x8x128xbf16>,
      scf.yield %71, %97 : vector<8x128xf32>, vector<8x128xf32>
    }
    %c8_i32_31 = arith.constant 8 : i32
    return
  }
}

module attributes {stable_mosaic.version = 11 : i64} {
  func.func @_head_kernel(%arg0: i32, %arg1: memref<8x8x128xbf16, #tpu.memory_space<vmem>>, %arg2: memref<8x8x128xbf16, #tpu.memory_space<vmem>>, %arg3: memref<256x128xbf16, #tpu.memory_space<vmem>>, %arg4: memref<1x128xf32, #tpu.memory_space<vmem>>, %arg5: memref<256x128xbf16, #tpu.memory_space<vmem>>, %arg6: memref<1x128xf32, #tpu.memory_space<vmem>>, %arg7: memref<8x8x128xf32, #tpu.memory_space<vmem>>, %arg8: memref<8x128xf32, #tpu.memory_space<vmem>>, %arg9: memref<8x128xf32, #tpu.memory_space<vmem>>, %arg10: memref<8x128xf32, #tpu.memory_space<vmem>>) attributes {dimension_semantics = [#tpu.dimension_semantics<arbitrary>], iteration_bounds = array<i64: 1>, scalar_prefetch = 0 : i64, scratch_operands = 2 : i64, tpu.core_type = #tpu.core_type<tc>, window_params = [{transform_indices = @transform_0, window_bounds = array<i64: 8, 8, 128>}, {transform_indices = @transform_1, window_bounds = array<i64: 8, 8, 128>}, {pipeline_mode = #tpu.pipeline_mode<synchronous>, transform_indices = @transform_2, window_bounds = array<i64: 256, 128>}, {pipeline_mode = #tpu.pipeline_mode<synchronous>, transform_indices = @transform_3, window_bounds = array<i64: 1, 128>}, {pipeline_mode = #tpu.pipeline_mode<synchronous>, transform_indices = @transform_4, window_bounds = array<i64: 256, 128>}, {pipeline_mode = #tpu.pipeline_mode<synchronous>, transform_indices = @transform_5, window_bounds = array<i64: 1, 128>}, {transform_indices = @transform_6, window_bounds = array<i64: 8, 8, 128>}, {pipeline_mode = #tpu.pipeline_mode<synchronous>, transform_indices = @transform_7, window_bounds = array<i64: 8, 128>}]} {
    %c0_i32 = arith.constant 0 : i32
    %0 = arith.cmpi eq, %arg0, %c0_i32 : i32
    %1 = arith.extui %0 : i1 to i32
    %c0_i32_0 = arith.constant 0 : i32
    %2 = arith.cmpi ne, %1, %c0_i32_0 : i32
    scf.if %2 {
      %cst_38 = arith.constant 0.000000e+00 : f32
      %61 = vector.broadcast %cst_38 : f32 to vector<8x128xf32>
      %c0_39 = arith.constant 0 : index
      %c0_40 = arith.constant 0 : index
      %62 = vector.load %arg9[%c0_39, %c0_40] : memref<8x128xf32, #tpu.memory_space<vmem>>, vector<8x128xf32>
      tpu.vector_store %arg9[%c0_39, %c0_40], %61 {strides = array<i32>} : memref<8x128xf32, #tpu.memory_space<vmem>>, vector<8x128xf32>,
      %cst_41 = arith.constant 0.000000e+00 : f32
      %63 = vector.broadcast %cst_41 : f32 to vector<8x128xf32>
      %c0_42 = arith.constant 0 : index
      %c0_43 = arith.constant 0 : index
      %64 = vector.load %arg10[%c0_42, %c0_43] : memref<8x128xf32, #tpu.memory_space<vmem>>, vector<8x128xf32>
      tpu.vector_store %arg10[%c0_42, %c0_43], %63 {strides = array<i32>} : memref<8x128xf32, #tpu.memory_space<vmem>>, vector<8x128xf32>,
    } else {
    }
    %c0 = arith.constant 0 : index
    %c0_1 = arith.constant 0 : index
    %c0_2 = arith.constant 0 : index
    %3 = vector.load %arg1[%c0, %c0_1, %c0_2] : memref<8x8x128xbf16, #tpu.memory_space<vmem>>, vector<8x8x128xbf16>
    %4 = vector.shape_cast %3 : vector<8x8x128xbf16> to vector<64x128xbf16>
    %c0_3 = arith.constant 0 : index
    %c0_4 = arith.constant 0 : index
    %c0_5 = arith.constant 0 : index
    %5 = vector.load %arg2[%c0_3, %c0_4, %c0_5] : memref<8x8x128xbf16, #tpu.memory_space<vmem>>, vector<8x8x128xbf16>
    %6 = vector.shape_cast %5 : vector<8x8x128xbf16> to vector<64x128xbf16>
    %c0_6 = arith.constant 0 : index
    %c0_7 = arith.constant 0 : index
    %7 = vector.load %arg3[%c0_6, %c0_7] : memref<256x128xbf16, #tpu.memory_space<vmem>>, vector<256x128xbf16>
    %c0_8 = arith.constant 0 : index
    %c0_9 = arith.constant 0 : index
    %8 = vector.load %arg5[%c0_8, %c0_9] : memref<256x128xbf16, #tpu.memory_space<vmem>>, vector<256x128xbf16>
    %9 = vector.extract_strided_slice %7 {offsets = [0, 0], sizes = [128, 128], strides = [1, 1]} : vector<256x128xbf16> to vector<128x128xbf16>
    %cst = arith.constant dense<0.000000e+00> : vector<64x128xf32>
    %10 = tpu.matmul %4, %9, %cst {dimension_numbers = #tpu.dot_dimension_numbers<[1], [0], [0], [1], [0, 0, 1, 1], [], []>} : vector<64x128xbf16>, vector<128x128xbf16>, vector<64x128xf32> -> vector<64x128xf32>
    %11 = vector.extract_strided_slice %7 {offsets = [128, 0], sizes = [128, 128], strides = [1, 1]} : vector<256x128xbf16> to vector<128x128xbf16>
    %cst_10 = arith.constant dense<0.000000e+00> : vector<64x128xf32>
    %12 = tpu.matmul %6, %11, %cst_10 {dimension_numbers = #tpu.dot_dimension_numbers<[1], [0], [0], [1], [0, 0, 1, 1], [], []>} : vector<64x128xbf16>, vector<128x128xbf16>, vector<64x128xf32> -> vector<64x128xf32>
    %13 = arith.addf %10, %12 : vector<64x128xf32>
    %c0_11 = arith.constant 0 : index
    %c0_12 = arith.constant 0 : index
    %14 = vector.load %arg4[%c0_11, %c0_12] : memref<1x128xf32, #tpu.memory_space<vmem>>, vector<1x128xf32>
    %15 = vector.broadcast %14 : vector<1x128xf32> to vector<64x128xf32>
    %16 = arith.addf %13, %15 : vector<64x128xf32>
    %17 = arith.negf %16 : vector<64x128xf32>
    %18 = math.exp %17 : vector<64x128xf32>
    %cst_13 = arith.constant 1.000000e+00 : f32
    %19 = vector.broadcast %cst_13 : f32 to vector<64x128xf32>
    %20 = arith.addf %19, %18 : vector<64x128xf32>
    %21 = arith.divf %19, %20 : vector<64x128xf32>
    %22 = vector.extract_strided_slice %8 {offsets = [0, 0], sizes = [128, 128], strides = [1, 1]} : vector<256x128xbf16> to vector<128x128xbf16>
    %cst_14 = arith.constant dense<0.000000e+00> : vector<64x128xf32>
    %23 = tpu.matmul %4, %22, %cst_14 {dimension_numbers = #tpu.dot_dimension_numbers<[1], [0], [0], [1], [0, 0, 1, 1], [], []>} : vector<64x128xbf16>, vector<128x128xbf16>, vector<64x128xf32> -> vector<64x128xf32>
    %24 = vector.extract_strided_slice %8 {offsets = [128, 0], sizes = [128, 128], strides = [1, 1]} : vector<256x128xbf16> to vector<128x128xbf16>
    %cst_15 = arith.constant dense<0.000000e+00> : vector<64x128xf32>
    %25 = tpu.matmul %6, %24, %cst_15 {dimension_numbers = #tpu.dot_dimension_numbers<[1], [0], [0], [1], [0, 0, 1, 1], [], []>} : vector<64x128xbf16>, vector<128x128xbf16>, vector<64x128xf32> -> vector<64x128xf32>
    %26 = arith.addf %23, %25 : vector<64x128xf32>
    %c0_16 = arith.constant 0 : index
    %c0_17 = arith.constant 0 : index
    %27 = vector.load %arg6[%c0_16, %c0_17] : memref<1x128xf32, #tpu.memory_space<vmem>>, vector<1x128xf32>
    %28 = vector.broadcast %27 : vector<1x128xf32> to vector<64x128xf32>
    %29 = arith.addf %26, %28 : vector<64x128xf32>
    %cst_18 = arith.constant dense<0xFF800000> : vector<64xf32>
    %30 = vector.multi_reduction <maximumf>, %29, %cst_18 [1] : vector<64x128xf32> to vector<64xf32>
    %cst_19 = arith.constant 0xFF800000 : f32
    %31 = vector.broadcast %cst_19 : f32 to vector<64xf32>
    %32 = arith.maximumf %31, %30 : vector<64xf32>
    %33 = vector.shape_cast %32 : vector<64xf32> to vector<64x1xf32>
    %34 = vector.broadcast %33 : vector<64x1xf32> to vector<64x128xf32>
    %35 = arith.subf %29, %34 : vector<64x128xf32>
    %36 = math.exp %35 : vector<64x128xf32>
    %cst_20 = arith.constant dense<0.000000e+00> : vector<64xf32>
    %37 = vector.multi_reduction <add>, %36, %cst_20 [1] : vector<64x128xf32> to vector<64xf32>
    %38 = vector.shape_cast %37 : vector<64xf32> to vector<64x1xf32>
    %39 = vector.broadcast %38 : vector<64x1xf32> to vector<64x128xf32>
    %40 = arith.divf %36, %39 : vector<64x128xf32>
    %cst_21 = arith.constant 1.000000e-07 : f32
    %cst_22 = arith.constant 1.000000e+00 : f32
    %41 = vector.broadcast %cst_21 : f32 to vector<64x128xf32>
    %42 = arith.maximumf %41, %40 : vector<64x128xf32>
    %43 = vector.broadcast %cst_22 : f32 to vector<64x128xf32>
    %44 = arith.minimumf %43, %42 : vector<64x128xf32>
    %c0_23 = arith.constant 0 : index
    %c0_24 = arith.constant 0 : index
    %45 = vector.load %arg9[%c0_23, %c0_24] : memref<8x128xf32, #tpu.memory_space<vmem>>, vector<8x128xf32>
    %46 = arith.mulf %21, %44 : vector<64x128xf32>
    %47 = vector.shape_cast %46 : vector<64x128xf32> to vector<8x8x128xf32>
    %cst_25 = arith.constant dense<0.000000e+00> : vector<8x128xf32>
    %48 = vector.multi_reduction <add>, %47, %cst_25 [0] : vector<8x8x128xf32> to vector<8x128xf32>
    %49 = arith.addf %45, %48 : vector<8x128xf32>
    %c0_26 = arith.constant 0 : index
    %c0_27 = arith.constant 0 : index
    %50 = vector.load %arg9[%c0_26, %c0_27] : memref<8x128xf32, #tpu.memory_space<vmem>>, vector<8x128xf32>
    tpu.vector_store %arg9[%c0_26, %c0_27], %49 {strides = array<i32>} : memref<8x128xf32, #tpu.memory_space<vmem>>, vector<8x128xf32>,
    %c0_28 = arith.constant 0 : index
    %c0_29 = arith.constant 0 : index
    %51 = vector.load %arg10[%c0_28, %c0_29] : memref<8x128xf32, #tpu.memory_space<vmem>>, vector<8x128xf32>
    %52 = vector.shape_cast %44 : vector<64x128xf32> to vector<8x8x128xf32>
    %cst_30 = arith.constant dense<0.000000e+00> : vector<8x128xf32>
    %53 = vector.multi_reduction <add>, %52, %cst_30 [0] : vector<8x8x128xf32> to vector<8x128xf32>
    %54 = arith.addf %51, %53 : vector<8x128xf32>
    %c0_31 = arith.constant 0 : index
    %c0_32 = arith.constant 0 : index
    %55 = vector.load %arg10[%c0_31, %c0_32] : memref<8x128xf32, #tpu.memory_space<vmem>>, vector<8x128xf32>
    tpu.vector_store %arg10[%c0_31, %c0_32], %54 {strides = array<i32>} : memref<8x128xf32, #tpu.memory_space<vmem>>, vector<8x128xf32>,
    %56 = vector.shape_cast %21 : vector<64x128xf32> to vector<8x8x128xf32>
    %c0_33 = arith.constant 0 : index
    %c0_34 = arith.constant 0 : index
    %c0_35 = arith.constant 0 : index
    %57 = vector.load %arg7[%c0_33, %c0_34, %c0_35] : memref<8x8x128xf32, #tpu.memory_space<vmem>>, vector<8x8x128xf32>
    tpu.vector_store %arg7[%c0_33, %c0_34, %c0_35], %56 {strides = array<i32>} : memref<8x8x128xf32, #tpu.memory_space<vmem>>, vector<8x8x128xf32>,
    %c0_i32_36 = arith.constant 0 : i32
    %58 = arith.cmpi eq, %arg0, %c0_i32_36 : i32
    %59 = arith.extui %58 : i1 to i32
    %c0_i32_37 = arith.constant 0 : i32
    %60 = arith.cmpi ne, %59, %c0_i32_37 : i32
    scf.if %60 {
      %c0_38 = arith.constant 0 : index
      %c0_39 = arith.constant 0 : index
      %61 = vector.load %arg9[%c0_38, %c0_39] : memref<8x128xf32, #tpu.memory_space<vmem>>, vector<8x128xf32>
      %c0_40 = arith.constant 0 : index
      %c0_41 = arith.constant 0 : index
      %62 = vector.load %arg10[%c0_40, %c0_41] : memref<8x128xf32, #tpu.memory_space<vmem>>, vector<8x128xf32>
      %63 = tpu.reciprocal %62 {approx = true} : vector<8x128xf32> -> vector<8x128xf32>
      %64 = arith.mulf %61, %63 : vector<8x128xf32>
      %c0_42 = arith.constant 0 : index
      %c0_43 = arith.constant 0 : index
      %65 = vector.load %arg8[%c0_42, %c0_43] : memref<8x128xf32, #tpu.memory_space<vmem>>, vector<8x128xf32>
      tpu.vector_store %arg8[%c0_42, %c0_43], %64 {strides = array<i32>} : memref<8x128xf32, #tpu.memory_space<vmem>>, vector<8x128xf32>,
    } else {
    }
    return
  }
  func.func @transform_0(%arg0: i32) -> (i32, i32, i32) {
    %c0_i32 = arith.constant 0 : i32
    %c0_i32_0 = arith.constant 0 : i32
    %c0_i32_1 = arith.constant 0 : i32
    return %arg0, %c0_i32, %c0_i32_0 : i32, i32, i32
  }
  func.func @transform_1(%arg0: i32) -> (i32, i32, i32) {
    %c0_i32 = arith.constant 0 : i32
    %c0_i32_0 = arith.constant 0 : i32
    %c0_i32_1 = arith.constant 0 : i32
    return %arg0, %c0_i32, %c0_i32_0 : i32, i32, i32
  }
  func.func @transform_2(%arg0: i32) -> (i32, i32) {
    %c0_i32 = arith.constant 0 : i32
    %c0_i32_0 = arith.constant 0 : i32
    %c0_i32_1 = arith.constant 0 : i32
    return %c0_i32, %c0_i32_0 : i32, i32
  }
  func.func @transform_3(%arg0: i32) -> (i32, i32) {
    %c0_i32 = arith.constant 0 : i32
    %c0_i32_0 = arith.constant 0 : i32
    %c0_i32_1 = arith.constant 0 : i32
    return %c0_i32, %c0_i32_0 : i32, i32
  }
  func.func @transform_4(%arg0: i32) -> (i32, i32) {
    %c0_i32 = arith.constant 0 : i32
    %c0_i32_0 = arith.constant 0 : i32
    %c0_i32_1 = arith.constant 0 : i32
    return %c0_i32, %c0_i32_0 : i32, i32
  }
  func.func @transform_5(%arg0: i32) -> (i32, i32) {
    %c0_i32 = arith.constant 0 : i32
    %c0_i32_0 = arith.constant 0 : i32
    %c0_i32_1 = arith.constant 0 : i32
    return %c0_i32, %c0_i32_0 : i32, i32
  }
  func.func @transform_6(%arg0: i32) -> (i32, i32, i32) {
    %c0_i32 = arith.constant 0 : i32
    %c0_i32_0 = arith.constant 0 : i32
    %c0_i32_1 = arith.constant 0 : i32
    return %arg0, %c0_i32, %c0_i32_0 : i32, i32, i32
  }
  func.func @transform_7(%arg0: i32) -> (i32, i32) {
    %c0_i32 = arith.constant 0 : i32
    %c0_i32_0 = arith.constant 0 : i32
    %c0_i32_1 = arith.constant 0 : i32
    return %c0_i32, %c0_i32_0 : i32, i32
  }
}

</mosaic_0001>

<llo_original>
// kernel: wrnn_forward.5
$region0: #{wrnn_forward.5}
  #allocation0 [shape = 'u32[]', space=smem, size = 0x4, offset = 0x4, fixed_abs, tag = 'smem constant byte address 0x4 - core index']
  #allocation1 [shape = 'u32[144,128]{1,0:T(1,128)}', space=vmem, size = 0x12000, scoped, tag = 'internal scratch']
  #allocation2 [shape = 'f32[8,128]{1,0:T(8,128)}', space=vmem, size = 0x1000, scoped, tag = 'scratch operand']
  #allocation3 [shape = 'f32[8,128]{1,0:T(8,128)}', space=vmem, size = 0x1000, scoped, tag = 'scratch operand']
  %s0 = inlined_call_operand.vmem [shape: bf16[8,8,128], index: 0, kind: input, shape index: {}]
  %s1 = inlined_call_operand.vmem [shape: bf16[8,8,128], index: 1, kind: input, shape index: {}]
  %s2 = inlined_call_operand.vmem [shape: bf16[256,128], index: 2, kind: input, shape index: {}]
  %s3 = inlined_call_operand.vmem [shape: f32[1,128], index: 3, kind: input, shape index: {}]
  %s4 = inlined_call_operand.vmem [shape: bf16[256,128], index: 4, kind: input, shape index: {}]
  %s5 = inlined_call_operand.vmem [shape: f32[1,128], index: 5, kind: input, shape index: {}]
  %s6 = inlined_call_operand.vmem [shape: f32[8,8,128], index: 6, kind: output, shape index: {0}]
  %s7 = inlined_call_operand.vmem [shape: f32[8,128], index: 7, kind: output, shape index: {1}]
  %8 = xla_tuple %s6, %s7
  %s9 = sld [smem:[#allocation0]]
  $region50: #{wrnn_forward.5} parent=0
    _
  %s11 = ssub.s32 1, %s9
  %s12 = scalar_select 0, %s11, %s9
  // Predicated region
  $region2: #{wrnn_forward.5} parent=0 // pred_check
    _
  $region3: #{wrnn_forward.5} parent=0 // pred_check_branch
    %14 = sbr.rel (0) target = $region5
  $region4: #{wrnn_forward.5} parent=0 // pred_region
    _
  $region5: #{wrnn_forward.5} parent=0 // pred_fallthru
    _
  // Predicated region
  $region6: #{wrnn_forward.5} parent=0 // pred_check
    _
  $region7: #{wrnn_forward.5} parent=0 // pred_check_branch
    %16 = sbr.rel (0) target = $region9
  $region8: #{wrnn_forward.5} parent=0 // pred_region
    _
  $region9: #{wrnn_forward.5} parent=0 // pred_fallthru
    _
  // Predicated region
  $region10: #{wrnn_forward.5} parent=0 // pred_check
    _
  $region11: #{wrnn_forward.5} parent=0 // pred_check_branch
    %18 = sbr.rel (0) target = $region13
  $region12: #{wrnn_forward.5} parent=0 // pred_region
    _
  $region13: #{wrnn_forward.5} parent=0 // pred_fallthru
    _
  // Predicated region
  $region14: #{wrnn_forward.5} parent=0 // pred_check
    _
  $region15: #{wrnn_forward.5} parent=0 // pred_check_branch
    %20 = sbr.rel (0) target = $region17
  $region16: #{wrnn_forward.5} parent=0 // pred_region
    _
  $region17: #{wrnn_forward.5} parent=0 // pred_fallthru
    _
  // Predicated region
  $region18: #{wrnn_forward.5} parent=0 // pred_check
    _
  $region19: #{wrnn_forward.5} parent=0 // pred_check_branch
    %22 = sbr.rel (0) target = $region21
  $region20: #{wrnn_forward.5} parent=0 // pred_region
    _
  $region21: #{wrnn_forward.5} parent=0 // pred_fallthru
    _
  // Predicated region
  $region22: #{wrnn_forward.5} parent=0 // pred_check
    _
  $region23: #{wrnn_forward.5} parent=0 // pred_check_branch
    %24 = sbr.rel (0) target = $region25
  $region24: #{wrnn_forward.5} parent=0 // pred_region
    _
  $region25: #{wrnn_forward.5} parent=0 // pred_fallthru
    _
  %p26 = scmp.eq.s32.totalorder 0, 0
  // Predicated region
  $region26: #{wrnn_forward.5} parent=0 // pred_check
    %p27 = pneg %p26
  $region27: #{wrnn_forward.5} parent=0 // pred_check_branch
    %29 = sbr.rel (%p27) target = $region29
  $region28: #{wrnn_forward.5} parent=0 // pred_region
    %30 = vst [vmem:[#allocation2] sm:$0xff] 0.0
    %31 = vst [vmem:[#allocation3] sm:$0xff] 0.0
  $region29: #{wrnn_forward.5} parent=0 // pred_fallthru
    _
  %v32 = vld [vmem:[%s0] sm:$0xf]
  %v33 = vld [vmem:[%s0 + $0x4] sm:$0xf]
  %v34 = vld [vmem:[%s0 + $0x8] sm:$0xf]
  %v35 = vld [vmem:[%s0 + $0xc] sm:$0xf]
  %v36 = vld [vmem:[%s0 + $0x10] sm:$0xf]
  %v37 = vld [vmem:[%s0 + $0x14] sm:$0xf]
  %v38 = vld [vmem:[%s0 + $0x18] sm:$0xf]
  %v39 = vld [vmem:[%s0 + $0x1c] sm:$0xf]
  %v40 = vld [vmem:[%s1] sm:$0xf]
  %v41 = vld [vmem:[%s1 + $0x4] sm:$0xf]
  %v42 = vld [vmem:[%s1 + $0x8] sm:$0xf]
  %v43 = vld [vmem:[%s1 + $0xc] sm:$0xf]
  %v44 = vld [vmem:[%s1 + $0x10] sm:$0xf]
  %v45 = vld [vmem:[%s1 + $0x14] sm:$0xf]
  %v46 = vld [vmem:[%s1 + $0x18] sm:$0xf]
  %v47 = vld [vmem:[%s1 + $0x1c] sm:$0xf]
  %v48 = vld [vmem:[%s2] sm:$0xf]
  %v49 = vld [vmem:[%s2 + $0x4] sm:$0xf]
  %v50 = vld [vmem:[%s2 + $0x8] sm:$0xf]
  %v51 = vld [vmem:[%s2 + $0xc] sm:$0xf]
  %v52 = vld [vmem:[%s2 + $0x10] sm:$0xf]
  %v53 = vld [vmem:[%s2 + $0x14] sm:$0xf]
  %v54 = vld [vmem:[%s2 + $0x18] sm:$0xf]
  %v55 = vld [vmem:[%s2 + $0x1c] sm:$0xf]
  %v56 = vld [vmem:[%s2 + $0x20] sm:$0xf]
  %v57 = vld [vmem:[%s2 + $0x24] sm:$0xf]
  %v58 = vld [vmem:[%s2 + $0x28] sm:$0xf]
  %v59 = vld [vmem:[%s2 + $0x2c] sm:$0xf]
  %v60 = vld [vmem:[%s2 + $0x30] sm:$0xf]
  %v61 = vld [vmem:[%s2 + $0x34] sm:$0xf]
  %v62 = vld [vmem:[%s2 + $0x38] sm:$0xf]
  %v63 = vld [vmem:[%s2 + $0x3c] sm:$0xf]
  %v64 = vld [vmem:[%s2 + $0x40] sm:$0xf]
  %v65 = vld [vmem:[%s2 + $0x44] sm:$0xf]
  %v66 = vld [vmem:[%s2 + $0x48] sm:$0xf]
  %v67 = vld [vmem:[%s2 + $0x4c] sm:$0xf]
  %v68 = vld [vmem:[%s2 + $0x50] sm:$0xf]
  %v69 = vld [vmem:[%s2 + $0x54] sm:$0xf]
  %v70 = vld [vmem:[%s2 + $0x58] sm:$0xf]
  %v71 = vld [vmem:[%s2 + $0x5c] sm:$0xf]
  %v72 = vld [vmem:[%s2 + $0x60] sm:$0xf]
  %v73 = vld [vmem:[%s2 + $0x64] sm:$0xf]
  %v74 = vld [vmem:[%s2 + $0x68] sm:$0xf]
  %v75 = vld [vmem:[%s2 + $0x6c] sm:$0xf]
  %v76 = vld [vmem:[%s2 + $0x70] sm:$0xf]
  %v77 = vld [vmem:[%s2 + $0x74] sm:$0xf]
  %v78 = vld [vmem:[%s2 + $0x78] sm:$0xf]
  %v79 = vld [vmem:[%s2 + $0x7c] sm:$0xf]
  %v80 = vld [vmem:[%s4] sm:$0xf]
  %v81 = vld [vmem:[%s4 + $0x4] sm:$0xf]
  %v82 = vld [vmem:[%s4 + $0x8] sm:$0xf]
  %v83 = vld [vmem:[%s4 + $0xc] sm:$0xf]
  %v84 = vld [vmem:[%s4 + $0x10] sm:$0xf]
  %v85 = vld [vmem:[%s4 + $0x14] sm:$0xf]
  %v86 = vld [vmem:[%s4 + $0x18] sm:$0xf]
  %v87 = vld [vmem:[%s4 + $0x1c] sm:$0xf]
  %v88 = vld [vmem:[%s4 + $0x20] sm:$0xf]
  %v89 = vld [vmem:[%s4 + $0x24] sm:$0xf]
  %v90 = vld [vmem:[%s4 + $0x28] sm:$0xf]
  %v91 = vld [vmem:[%s4 + $0x2c] sm:$0xf]
  %v92 = vld [vmem:[%s4 + $0x30] sm:$0xf]
  %v93 = vld [vmem:[%s4 + $0x34] sm:$0xf]
  %v94 = vld [vmem:[%s4 + $0x38] sm:$0xf]
  %v95 = vld [vmem:[%s4 + $0x3c] sm:$0xf]
  %v96 = vld [vmem:[%s4 + $0x40] sm:$0xf]
  %v97 = vld [vmem:[%s4 + $0x44] sm:$0xf]
  %v98 = vld [vmem:[%s4 + $0x48] sm:$0xf]
  %v99 = vld [vmem:[%s4 + $0x4c] sm:$0xf]
  %v100 = vld [vmem:[%s4 + $0x50] sm:$0xf]
  %v101 = vld [vmem:[%s4 + $0x54] sm:$0xf]
  %v102 = vld [vmem:[%s4 + $0x58] sm:$0xf]
  %v103 = vld [vmem:[%s4 + $0x5c] sm:$0xf]
  %v104 = vld [vmem:[%s4 + $0x60] sm:$0xf]
  %v105 = vld [vmem:[%s4 + $0x64] sm:$0xf]
  %v106 = vld [vmem:[%s4 + $0x68] sm:$0xf]
  %v107 = vld [vmem:[%s4 + $0x6c] sm:$0xf]
  %v108 = vld [vmem:[%s4 + $0x70] sm:$0xf]
  %v109 = vld [vmem:[%s4 + $0x74] sm:$0xf]
  %v110 = vld [vmem:[%s4 + $0x78] sm:$0xf]
  %v111 = vld [vmem:[%s4 + $0x7c] sm:$0xf]
  %v120 = vunpack.c.l.b16 %v40
  %v121 = vunpack.c.l.b16 %v41
  %v122 = vunpack.c.l.b16 %v42
  %v123 = vunpack.c.l.b16 %v43
  %v124 = vunpack.c.l.b16 %v44
  %v125 = vunpack.c.l.b16 %v45
  %v126 = vunpack.c.l.b16 %v46
  %v127 = vunpack.c.l.b16 %v47
  %v128 = vpack.c.b16 %v121, %v120
  %v129 = vpack.c.b16 %v123, %v122
  %v130 = vpack.c.b16 %v125, %v124
  %v131 = vpack.c.b16 %v127, %v126
  %v152 = vunpack.c.l.b16 %v64
  %v153 = vunpack.c.l.b16 %v65
  %v154 = vunpack.c.l.b16 %v66
  %v155 = vunpack.c.l.b16 %v67
  %v156 = vunpack.c.l.b16 %v68
  %v157 = vunpack.c.l.b16 %v69
  %v158 = vunpack.c.l.b16 %v70
  %v159 = vunpack.c.l.b16 %v71
  %v160 = vunpack.c.l.b16 %v72
  %v161 = vunpack.c.l.b16 %v73
  %v162 = vunpack.c.l.b16 %v74
  %v163 = vunpack.c.l.b16 %v75
  %v164 = vunpack.c.l.b16 %v76
  %v165 = vunpack.c.l.b16 %v77
  %v166 = vunpack.c.l.b16 %v78
  %v167 = vunpack.c.l.b16 %v79
  %v168 = vpack.c.b16 %v153, %v152
  %v169 = vpack.c.b16 %v155, %v154
  %v170 = vpack.c.b16 %v157, %v156
  %v171 = vpack.c.b16 %v159, %v158
  %v172 = vpack.c.b16 %v161, %v160
  %v173 = vpack.c.b16 %v163, %v162
  %v174 = vpack.c.b16 %v165, %v164
  %v175 = vpack.c.b16 %v167, %v166
  %184 = vmatprep.subr.bf16.mxu0 0
  %185 = vmatpush1.bf16.msra.mxu0 %v168
  %186 = vmatprep.subr.bf16.mxu0 0
  %187 = vmatpush1.bf16.msra.mxu0 %v169
  %188 = vmatprep.subr.bf16.mxu0 0
  %189 = vmatpush1.bf16.msra.mxu0 %v170
  %190 = vmatprep.subr.bf16.mxu0 0
  %191 = vmatpush1.bf16.msra.mxu0 %v171
  %192 = vmatprep.subr.bf16.mxu0 0
  %193 = vmatpush1.bf16.msra.mxu0 %v172
  %194 = vmatprep.subr.bf16.mxu0 0
  %195 = vmatpush1.bf16.msra.mxu0 %v173
  %196 = vmatprep.subr.bf16.mxu0 0
  %197 = vmatpush1.bf16.msra.mxu0 %v174
  %198 = vmatprep.subr.bf16.mxu0 0
  %199 = vmatpush1.bf16.msra.mxu0 %v175
  %200 = vmatprep.subr.bf16.mxu0 0
  %201 = vmatpush1.bf16.msra.mxu0 0
  %202 = vmatprep.subr.bf16.mxu0 0
  %203 = vmatpush1.bf16.msra.mxu0 0
  %204 = vmatprep.subr.bf16.mxu0 0
  %205 = vmatpush1.bf16.msra.mxu0 0
  %206 = vmatprep.subr.bf16.mxu0 0
  %207 = vmatpush1.bf16.msra.mxu0 0
  %208 = vmatprep.subr.bf16.mxu0 0
  %209 = vmatpush1.bf16.msra.mxu0 0
  %210 = vmatprep.subr.bf16.mxu0 0
  %211 = vmatpush1.bf16.msra.mxu0 0
  %212 = vmatprep.subr.bf16.mxu0 0
  %213 = vmatpush1.bf16.msra.mxu0 0
  %214 = vmatprep.subr.bf16.mxu0 0
  %215 = vmatpush1.bf16.msra.mxu0 0
  %216 = vmatprep.mubr.bf16.mxu0 0
  %217 = vmatmul.mubr.bf16.gmra.mrb[0].mxu0 %v128
  %v218 = vpop.f32.mrb[0].mxu0
  %v219 = vadd.f32 0.0, %v218
  %v220 = vpop.f32.mrb[0].mxu0
  %v221 = vpop.f32.mrb[0].mxu0
  %v222 = vadd.f32 0.0, %v221
  %v223 = vpop.f32.mrb[0].mxu0
  %224 = vmatprep.mubr.bf16.mxu0 0
  %225 = vmatmul.mubr.bf16.gmra.mrb[0].mxu0 %v129
  %v226 = vpop.f32.mrb[0].mxu0
  %v227 = vadd.f32 0.0, %v226
  %v228 = vpop.f32.mrb[0].mxu0
  %v229 = vpop.f32.mrb[0].mxu0
  %v230 = vadd.f32 0.0, %v229
  %v231 = vpop.f32.mrb[0].mxu0
  %232 = vmatprep.mubr.bf16.mxu0 0
  %233 = vmatmul.mubr.bf16.gmra.mrb[0].mxu0 %v130
  %v234 = vpop.f32.mrb[0].mxu0
  %v235 = vadd.f32 0.0, %v234
  %v236 = vpop.f32.mrb[0].mxu0
  %v237 = vpop.f32.mrb[0].mxu0
  %v238 = vadd.f32 0.0, %v237
  %v239 = vpop.f32.mrb[0].mxu0
  %240 = vmatprep.mubr.bf16.mxu0 0
  %241 = vmatmul.mubr.bf16.gmra.mrb[0].mxu0 %v131
  %v242 = vpop.f32.mrb[0].mxu0
  %v243 = vadd.f32 0.0, %v242
  %v244 = vpop.f32.mrb[0].mxu0
  %v245 = vpop.f32.mrb[0].mxu0
  %v246 = vadd.f32 0.0, %v245
  %v247 = vpop.f32.mrb[0].mxu0
  %248 = vdwg.mxu0
  %v257 = vunpack.c.l.b16 %v32
  %v258 = vunpack.c.l.b16 %v33
  %v259 = vunpack.c.l.b16 %v34
  %v260 = vunpack.c.l.b16 %v35
  %v261 = vunpack.c.l.b16 %v36
  %v262 = vunpack.c.l.b16 %v37
  %v263 = vunpack.c.l.b16 %v38
  %v264 = vunpack.c.l.b16 %v39
  %v265 = vpack.c.b16 %v258, %v257
  %v266 = vpack.c.b16 %v260, %v259
  %v267 = vpack.c.b16 %v262, %v261
  %v268 = vpack.c.b16 %v264, %v263
  %v289 = vunpack.c.l.b16 %v48
  %v290 = vunpack.c.l.b16 %v49
  %v291 = vunpack.c.l.b16 %v50
  %v292 = vunpack.c.l.b16 %v51
  %v293 = vunpack.c.l.b16 %v52
  %v294 = vunpack.c.l.b16 %v53
  %v295 = vunpack.c.l.b16 %v54
  %v296 = vunpack.c.l.b16 %v55
  %v297 = vunpack.c.l.b16 %v56
  %v298 = vunpack.c.l.b16 %v57
  %v299 = vunpack.c.l.b16 %v58
  %v300 = vunpack.c.l.b16 %v59
  %v301 = vunpack.c.l.b16 %v60
  %v302 = vunpack.c.l.b16 %v61
  %v303 = vunpack.c.l.b16 %v62
  %v304 = vunpack.c.l.b16 %v63
  %v305 = vpack.c.b16 %v290, %v289
  %v306 = vpack.c.b16 %v292, %v291
  %v307 = vpack.c.b16 %v294, %v293
  %v308 = vpack.c.b16 %v296, %v295
  %v309 = vpack.c.b16 %v298, %v297
  %v310 = vpack.c.b16 %v300, %v299
  %v311 = vpack.c.b16 %v302, %v301
  %v312 = vpack.c.b16 %v304, %v303
  %321 = vmatprep.subr.bf16.mxu0 0
  %322 = vmatpush1.bf16.msra.mxu0 %v305
  %323 = vmatprep.subr.bf16.mxu0 0
  %324 = vmatpush1.bf16.msra.mxu0 %v306
  %325 = vmatprep.subr.bf16.mxu0 0
  %326 = vmatpush1.bf16.msra.mxu0 %v307
  %327 = vmatprep.subr.bf16.mxu0 0
  %328 = vmatpush1.bf16.msra.mxu0 %v308
  %329 = vmatprep.subr.bf16.mxu0 0
  %330 = vmatpush1.bf16.msra.mxu0 %v309
  %331 = vmatprep.subr.bf16.mxu0 0
  %332 = vmatpush1.bf16.msra.mxu0 %v310
  %333 = vmatprep.subr.bf16.mxu0 0
  %334 = vmatpush1.bf16.msra.mxu0 %v311
  %335 = vmatprep.subr.bf16.mxu0 0
  %336 = vmatpush1.bf16.msra.mxu0 %v312
  %337 = vmatprep.subr.bf16.mxu0 0
  %338 = vmatpush1.bf16.msra.mxu0 0
  %339 = vmatprep.subr.bf16.mxu0 0
  %340 = vmatpush1.bf16.msra.mxu0 0
  %341 = vmatprep.subr.bf16.mxu0 0
  %342 = vmatpush1.bf16.msra.mxu0 0
  %343 = vmatprep.subr.bf16.mxu0 0
  %344 = vmatpush1.bf16.msra.mxu0 0
  %345 = vmatprep.subr.bf16.mxu0 0
  %346 = vmatpush1.bf16.msra.mxu0 0
  %347 = vmatprep.subr.bf16.mxu0 0
  %348 = vmatpush1.bf16.msra.mxu0 0
  %349 = vmatprep.subr.bf16.mxu0 0
  %350 = vmatpush1.bf16.msra.mxu0 0
  %351 = vmatprep.subr.bf16.mxu0 0
  %352 = vmatpush1.bf16.msra.mxu0 0
  %353 = vmatprep.mubr.bf16.mxu0 0
  %354 = vmatmul.mubr.bf16.gmra.mrb[0].mxu0 %v265
  %v355 = vpop.f32.mrb[0].mxu0
  %v356 = vadd.f32 %v219, %v355
  %v357 = vpop.f32.mrb[0].mxu0
  %v358 = vpop.f32.mrb[0].mxu0
  %v359 = vadd.f32 %v222, %v358
  %v360 = vpop.f32.mrb[0].mxu0
  %361 = vmatprep.mubr.bf16.mxu0 0
  %362 = vmatmul.mubr.bf16.gmra.mrb[0].mxu0 %v266
  %v363 = vpop.f32.mrb[0].mxu0
  %v364 = vadd.f32 %v227, %v363
  %v365 = vpop.f32.mrb[0].mxu0
  %v366 = vpop.f32.mrb[0].mxu0
  %v367 = vadd.f32 %v230, %v366
  %v368 = vpop.f32.mrb[0].mxu0
  %369 = vmatprep.mubr.bf16.mxu0 0
  %370 = vmatmul.mubr.bf16.gmra.mrb[0].mxu0 %v267
  %v371 = vpop.f32.mrb[0].mxu0
  %v372 = vadd.f32 %v235, %v371
  %v373 = vpop.f32.mrb[0].mxu0
  %v374 = vpop.f32.mrb[0].mxu0
  %v375 = vadd.f32 %v238, %v374
  %v376 = vpop.f32.mrb[0].mxu0
  %377 = vmatprep.mubr.bf16.mxu0 0
  %378 = vmatmul.mubr.bf16.gmra.mrb[0].mxu0 %v268
  %v379 = vpop.f32.mrb[0].mxu0
  %v380 = vadd.f32 %v243, %v379
  %v381 = vpop.f32.mrb[0].mxu0
  %v382 = vpop.f32.mrb[0].mxu0
  %v383 = vadd.f32 %v246, %v382
  %v384 = vpop.f32.mrb[0].mxu0
  %385 = vdwg.mxu0
  %v386 = vld [vmem:[%s3] sm:$0x1]
  %v388 = vlaneseq
  %v389 = vshrl.u32 %v388, 7
  %v390 = vsub.s32 0, %v389
  %v391 = vrot.slane %v386, %v390
  %v393 = vadd.f32 %v356, %v391
  %v394 = vadd.f32 %v359, %v391
  %v395 = vadd.f32 %v364, %v391
  %v396 = vadd.f32 %v367, %v391
  %v397 = vadd.f32 %v372, %v391
  %v398 = vadd.f32 %v375, %v391
  %v399 = vadd.f32 %v380, %v391
  %v400 = vadd.f32 %v383, %v391
  %v401 = vxor.u32 %v393, 2147483648
  %v402 = vxor.u32 %v394, 2147483648
  %v403 = vxor.u32 %v395, 2147483648
  %v404 = vxor.u32 %v396, 2147483648
  %v405 = vxor.u32 %v397, 2147483648
  %v406 = vxor.u32 %v398, 2147483648
  %v407 = vxor.u32 %v399, 2147483648
  %v408 = vxor.u32 %v400, 2147483648
  %v409 = vmul.f32 %v401, 1.442695
  %v410 = vpow.pop %v409
  %v411 = vmul.f32 %v402, 1.442695
  %v412 = vpow.pop %v411
  %v413 = vmul.f32 %v403, 1.442695
  %v414 = vpow.pop %v413
  %v415 = vmul.f32 %v404, 1.442695
  %v416 = vpow.pop %v415
  %v417 = vmul.f32 %v405, 1.442695
  %v418 = vpow.pop %v417
  %v419 = vmul.f32 %v406, 1.442695
  %v420 = vpow.pop %v419
  %v421 = vmul.f32 %v407, 1.442695
  %v422 = vpow.pop %v421
  %v423 = vmul.f32 %v408, 1.442695
  %v424 = vpow.pop %v423
  %v425 = vadd.f32 %v410, 1.0
  %v426 = vadd.f32 %v412, 1.0
  %v427 = vadd.f32 %v414, 1.0
  %v428 = vadd.f32 %v416, 1.0
  %v429 = vadd.f32 %v418, 1.0
  %v430 = vadd.f32 %v420, 1.0
  %v431 = vadd.f32 %v422, 1.0
  %v432 = vadd.f32 %v424, 1.0
  %v433 = vrcp.pop %v425
  %v434 = vmul.f32 1.0, %v433
  %v435 = vrcp.pop %v426
  %v436 = vmul.f32 1.0, %v435
  %v437 = vrcp.pop %v427
  %v438 = vmul.f32 1.0, %v437
  %v439 = vrcp.pop %v428
  %v440 = vmul.f32 1.0, %v439
  %v441 = vrcp.pop %v429
  %v442 = vmul.f32 1.0, %v441
  %v443 = vrcp.pop %v430
  %v444 = vmul.f32 1.0, %v443
  %v445 = vrcp.pop %v431
  %v446 = vmul.f32 1.0, %v445
  %v447 = vrcp.pop %v432
  %v448 = vmul.f32 1.0, %v447
  %v465 = vunpack.c.l.b16 %v96
  %v466 = vunpack.c.l.b16 %v97
  %v467 = vunpack.c.l.b16 %v98
  %v468 = vunpack.c.l.b16 %v99
  %v469 = vunpack.c.l.b16 %v100
  %v470 = vunpack.c.l.b16 %v101
  %v471 = vunpack.c.l.b16 %v102
  %v472 = vunpack.c.l.b16 %v103
  %v473 = vunpack.c.l.b16 %v104
  %v474 = vunpack.c.l.b16 %v105
  %v475 = vunpack.c.l.b16 %v106
  %v476 = vunpack.c.l.b16 %v107
  %v477 = vunpack.c.l.b16 %v108
  %v478 = vunpack.c.l.b16 %v109
  %v479 = vunpack.c.l.b16 %v110
  %v480 = vunpack.c.l.b16 %v111
  %v481 = vpack.c.b16 %v466, %v465
  %v482 = vpack.c.b16 %v468, %v467
  %v483 = vpack.c.b16 %v470, %v469
  %v484 = vpack.c.b16 %v472, %v471
  %v485 = vpack.c.b16 %v474, %v473
  %v486 = vpack.c.b16 %v476, %v475
  %v487 = vpack.c.b16 %v478, %v477
  %v488 = vpack.c.b16 %v480, %v479
  %497 = vmatprep.subr.bf16.mxu0 0
  %498 = vmatpush1.bf16.msra.mxu0 %v481
  %499 = vmatprep.subr.bf16.mxu0 0
  %500 = vmatpush1.bf16.msra.mxu0 %v482
  %501 = vmatprep.subr.bf16.mxu0 0
  %502 = vmatpush1.bf16.msra.mxu0 %v483
  %503 = vmatprep.subr.bf16.mxu0 0
  %504 = vmatpush1.bf16.msra.mxu0 %v484
  %505 = vmatprep.subr.bf16.mxu0 0
  %506 = vmatpush1.bf16.msra.mxu0 %v485
  %507 = vmatprep.subr.bf16.mxu0 0
  %508 = vmatpush1.bf16.msra.mxu0 %v486
  %509 = vmatprep.subr.bf16.mxu0 0
  %510 = vmatpush1.bf16.msra.mxu0 %v487
  %511 = vmatprep.subr.bf16.mxu0 0
  %512 = vmatpush1.bf16.msra.mxu0 %v488
  %513 = vmatprep.subr.bf16.mxu0 0
  %514 = vmatpush1.bf16.msra.mxu0 0
  %515 = vmatprep.subr.bf16.mxu0 0
  %516 = vmatpush1.bf16.msra.mxu0 0
  %517 = vmatprep.subr.bf16.mxu0 0
  %518 = vmatpush1.bf16.msra.mxu0 0
  %519 = vmatprep.subr.bf16.mxu0 0
  %520 = vmatpush1.bf16.msra.mxu0 0
  %521 = vmatprep.subr.bf16.mxu0 0
  %522 = vmatpush1.bf16.msra.mxu0 0
  %523 = vmatprep.subr.bf16.mxu0 0
  %524 = vmatpush1.bf16.msra.mxu0 0
  %525 = vmatprep.subr.bf16.mxu0 0
  %526 = vmatpush1.bf16.msra.mxu0 0
  %527 = vmatprep.subr.bf16.mxu0 0
  %528 = vmatpush1.bf16.msra.mxu0 0
  %529 = vmatprep.mubr.bf16.mxu0 0
  %530 = vmatmul.mubr.bf16.gmra.mrb[0].mxu0 %v128
  %v531 = vpop.f32.mrb[0].mxu0
  %v532 = vadd.f32 0.0, %v531
  %v533 = vpop.f32.mrb[0].mxu0
  %v534 = vpop.f32.mrb[0].mxu0
  %v535 = vadd.f32 0.0, %v534
  %v536 = vpop.f32.mrb[0].mxu0
  %537 = vmatprep.mubr.bf16.mxu0 0
  %538 = vmatmul.mubr.bf16.gmra.mrb[0].mxu0 %v129
  %v539 = vpop.f32.mrb[0].mxu0
  %v540 = vadd.f32 0.0, %v539
  %v541 = vpop.f32.mrb[0].mxu0
  %v542 = vpop.f32.mrb[0].mxu0
  %v543 = vadd.f32 0.0, %v542
  %v544 = vpop.f32.mrb[0].mxu0
  %545 = vmatprep.mubr.bf16.mxu0 0
  %546 = vmatmul.mubr.bf16.gmra.mrb[0].mxu0 %v130
  %v547 = vpop.f32.mrb[0].mxu0
  %v548 = vadd.f32 0.0, %v547
  %v549 = vpop.f32.mrb[0].mxu0
  %v550 = vpop.f32.mrb[0].mxu0
  %v551 = vadd.f32 0.0, %v550
  %v552 = vpop.f32.mrb[0].mxu0
  %553 = vmatprep.mubr.bf16.mxu0 0
  %554 = vmatmul.mubr.bf16.gmra.mrb[0].mxu0 %v131
  %v555 = vpop.f32.mrb[0].mxu0
  %v556 = vadd.f32 0.0, %v555
  %v557 = vpop.f32.mrb[0].mxu0
  %v558 = vpop.f32.mrb[0].mxu0
  %v559 = vadd.f32 0.0, %v558
  %v560 = vpop.f32.mrb[0].mxu0
  %561 = vdwg.mxu0
  %v578 = vunpack.c.l.b16 %v80
  %v579 = vunpack.c.l.b16 %v81
  %v580 = vunpack.c.l.b16 %v82
  %v581 = vunpack.c.l.b16 %v83
  %v582 = vunpack.c.l.b16 %v84
  %v583 = vunpack.c.l.b16 %v85
  %v584 = vunpack.c.l.b16 %v86
  %v585 = vunpack.c.l.b16 %v87
  %v586 = vunpack.c.l.b16 %v88
  %v587 = vunpack.c.l.b16 %v89
  %v588 = vunpack.c.l.b16 %v90
  %v589 = vunpack.c.l.b16 %v91
  %v590 = vunpack.c.l.b16 %v92
  %v591 = vunpack.c.l.b16 %v93
  %v592 = vunpack.c.l.b16 %v94
  %v593 = vunpack.c.l.b16 %v95
  %v594 = vpack.c.b16 %v579, %v578
  %v595 = vpack.c.b16 %v581, %v580
  %v596 = vpack.c.b16 %v583, %v582
  %v597 = vpack.c.b16 %v585, %v584
  %v598 = vpack.c.b16 %v587, %v586
  %v599 = vpack.c.b16 %v589, %v588
  %v600 = vpack.c.b16 %v591, %v590
  %v601 = vpack.c.b16 %v593, %v592
  %610 = vmatprep.subr.bf16.mxu0 0
  %611 = vmatpush1.bf16.msra.mxu0 %v594
  %612 = vmatprep.subr.bf16.mxu0 0
  %613 = vmatpush1.bf16.msra.mxu0 %v595
  %614 = vmatprep.subr.bf16.mxu0 0
  %615 = vmatpush1.bf16.msra.mxu0 %v596
  %616 = vmatprep.subr.bf16.mxu0 0
  %617 = vmatpush1.bf16.msra.mxu0 %v597
  %618 = vmatprep.subr.bf16.mxu0 0
  %619 = vmatpush1.bf16.msra.mxu0 %v598
  %620 = vmatprep.subr.bf16.mxu0 0
  %621 = vmatpush1.bf16.msra.mxu0 %v599
  %622 = vmatprep.subr.bf16.mxu0 0
  %623 = vmatpush1.bf16.msra.mxu0 %v600
  %624 = vmatprep.subr.bf16.mxu0 0
  %625 = vmatpush1.bf16.msra.mxu0 %v601
  %626 = vmatprep.subr.bf16.mxu0 0
  %627 = vmatpush1.bf16.msra.mxu0 0
  %628 = vmatprep.subr.bf16.mxu0 0
  %629 = vmatpush1.bf16.msra.mxu0 0
  %630 = vmatprep.subr.bf16.mxu0 0
  %631 = vmatpush1.bf16.msra.mxu0 0
  %632 = vmatprep.subr.bf16.mxu0 0
  %633 = vmatpush1.bf16.msra.mxu0 0
  %634 = vmatprep.subr.bf16.mxu0 0
  %635 = vmatpush1.bf16.msra.mxu0 0
  %636 = vmatprep.subr.bf16.mxu0 0
  %637 = vmatpush1.bf16.msra.mxu0 0
  %638 = vmatprep.subr.bf16.mxu0 0
  %639 = vmatpush1.bf16.msra.mxu0 0
  %640 = vmatprep.subr.bf16.mxu0 0
  %641 = vmatpush1.bf16.msra.mxu0 0
  %642 = vmatprep.mubr.bf16.mxu0 0
  %643 = vmatmul.mubr.bf16.gmra.mrb[0].mxu0 %v265
  %v644 = vpop.f32.mrb[0].mxu0
  %v645 = vadd.f32 %v532, %v644
  %v646 = vpop.f32.mrb[0].mxu0
  %v647 = vpop.f32.mrb[0].mxu0
  %v648 = vadd.f32 %v535, %v647
  %v649 = vpop.f32.mrb[0].mxu0
  %650 = vmatprep.mubr.bf16.mxu0 0
  %651 = vmatmul.mubr.bf16.gmra.mrb[0].mxu0 %v266
  %v652 = vpop.f32.mrb[0].mxu0
  %v653 = vadd.f32 %v540, %v652
  %v654 = vpop.f32.mrb[0].mxu0
  %v655 = vpop.f32.mrb[0].mxu0
  %v656 = vadd.f32 %v543, %v655
  %v657 = vpop.f32.mrb[0].mxu0
  %658 = vmatprep.mubr.bf16.mxu0 0
  %659 = vmatmul.mubr.bf16.gmra.mrb[0].mxu0 %v267
  %v660 = vpop.f32.mrb[0].mxu0
  %v661 = vadd.f32 %v548, %v660
  %v662 = vpop.f32.mrb[0].mxu0
  %v663 = vpop.f32.mrb[0].mxu0
  %v664 = vadd.f32 %v551, %v663
  %v665 = vpop.f32.mrb[0].mxu0
  %666 = vmatprep.mubr.bf16.mxu0 0
  %667 = vmatmul.mubr.bf16.gmra.mrb[0].mxu0 %v268
  %v668 = vpop.f32.mrb[0].mxu0
  %v669 = vadd.f32 %v556, %v668
  %v670 = vpop.f32.mrb[0].mxu0
  %v671 = vpop.f32.mrb[0].mxu0
  %v672 = vadd.f32 %v559, %v671
  %v673 = vpop.f32.mrb[0].mxu0
  %674 = vdwg.mxu0
  %v675 = vld [vmem:[%s5] sm:$0x1]
  %v677 = vlaneseq
  %v678 = vshrl.u32 %v677, 7
  %v679 = vsub.s32 0, %v678
  %v680 = vrot.slane %v675, %v679
  %v682 = vadd.f32 %v645, %v680
  %v683 = vadd.f32 %v648, %v680
  %v684 = vadd.f32 %v653, %v680
  %v685 = vadd.f32 %v656, %v680
  %v686 = vadd.f32 %v661, %v680
  %v687 = vadd.f32 %v664, %v680
  %v688 = vadd.f32 %v669, %v680
  %v689 = vadd.f32 %v672, %v680
  %690 = vmax.xlane.f32.xlu0 %v682
  %v691 = vpop.xlane.xlu0 %690
  %692 = vmax.xlane.f32.xlu0 %v683
  %v693 = vpop.xlane.xlu0 %692
  %694 = vmax.xlane.f32.xlu0 %v684
  %v695 = vpop.xlane.xlu0 %694
  %696 = vmax.xlane.f32.xlu0 %v685
  %v697 = vpop.xlane.xlu0 %696
  %698 = vmax.xlane.f32.xlu0 %v686
  %v699 = vpop.xlane.xlu0 %698
  %700 = vmax.xlane.f32.xlu0 %v687
  %v701 = vpop.xlane.xlu0 %700
  %702 = vmax.xlane.f32.xlu0 %v688
  %v703 = vpop.xlane.xlu0 %702
  %704 = vmax.xlane.f32.xlu0 %v689
  %v705 = vpop.xlane.xlu0 %704
  %v706 = vsub.f32 %v682, %v691
  %v707 = vsub.f32 %v683, %v693
  %v708 = vsub.f32 %v684, %v695
  %v709 = vsub.f32 %v685, %v697
  %v710 = vsub.f32 %v686, %v699
  %v711 = vsub.f32 %v687, %v701
  %v712 = vsub.f32 %v688, %v703
  %v713 = vsub.f32 %v689, %v705
  %v714 = vmul.f32 %v706, 1.442695
  %v715 = vpow.pop %v714
  %v716 = vmul.f32 %v707, 1.442695
  %v717 = vpow.pop %v716
  %v718 = vmul.f32 %v708, 1.442695
  %v719 = vpow.pop %v718
  %v720 = vmul.f32 %v709, 1.442695
  %v721 = vpow.pop %v720
  %v722 = vmul.f32 %v710, 1.442695
  %v723 = vpow.pop %v722
  %v724 = vmul.f32 %v711, 1.442695
  %v725 = vpow.pop %v724
  %v726 = vmul.f32 %v712, 1.442695
  %v727 = vpow.pop %v726
  %v728 = vmul.f32 %v713, 1.442695
  %v729 = vpow.pop %v728
  %730 = vadd.xlane.f32.xlu0 %v715
  %v731 = vpop.xlane.xlu0 %730
  %732 = vadd.xlane.f32.xlu0 %v717
  %v733 = vpop.xlane.xlu0 %732
  %734 = vadd.xlane.f32.xlu0 %v719
  %v735 = vpop.xlane.xlu0 %734
  %736 = vadd.xlane.f32.xlu0 %v721
  %v737 = vpop.xlane.xlu0 %736
  %738 = vadd.xlane.f32.xlu0 %v723
  %v739 = vpop.xlane.xlu0 %738
  %740 = vadd.xlane.f32.xlu0 %v725
  %v741 = vpop.xlane.xlu0 %740
  %742 = vadd.xlane.f32.xlu0 %v727
  %v743 = vpop.xlane.xlu0 %742
  %744 = vadd.xlane.f32.xlu0 %v729
  %v745 = vpop.xlane.xlu0 %744
  %v746 = vrcp.pop %v731
  %v747 = vmul.f32 %v715, %v746
  %v748 = vrcp.pop %v733
  %v749 = vmul.f32 %v717, %v748
  %v750 = vrcp.pop %v735
  %v751 = vmul.f32 %v719, %v750
  %v752 = vrcp.pop %v737
  %v753 = vmul.f32 %v721, %v752
  %v754 = vrcp.pop %v739
  %v755 = vmul.f32 %v723, %v754
  %v756 = vrcp.pop %v741
  %v757 = vmul.f32 %v725, %v756
  %v758 = vrcp.pop %v743
  %v759 = vmul.f32 %v727, %v758
  %v760 = vrcp.pop %v745
  %v761 = vmul.f32 %v729, %v760
  %v762 = vmax.f32 %v747, 1e-07
  %v763 = vmax.f32 %v749, 1e-07
  %v764 = vmax.f32 %v751, 1e-07
  %v765 = vmax.f32 %v753, 1e-07
  %v766 = vmax.f32 %v755, 1e-07
  %v767 = vmax.f32 %v757, 1e-07
  %v768 = vmax.f32 %v759, 1e-07
  %v769 = vmax.f32 %v761, 1e-07
  %v770 = vmin.f32 %v762, 1.0
  %v771 = vmin.f32 %v763, 1.0
  %v772 = vmin.f32 %v764, 1.0
  %v773 = vmin.f32 %v765, 1.0
  %v774 = vmin.f32 %v766, 1.0
  %v775 = vmin.f32 %v767, 1.0
  %v776 = vmin.f32 %v768, 1.0
  %v777 = vmin.f32 %v769, 1.0
  %v778 = vld [vmem:[#allocation2] sm:$0xff]
  %v779 = vmul.f32 %v434, %v770
  %v780 = vmul.f32 %v436, %v771
  %v781 = vmul.f32 %v438, %v772
  %v782 = vmul.f32 %v440, %v773
  %v783 = vmul.f32 %v442, %v774
  %v784 = vmul.f32 %v444, %v775
  %v785 = vmul.f32 %v446, %v776
  %v786 = vmul.f32 %v448, %v777
  %v787 = vadd.f32 %v779, %v780
  %v788 = vadd.f32 %v787, %v781
  %v789 = vadd.f32 %v788, %v782
  %v790 = vadd.f32 %v789, %v783
  %v791 = vadd.f32 %v790, %v784
  %v792 = vadd.f32 %v791, %v785
  %v793 = vadd.f32 %v792, %v786
  %v794 = vadd.f32 %v778, %v793
  %795 = vst [vmem:[#allocation2] sm:$0xff] %v794
  %v796 = vld [vmem:[#allocation3] sm:$0xff]
  %v797 = vadd.f32 %v770, %v771
  %v798 = vadd.f32 %v797, %v772
  %v799 = vadd.f32 %v798, %v773
  %v800 = vadd.f32 %v799, %v774
  %v801 = vadd.f32 %v800, %v775
  %v802 = vadd.f32 %v801, %v776
  %v803 = vadd.f32 %v802, %v777
  %v804 = vadd.f32 %v796, %v803
  %805 = vst [vmem:[#allocation3] sm:$0xff] %v804
  %806 = vst [vmem:[%s6] sm:$0xff] %v434
  %807 = vst [vmem:[%s6 + $0x8] sm:$0xff] %v436
  %808 = vst [vmem:[%s6 + $0x10] sm:$0xff] %v438
  %809 = vst [vmem:[%s6 + $0x18] sm:$0xff] %v440
  %810 = vst [vmem:[%s6 + $0x20] sm:$0xff] %v442
  %811 = vst [vmem:[%s6 + $0x28] sm:$0xff] %v444
  %812 = vst [vmem:[%s6 + $0x30] sm:$0xff] %v446
  %813 = vst [vmem:[%s6 + $0x38] sm:$0xff] %v448
  // Predicated region
  $region30: #{wrnn_forward.5} parent=0 // pred_check
    %p814 = pneg %p26
  $region31: #{wrnn_forward.5} parent=0 // pred_check_branch
    %816 = sbr.rel (%p814) target = $region33
  $region32: #{wrnn_forward.5} parent=0 // pred_region
    %v817 = vld [vmem:[#allocation2] sm:$0xff]
    %v818 = vld [vmem:[#allocation3] sm:$0xff]
    %v819 = vrcp.pop %v818
    %v820 = vmul.f32 %v817, %v819
    %821 = vst [vmem:[%s7] sm:$0xff] %v820
  $region33: #{wrnn_forward.5} parent=0 // pred_fallthru
    _
  // Predicated region
  $region34: #{wrnn_forward.5} parent=0 // pred_check
    _
  $region35: #{wrnn_forward.5} parent=0 // pred_check_branch
    %823 = sbr.rel (0) target = $region37
  $region36: #{wrnn_forward.5} parent=0 // pred_region
    _
  $region37: #{wrnn_forward.5} parent=0 // pred_fallthru
    _
  // Predicated region
  $region38: #{wrnn_forward.5} parent=0 // pred_check
    _
  $region39: #{wrnn_forward.5} parent=0 // pred_check_branch
    %825 = sbr.rel (0) target = $region41
  $region40: #{wrnn_forward.5} parent=0 // pred_region
    _
  $region41: #{wrnn_forward.5} parent=0 // pred_fallthru
    _
  // Predicated region
  $region42: #{wrnn_forward.5} parent=0 // pred_check
    _
  $region43: #{wrnn_forward.5} parent=0 // pred_check_branch
    %827 = sbr.rel (0) target = $region45
  $region44: #{wrnn_forward.5} parent=0 // pred_region
    _
  $region45: #{wrnn_forward.5} parent=0 // pred_fallthru
    _
  // Predicated region
  $region46: #{wrnn_forward.5} parent=0 // pred_check
    _
  $region47: #{wrnn_forward.5} parent=0 // pred_check_branch
    %829 = sbr.rel (0) target = $region49
  $region48: #{wrnn_forward.5} parent=0 // pred_region
    _
  $region49: #{wrnn_forward.5} parent=0 // pred_fallthru
    _

// kernel: wrnn_forward.3
$region0: #{wrnn_forward.3}
  #allocation0 [shape = 'u32[]', space=smem, size = 0x4, offset = 0x4, fixed_abs, tag = 'smem constant byte address 0x4 - core index']
  #allocation1 [shape = 'u32[144,128]{1,0:T(1,128)}', space=vmem, size = 0x12000, scoped, tag = 'internal scratch']
  #allocation2 [shape = 'f32[8,8,384]{2,1,0:T(8,128)}', space=vmem, size = 0x18000, scoped, tag = 'scratch operand']
  #allocation3 [shape = 'f32[8,8,384]{2,1,0:T(8,128)}', space=vmem, size = 0x18000, scoped, tag = 'scratch operand']
  %s0 = inlined_call_operand.vmem [shape: f32[64,128], index: 0, kind: input, shape index: {}]
  %s1 = inlined_call_operand.vmem [shape: bf16[128,128], index: 1, kind: input, shape index: {}]
  %s2 = inlined_call_operand.vmem [shape: f32[1,128], index: 2, kind: input, shape index: {}]
  %s3 = inlined_call_operand.vmem [shape: bf16[128,384], index: 3, kind: input, shape index: {}]
  %s4 = inlined_call_operand.vmem [shape: f32[1,384], index: 4, kind: input, shape index: {}]
  %s5 = inlined_call_operand.vmem [shape: bf16[128,384], index: 5, kind: input, shape index: {}]
  %s6 = inlined_call_operand.vmem [shape: f32[1,384], index: 6, kind: input, shape index: {}]
  %s7 = inlined_call_operand.vmem [shape: bf16[128,384], index: 7, kind: input, shape index: {}]
  %s8 = inlined_call_operand.vmem [shape: bf16[128,384], index: 8, kind: input, shape index: {}]
  %s9 = inlined_call_operand.vmem [shape: f32[1,384], index: 9, kind: input, shape index: {}]
  %s10 = inlined_call_operand.vmem [shape: f32[1,384], index: 10, kind: input, shape index: {}]
  %s11 = inlined_call_operand.vmem [shape: bf16[8,8,128], index: 11, kind: output, shape index: {0}]
  %s12 = inlined_call_operand.vmem [shape: bf16[8,8,128], index: 12, kind: output, shape index: {1}]
  %13 = xla_tuple %s11, %s12
  %s14 = sld [smem:[#allocation0]]
  $region69: #{wrnn_forward.3} parent=0
    _
  %s16 = ssub.s32 1, %s14
  %s17 = scalar_select 0, %s16, %s14
  // Predicated region
  $region2: #{wrnn_forward.3} parent=0 // pred_check
    _
  $region3: #{wrnn_forward.3} parent=0 // pred_check_branch
    %19 = sbr.rel (0) target = $region5
  $region4: #{wrnn_forward.3} parent=0 // pred_region
    _
  $region5: #{wrnn_forward.3} parent=0 // pred_fallthru
    _
  // Predicated region
  $region6: #{wrnn_forward.3} parent=0 // pred_check
    _
  $region7: #{wrnn_forward.3} parent=0 // pred_check_branch
    %21 = sbr.rel (0) target = $region9
  $region8: #{wrnn_forward.3} parent=0 // pred_region
    _
  $region9: #{wrnn_forward.3} parent=0 // pred_fallthru
    _
  // Predicated region
  $region10: #{wrnn_forward.3} parent=0 // pred_check
    _
  $region11: #{wrnn_forward.3} parent=0 // pred_check_branch
    %23 = sbr.rel (0) target = $region13
  $region12: #{wrnn_forward.3} parent=0 // pred_region
    _
  $region13: #{wrnn_forward.3} parent=0 // pred_fallthru
    _
  // Predicated region
  $region14: #{wrnn_forward.3} parent=0 // pred_check
    _
  $region15: #{wrnn_forward.3} parent=0 // pred_check_branch
    %25 = sbr.rel (0) target = $region17
  $region16: #{wrnn_forward.3} parent=0 // pred_region
    _
  $region17: #{wrnn_forward.3} parent=0 // pred_fallthru
    _
  // Predicated region
  $region18: #{wrnn_forward.3} parent=0 // pred_check
    _
  $region19: #{wrnn_forward.3} parent=0 // pred_check_branch
    %27 = sbr.rel (0) target = $region21
  $region20: #{wrnn_forward.3} parent=0 // pred_region
    _
  $region21: #{wrnn_forward.3} parent=0 // pred_fallthru
    _
  // Predicated region
  $region22: #{wrnn_forward.3} parent=0 // pred_check
    _
  $region23: #{wrnn_forward.3} parent=0 // pred_check_branch
    %29 = sbr.rel (0) target = $region25
  $region24: #{wrnn_forward.3} parent=0 // pred_region
    _
  $region25: #{wrnn_forward.3} parent=0 // pred_fallthru
    _
  // Predicated region
  $region26: #{wrnn_forward.3} parent=0 // pred_check
    _
  $region27: #{wrnn_forward.3} parent=0 // pred_check_branch
    %31 = sbr.rel (0) target = $region29
  $region28: #{wrnn_forward.3} parent=0 // pred_region
    _
  $region29: #{wrnn_forward.3} parent=0 // pred_fallthru
    _
  // Predicated region
  $region30: #{wrnn_forward.3} parent=0 // pred_check
    _
  $region31: #{wrnn_forward.3} parent=0 // pred_check_branch
    %33 = sbr.rel (0) target = $region33
  $region32: #{wrnn_forward.3} parent=0 // pred_region
    _
  $region33: #{wrnn_forward.3} parent=0 // pred_fallthru
    _
  // Predicated region
  $region34: #{wrnn_forward.3} parent=0 // pred_check
    _
  $region35: #{wrnn_forward.3} parent=0 // pred_check_branch
    %35 = sbr.rel (0) target = $region37
  $region36: #{wrnn_forward.3} parent=0 // pred_region
    _
  $region37: #{wrnn_forward.3} parent=0 // pred_fallthru
    _
  // Predicated region
  $region38: #{wrnn_forward.3} parent=0 // pred_check
    _
  $region39: #{wrnn_forward.3} parent=0 // pred_check_branch
    %37 = sbr.rel (0) target = $region41
  $region40: #{wrnn_forward.3} parent=0 // pred_region
    _
  $region41: #{wrnn_forward.3} parent=0 // pred_fallthru
    _
  // Predicated region
  $region42: #{wrnn_forward.3} parent=0 // pred_check
    _
  $region43: #{wrnn_forward.3} parent=0 // pred_check_branch
    %39 = sbr.rel (0) target = $region45
  $region44: #{wrnn_forward.3} parent=0 // pred_region
    _
  $region45: #{wrnn_forward.3} parent=0 // pred_fallthru
    _
  %v41 = vld [vmem:[%s0] sm:$0xff]
  %v42 = vld [vmem:[%s0 + $0x8] sm:$0xff]
  %v43 = vld [vmem:[%s0 + $0x10] sm:$0xff]
  %v44 = vld [vmem:[%s0 + $0x18] sm:$0xff]
  %v45 = vld [vmem:[%s0 + $0x20] sm:$0xff]
  %v46 = vld [vmem:[%s0 + $0x28] sm:$0xff]
  %v47 = vld [vmem:[%s0 + $0x30] sm:$0xff]
  %v48 = vld [vmem:[%s0 + $0x38] sm:$0xff]
  %v49 = vpack.c.bf16 %v42, %v41
  %v50 = vpack.c.bf16 %v44, %v43
  %v51 = vpack.c.bf16 %v46, %v45
  %v52 = vpack.c.bf16 %v48, %v47
  %v53 = vld [vmem:[%s1] sm:$0xf]
  %v54 = vld [vmem:[%s1 + $0x4] sm:$0xf]
  %v55 = vld [vmem:[%s1 + $0x8] sm:$0xf]
  %v56 = vld [vmem:[%s1 + $0xc] sm:$0xf]
  %v57 = vld [vmem:[%s1 + $0x10] sm:$0xf]
  %v58 = vld [vmem:[%s1 + $0x14] sm:$0xf]
  %v59 = vld [vmem:[%s1 + $0x18] sm:$0xf]
  %v60 = vld [vmem:[%s1 + $0x1c] sm:$0xf]
  %v61 = vld [vmem:[%s1 + $0x20] sm:$0xf]
  %v62 = vld [vmem:[%s1 + $0x24] sm:$0xf]
  %v63 = vld [vmem:[%s1 + $0x28] sm:$0xf]
  %v64 = vld [vmem:[%s1 + $0x2c] sm:$0xf]
  %v65 = vld [vmem:[%s1 + $0x30] sm:$0xf]
  %v66 = vld [vmem:[%s1 + $0x34] sm:$0xf]
  %v67 = vld [vmem:[%s1 + $0x38] sm:$0xf]
  %v68 = vld [vmem:[%s1 + $0x3c] sm:$0xf]
  %v69 = vld [vmem:[%s2] sm:$0x1]
  %v71 = vlaneseq
  %v72 = vshrl.u32 %v71, 7
  %v73 = vsub.s32 0, %v72
  %v74 = vrot.slane %v69, %v73
  %v92 = vunpack.c.l.b16 %v53
  %v93 = vunpack.c.l.b16 %v54
  %v94 = vunpack.c.l.b16 %v55
  %v95 = vunpack.c.l.b16 %v56
  %v96 = vunpack.c.l.b16 %v57
  %v97 = vunpack.c.l.b16 %v58
  %v98 = vunpack.c.l.b16 %v59
  %v99 = vunpack.c.l.b16 %v60
  %v100 = vunpack.c.l.b16 %v61
  %v101 = vunpack.c.l.b16 %v62
  %v102 = vunpack.c.l.b16 %v63
  %v103 = vunpack.c.l.b16 %v64
  %v104 = vunpack.c.l.b16 %v65
  %v105 = vunpack.c.l.b16 %v66
  %v106 = vunpack.c.l.b16 %v67
  %v107 = vunpack.c.l.b16 %v68
  %v108 = vpack.c.b16 %v93, %v92
  %v109 = vpack.c.b16 %v95, %v94
  %v110 = vpack.c.b16 %v97, %v96
  %v111 = vpack.c.b16 %v99, %v98
  %v112 = vpack.c.b16 %v101, %v100
  %v113 = vpack.c.b16 %v103, %v102
  %v114 = vpack.c.b16 %v105, %v104
  %v115 = vpack.c.b16 %v107, %v106
  %124 = vmatprep.subr.bf16.mxu0 0
  %125 = vmatpush1.bf16.msra.mxu0 %v108
  %126 = vmatprep.subr.bf16.mxu0 0
  %127 = vmatpush1.bf16.msra.mxu0 %v109
  %128 = vmatprep.subr.bf16.mxu0 0
  %129 = vmatpush1.bf16.msra.mxu0 %v110
  %130 = vmatprep.subr.bf16.mxu0 0
  %131 = vmatpush1.bf16.msra.mxu0 %v111
  %132 = vmatprep.subr.bf16.mxu0 0
  %133 = vmatpush1.bf16.msra.mxu0 %v112
  %134 = vmatprep.subr.bf16.mxu0 0
  %135 = vmatpush1.bf16.msra.mxu0 %v113
  %136 = vmatprep.subr.bf16.mxu0 0
  %137 = vmatpush1.bf16.msra.mxu0 %v114
  %138 = vmatprep.subr.bf16.mxu0 0
  %139 = vmatpush1.bf16.msra.mxu0 %v115
  %140 = vmatprep.subr.bf16.mxu0 0
  %141 = vmatpush1.bf16.msra.mxu0 0
  %142 = vmatprep.subr.bf16.mxu0 0
  %143 = vmatpush1.bf16.msra.mxu0 0
  %144 = vmatprep.subr.bf16.mxu0 0
  %145 = vmatpush1.bf16.msra.mxu0 0
  %146 = vmatprep.subr.bf16.mxu0 0
  %147 = vmatpush1.bf16.msra.mxu0 0
  %148 = vmatprep.subr.bf16.mxu0 0
  %149 = vmatpush1.bf16.msra.mxu0 0
  %150 = vmatprep.subr.bf16.mxu0 0
  %151 = vmatpush1.bf16.msra.mxu0 0
  %152 = vmatprep.subr.bf16.mxu0 0
  %153 = vmatpush1.bf16.msra.mxu0 0
  %154 = vmatprep.subr.bf16.mxu0 0
  %155 = vmatpush1.bf16.msra.mxu0 0
  %156 = vmatprep.mubr.bf16.mxu0 0
  %157 = vmatmul.mubr.bf16.gmra.mrb[0].mxu0 %v49
  %v158 = vpop.f32.mrb[0].mxu0
  %v159 = vadd.f32 %v74, %v158
  %v160 = vpop.f32.mrb[0].mxu0
  %v161 = vpop.f32.mrb[0].mxu0
  %v162 = vadd.f32 %v74, %v161
  %v163 = vpop.f32.mrb[0].mxu0
  %164 = vmatprep.mubr.bf16.mxu0 0
  %165 = vmatmul.mubr.bf16.gmra.mrb[0].mxu0 %v50
  %v166 = vpop.f32.mrb[0].mxu0
  %v167 = vadd.f32 %v74, %v166
  %v168 = vpop.f32.mrb[0].mxu0
  %v169 = vpop.f32.mrb[0].mxu0
  %v170 = vadd.f32 %v74, %v169
  %v171 = vpop.f32.mrb[0].mxu0
  %172 = vmatprep.mubr.bf16.mxu0 0
  %173 = vmatmul.mubr.bf16.gmra.mrb[0].mxu0 %v51
  %v174 = vpop.f32.mrb[0].mxu0
  %v175 = vadd.f32 %v74, %v174
  %v176 = vpop.f32.mrb[0].mxu0
  %v177 = vpop.f32.mrb[0].mxu0
  %v178 = vadd.f32 %v74, %v177
  %v179 = vpop.f32.mrb[0].mxu0
  %180 = vmatprep.mubr.bf16.mxu0 0
  %181 = vmatmul.mubr.bf16.gmra.mrb[0].mxu0 %v52
  %v182 = vpop.f32.mrb[0].mxu0
  %v183 = vadd.f32 %v74, %v182
  %v184 = vpop.f32.mrb[0].mxu0
  %v185 = vpop.f32.mrb[0].mxu0
  %v186 = vadd.f32 %v74, %v185
  %v187 = vpop.f32.mrb[0].mxu0
  %188 = vdwg.mxu0
  %v189 = vmax.f32 %v159, 0.0
  %v190 = vmax.f32 %v162, 0.0
  %v191 = vmax.f32 %v167, 0.0
  %v192 = vmax.f32 %v170, 0.0
  %v193 = vmax.f32 %v175, 0.0
  %v194 = vmax.f32 %v178, 0.0
  %v195 = vmax.f32 %v183, 0.0
  %v196 = vmax.f32 %v186, 0.0
  %v197 = vpack.c.bf16 %v190, %v189
  %v198 = vpack.c.bf16 %v192, %v191
  %v199 = vpack.c.bf16 %v194, %v193
  %v200 = vpack.c.bf16 %v196, %v195
  %v201 = vld [vmem:[%s3] sm:$0xff]
  %v202 = vld [vmem:[%s3 + $0x8] sm:$0xf]
  %v203 = vld [vmem:[%s3 + $0xc] sm:$0xff]
  %v204 = vld [vmem:[%s3 + $0x14] sm:$0xf]
  %v205 = vld [vmem:[%s3 + $0x18] sm:$0xff]
  %v206 = vld [vmem:[%s3 + $0x20] sm:$0xf]
  %v207 = vld [vmem:[%s3 + $0x24] sm:$0xff]
  %v208 = vld [vmem:[%s3 + $0x2c] sm:$0xf]
  %v209 = vld [vmem:[%s3 + $0x30] sm:$0xff]
  %v210 = vld [vmem:[%s3 + $0x38] sm:$0xf]
  %v211 = vld [vmem:[%s3 + $0x3c] sm:$0xff]
  %v212 = vld [vmem:[%s3 + $0x44] sm:$0xf]
  %v213 = vld [vmem:[%s3 + $0x48] sm:$0xff]
  %v214 = vld [vmem:[%s3 + $0x50] sm:$0xf]
  %v215 = vld [vmem:[%s3 + $0x54] sm:$0xff]
  %v216 = vld [vmem:[%s3 + $0x5c] sm:$0xf]
  %v217 = vld [vmem:[%s3 + $0x60] sm:$0xff]
  %v218 = vld [vmem:[%s3 + $0x68] sm:$0xf]
  %v219 = vld [vmem:[%s3 + $0x6c] sm:$0xff]
  %v220 = vld [vmem:[%s3 + $0x74] sm:$0xf]
  %v221 = vld [vmem:[%s3 + $0x78] sm:$0xff]
  %v222 = vld [vmem:[%s3 + $0x80] sm:$0xf]
  %v223 = vld [vmem:[%s3 + $0x84] sm:$0xff]
  %v224 = vld [vmem:[%s3 + $0x8c] sm:$0xf]
  %v225 = vld [vmem:[%s3 + $0x90] sm:$0xff]
  %v226 = vld [vmem:[%s3 + $0x98] sm:$0xf]
  %v227 = vld [vmem:[%s3 + $0x9c] sm:$0xff]
  %v228 = vld [vmem:[%s3 + $0xa4] sm:$0xf]
  %v229 = vld [vmem:[%s3 + $0xa8] sm:$0xff]
  %v230 = vld [vmem:[%s3 + $0xb0] sm:$0xf]
  %v231 = vld [vmem:[%s3 + $0xb4] sm:$0xff]
  %v232 = vld [vmem:[%s3 + $0xbc] sm:$0xf]
  %v233 = vld [vmem:[%s4] sm:$0x7]
  %v235 = vlaneseq
  %v236 = vshrl.u32 %v235, 7
  %v237 = vsub.s32 0, %v236
  %v238 = vrot.slane %v233, %v237
  %v239 = vlaneseq
  %v240 = vshrl.u32 %v239, 7
  %v241 = vsub.s32 1, %v240
  %v242 = vrot.slane %v233, %v241
  %v243 = vlaneseq
  %v244 = vshrl.u32 %v243, 7
  %v245 = vsub.s32 2, %v244
  %v246 = vrot.slane %v233, %v245
  %v282 = vunpack.c.l.b16 %v201
  %v283 = vunpack.c.h.b16 %v201
  %v284 = vunpack.c.l.b16 %v202
  %v285 = vunpack.c.l.b16 %v203
  %v286 = vunpack.c.h.b16 %v203
  %v287 = vunpack.c.l.b16 %v204
  %v288 = vunpack.c.l.b16 %v205
  %v289 = vunpack.c.h.b16 %v205
  %v290 = vunpack.c.l.b16 %v206
  %v291 = vunpack.c.l.b16 %v207
  %v292 = vunpack.c.h.b16 %v207
  %v293 = vunpack.c.l.b16 %v208
  %v294 = vunpack.c.l.b16 %v209
  %v295 = vunpack.c.h.b16 %v209
  %v296 = vunpack.c.l.b16 %v210
  %v297 = vunpack.c.l.b16 %v211
  %v298 = vunpack.c.h.b16 %v211
  %v299 = vunpack.c.l.b16 %v212
  %v300 = vunpack.c.l.b16 %v213
  %v301 = vunpack.c.h.b16 %v213
  %v302 = vunpack.c.l.b16 %v214
  %v303 = vunpack.c.l.b16 %v215
  %v304 = vunpack.c.h.b16 %v215
  %v305 = vunpack.c.l.b16 %v216
  %v306 = vunpack.c.l.b16 %v217
  %v307 = vunpack.c.h.b16 %v217
  %v308 = vunpack.c.l.b16 %v218
  %v309 = vunpack.c.l.b16 %v219
  %v310 = vunpack.c.h.b16 %v219
  %v311 = vunpack.c.l.b16 %v220
  %v312 = vunpack.c.l.b16 %v221
  %v313 = vunpack.c.h.b16 %v221
  %v314 = vunpack.c.l.b16 %v222
  %v315 = vunpack.c.l.b16 %v223
  %v316 = vunpack.c.h.b16 %v223
  %v317 = vunpack.c.l.b16 %v224
  %v318 = vunpack.c.l.b16 %v225
  %v319 = vunpack.c.h.b16 %v225
  %v320 = vunpack.c.l.b16 %v226
  %v321 = vunpack.c.l.b16 %v227
  %v322 = vunpack.c.h.b16 %v227
  %v323 = vunpack.c.l.b16 %v228
  %v324 = vunpack.c.l.b16 %v229
  %v325 = vunpack.c.h.b16 %v229
  %v326 = vunpack.c.l.b16 %v230
  %v327 = vunpack.c.l.b16 %v231
  %v328 = vunpack.c.h.b16 %v231
  %v329 = vunpack.c.l.b16 %v232
  %v330 = vpack.c.b16 %v285, %v282
  %v331 = vpack.c.b16 %v286, %v283
  %v332 = vpack.c.b16 %v287, %v284
  %v333 = vpack.c.b16 %v291, %v288
  %v334 = vpack.c.b16 %v292, %v289
  %v335 = vpack.c.b16 %v293, %v290
  %v336 = vpack.c.b16 %v297, %v294
  %v337 = vpack.c.b16 %v298, %v295
  %v338 = vpack.c.b16 %v299, %v296
  %v339 = vpack.c.b16 %v303, %v300
  %v340 = vpack.c.b16 %v304, %v301
  %v341 = vpack.c.b16 %v305, %v302
  %v342 = vpack.c.b16 %v309, %v306
  %v343 = vpack.c.b16 %v310, %v307
  %v344 = vpack.c.b16 %v311, %v308
  %v345 = vpack.c.b16 %v315, %v312
  %v346 = vpack.c.b16 %v316, %v313
  %v347 = vpack.c.b16 %v317, %v314
  %v348 = vpack.c.b16 %v321, %v318
  %v349 = vpack.c.b16 %v322, %v319
  %v350 = vpack.c.b16 %v323, %v320
  %v351 = vpack.c.b16 %v327, %v324
  %v352 = vpack.c.b16 %v328, %v325
  %v353 = vpack.c.b16 %v329, %v326
  %378 = vmatprep.subr.bf16.mxu0 %v331
  %379 = vmatpush1.bf16.msra.mxu0 %v330
  %380 = vmatprep.subr.bf16.mxu0 %v334
  %381 = vmatpush1.bf16.msra.mxu0 %v333
  %382 = vmatprep.subr.bf16.mxu0 %v337
  %383 = vmatpush1.bf16.msra.mxu0 %v336
  %384 = vmatprep.subr.bf16.mxu0 %v340
  %385 = vmatpush1.bf16.msra.mxu0 %v339
  %386 = vmatprep.subr.bf16.mxu0 %v343
  %387 = vmatpush1.bf16.msra.mxu0 %v342
  %388 = vmatprep.subr.bf16.mxu0 %v346
  %389 = vmatpush1.bf16.msra.mxu0 %v345
  %390 = vmatprep.subr.bf16.mxu0 %v349
  %391 = vmatpush1.bf16.msra.mxu0 %v348
  %392 = vmatprep.subr.bf16.mxu0 %v352
  %393 = vmatpush1.bf16.msra.mxu0 %v351
  %394 = vmatprep.subr.bf16.mxu0 0
  %395 = vmatpush1.bf16.msra.mxu0 0
  %396 = vmatprep.subr.bf16.mxu0 0
  %397 = vmatpush1.bf16.msra.mxu0 0
  %398 = vmatprep.subr.bf16.mxu0 0
  %399 = vmatpush1.bf16.msra.mxu0 0
  %400 = vmatprep.subr.bf16.mxu0 0
  %401 = vmatpush1.bf16.msra.mxu0 0
  %402 = vmatprep.subr.bf16.mxu0 0
  %403 = vmatpush1.bf16.msra.mxu0 0
  %404 = vmatprep.subr.bf16.mxu0 0
  %405 = vmatpush1.bf16.msra.mxu0 0
  %406 = vmatprep.subr.bf16.mxu0 0
  %407 = vmatpush1.bf16.msra.mxu0 0
  %408 = vmatprep.subr.bf16.mxu0 0
  %409 = vmatpush1.bf16.msra.mxu0 0
  %410 = vmatprep.mubr.bf16.mxu0 0
  %411 = vmatmul.mubr.bf16.gmra.mrb[0].mxu0 %v197
  %v412 = vpop.f32.mrb[0].mxu0
  %v413 = vadd.f32 %v238, %v412
  %v414 = vpop.f32.mrb[0].mxu0
  %v415 = vadd.f32 %v242, %v414
  %v416 = vpop.f32.mrb[0].mxu0
  %v417 = vadd.f32 %v238, %v416
  %v418 = vpop.f32.mrb[0].mxu0
  %v419 = vadd.f32 %v242, %v418
  %420 = vmatprep.mubr.bf16.mxu0 0
  %421 = vmatmul.mubr.bf16.gmra.mrb[0].mxu0 %v198
  %v422 = vpop.f32.mrb[0].mxu0
  %v423 = vadd.f32 %v238, %v422
  %v424 = vpop.f32.mrb[0].mxu0
  %v425 = vadd.f32 %v242, %v424
  %v426 = vpop.f32.mrb[0].mxu0
  %v427 = vadd.f32 %v238, %v426
  %v428 = vpop.f32.mrb[0].mxu0
  %v429 = vadd.f32 %v242, %v428
  %430 = vmatprep.mubr.bf16.mxu0 0
  %431 = vmatmul.mubr.bf16.gmra.mrb[0].mxu0 %v199
  %v432 = vpop.f32.mrb[0].mxu0
  %v433 = vadd.f32 %v238, %v432
  %v434 = vpop.f32.mrb[0].mxu0
  %v435 = vadd.f32 %v242, %v434
  %v436 = vpop.f32.mrb[0].mxu0
  %v437 = vadd.f32 %v238, %v436
  %v438 = vpop.f32.mrb[0].mxu0
  %v439 = vadd.f32 %v242, %v438
  %440 = vmatprep.mubr.bf16.mxu0 0
  %441 = vmatmul.mubr.bf16.gmra.mrb[0].mxu0 %v200
  %v442 = vpop.f32.mrb[0].mxu0
  %v443 = vadd.f32 %v238, %v442
  %v444 = vpop.f32.mrb[0].mxu0
  %v445 = vadd.f32 %v242, %v444
  %v446 = vpop.f32.mrb[0].mxu0
  %v447 = vadd.f32 %v238, %v446
  %v448 = vpop.f32.mrb[0].mxu0
  %v449 = vadd.f32 %v242, %v448
  %450 = vdwg.mxu0
  %451 = vmatprep.subr.bf16.mxu0 0
  %452 = vmatpush1.bf16.msra.mxu0 %v332
  %453 = vmatprep.subr.bf16.mxu0 0
  %454 = vmatpush1.bf16.msra.mxu0 %v335
  %455 = vmatprep.subr.bf16.mxu0 0
  %456 = vmatpush1.bf16.msra.mxu0 %v338
  %457 = vmatprep.subr.bf16.mxu0 0
  %458 = vmatpush1.bf16.msra.mxu0 %v341
  %459 = vmatprep.subr.bf16.mxu0 0
  %460 = vmatpush1.bf16.msra.mxu0 %v344
  %461 = vmatprep.subr.bf16.mxu0 0
  %462 = vmatpush1.bf16.msra.mxu0 %v347
  %463 = vmatprep.subr.bf16.mxu0 0
  %464 = vmatpush1.bf16.msra.mxu0 %v350
  %465 = vmatprep.subr.bf16.mxu0 0
  %466 = vmatpush1.bf16.msra.mxu0 %v353
  %467 = vmatprep.subr.bf16.mxu0 0
  %468 = vmatpush1.bf16.msra.mxu0 0
  %469 = vmatprep.subr.bf16.mxu0 0
  %470 = vmatpush1.bf16.msra.mxu0 0
  %471 = vmatprep.subr.bf16.mxu0 0
  %472 = vmatpush1.bf16.msra.mxu0 0
  %473 = vmatprep.subr.bf16.mxu0 0
  %474 = vmatpush1.bf16.msra.mxu0 0
  %475 = vmatprep.subr.bf16.mxu0 0
  %476 = vmatpush1.bf16.msra.mxu0 0
  %477 = vmatprep.subr.bf16.mxu0 0
  %478 = vmatpush1.bf16.msra.mxu0 0
  %479 = vmatprep.subr.bf16.mxu0 0
  %480 = vmatpush1.bf16.msra.mxu0 0
  %481 = vmatprep.subr.bf16.mxu0 0
  %482 = vmatpush1.bf16.msra.mxu0 0
  %483 = vmatprep.mubr.bf16.mxu0 0
  %484 = vmatmul.mubr.bf16.gmra.mrb[0].mxu0 %v197
  %v485 = vpop.f32.mrb[0].mxu0
  %v486 = vadd.f32 %v246, %v485
  %v487 = vpop.f32.mrb[0].mxu0
  %v488 = vpop.f32.mrb[0].mxu0
  %v489 = vadd.f32 %v246, %v488
  %v490 = vpop.f32.mrb[0].mxu0
  %491 = vmatprep.mubr.bf16.mxu0 0
  %492 = vmatmul.mubr.bf16.gmra.mrb[0].mxu0 %v198
  %v493 = vpop.f32.mrb[0].mxu0
  %v494 = vadd.f32 %v246, %v493
  %v495 = vpop.f32.mrb[0].mxu0
  %v496 = vpop.f32.mrb[0].mxu0
  %v497 = vadd.f32 %v246, %v496
  %v498 = vpop.f32.mrb[0].mxu0
  %499 = vmatprep.mubr.bf16.mxu0 0
  %500 = vmatmul.mubr.bf16.gmra.mrb[0].mxu0 %v199
  %v501 = vpop.f32.mrb[0].mxu0
  %v502 = vadd.f32 %v246, %v501
  %v503 = vpop.f32.mrb[0].mxu0
  %v504 = vpop.f32.mrb[0].mxu0
  %v505 = vadd.f32 %v246, %v504
  %v506 = vpop.f32.mrb[0].mxu0
  %507 = vmatprep.mubr.bf16.mxu0 0
  %508 = vmatmul.mubr.bf16.gmra.mrb[0].mxu0 %v200
  %v509 = vpop.f32.mrb[0].mxu0
  %v510 = vadd.f32 %v246, %v509
  %v511 = vpop.f32.mrb[0].mxu0
  %v512 = vpop.f32.mrb[0].mxu0
  %v513 = vadd.f32 %v246, %v512
  %v514 = vpop.f32.mrb[0].mxu0
  %515 = vdwg.mxu0
  %516 = vst [vmem:[#allocation2] sm:$0xff] %v413
  %517 = vst [vmem:[#allocation2 + $0x8] sm:$0xff] %v415
  %518 = vst [vmem:[#allocation2 + $0x10] sm:$0xff] %v486
  %519 = vst [vmem:[#allocation2 + $0x18] sm:$0xff] %v417
  %520 = vst [vmem:[#allocation2 + $0x20] sm:$0xff] %v419
  %521 = vst [vmem:[#allocation2 + $0x28] sm:$0xff] %v489
  %522 = vst [vmem:[#allocation2 + $0x30] sm:$0xff] %v423
  %523 = vst [vmem:[#allocation2 + $0x38] sm:$0xff] %v425
  %524 = vst [vmem:[#allocation2 + $0x40] sm:$0xff] %v494
  %525 = vst [vmem:[#allocation2 + $0x48] sm:$0xff] %v427
  %526 = vst [vmem:[#allocation2 + $0x50] sm:$0xff] %v429
  %527 = vst [vmem:[#allocation2 + $0x58] sm:$0xff] %v497
  %528 = vst [vmem:[#allocation2 + $0x60] sm:$0xff] %v433
  %529 = vst [vmem:[#allocation2 + $0x68] sm:$0xff] %v435
  %530 = vst [vmem:[#allocation2 + $0x70] sm:$0xff] %v502
  %531 = vst [vmem:[#allocation2 + $0x78] sm:$0xff] %v437
  %532 = vst [vmem:[#allocation2 + $0x80] sm:$0xff] %v439
  %533 = vst [vmem:[#allocation2 + $0x88] sm:$0xff] %v505
  %534 = vst [vmem:[#allocation2 + $0x90] sm:$0xff] %v443
  %535 = vst [vmem:[#allocation2 + $0x98] sm:$0xff] %v445
  %536 = vst [vmem:[#allocation2 + $0xa0] sm:$0xff] %v510
  %537 = vst [vmem:[#allocation2 + $0xa8] sm:$0xff] %v447
  %538 = vst [vmem:[#allocation2 + $0xb0] sm:$0xff] %v449
  %539 = vst [vmem:[#allocation2 + $0xb8] sm:$0xff] %v513
  %v540 = vld [vmem:[%s5] sm:$0xff]
  %v541 = vld [vmem:[%s5 + $0x8] sm:$0xf]
  %v542 = vld [vmem:[%s5 + $0xc] sm:$0xff]
  %v543 = vld [vmem:[%s5 + $0x14] sm:$0xf]
  %v544 = vld [vmem:[%s5 + $0x18] sm:$0xff]
  %v545 = vld [vmem:[%s5 + $0x20] sm:$0xf]
  %v546 = vld [vmem:[%s5 + $0x24] sm:$0xff]
  %v547 = vld [vmem:[%s5 + $0x2c] sm:$0xf]
  %v548 = vld [vmem:[%s5 + $0x30] sm:$0xff]
  %v549 = vld [vmem:[%s5 + $0x38] sm:$0xf]
  %v550 = vld [vmem:[%s5 + $0x3c] sm:$0xff]
  %v551 = vld [vmem:[%s5 + $0x44] sm:$0xf]
  %v552 = vld [vmem:[%s5 + $0x48] sm:$0xff]
  %v553 = vld [vmem:[%s5 + $0x50] sm:$0xf]
  %v554 = vld [vmem:[%s5 + $0x54] sm:$0xff]
  %v555 = vld [vmem:[%s5 + $0x5c] sm:$0xf]
  %v556 = vld [vmem:[%s5 + $0x60] sm:$0xff]
  %v557 = vld [vmem:[%s5 + $0x68] sm:$0xf]
  %v558 = vld [vmem:[%s5 + $0x6c] sm:$0xff]
  %v559 = vld [vmem:[%s5 + $0x74] sm:$0xf]
  %v560 = vld [vmem:[%s5 + $0x78] sm:$0xff]
  %v561 = vld [vmem:[%s5 + $0x80] sm:$0xf]
  %v562 = vld [vmem:[%s5 + $0x84] sm:$0xff]
  %v563 = vld [vmem:[%s5 + $0x8c] sm:$0xf]
  %v564 = vld [vmem:[%s5 + $0x90] sm:$0xff]
  %v565 = vld [vmem:[%s5 + $0x98] sm:$0xf]
  %v566 = vld [vmem:[%s5 + $0x9c] sm:$0xff]
  %v567 = vld [vmem:[%s5 + $0xa4] sm:$0xf]
  %v568 = vld [vmem:[%s5 + $0xa8] sm:$0xff]
  %v569 = vld [vmem:[%s5 + $0xb0] sm:$0xf]
  %v570 = vld [vmem:[%s5 + $0xb4] sm:$0xff]
  %v571 = vld [vmem:[%s5 + $0xbc] sm:$0xf]
  %v572 = vld [vmem:[%s6] sm:$0x7]
  %v574 = vlaneseq
  %v575 = vshrl.u32 %v574, 7
  %v576 = vsub.s32 0, %v575
  %v577 = vrot.slane %v572, %v576
  %v578 = vlaneseq
  %v579 = vshrl.u32 %v578, 7
  %v580 = vsub.s32 1, %v579
  %v581 = vrot.slane %v572, %v580
  %v582 = vlaneseq
  %v583 = vshrl.u32 %v582, 7
  %v584 = vsub.s32 2, %v583
  %v585 = vrot.slane %v572, %v584
  %v621 = vunpack.c.l.b16 %v540
  %v622 = vunpack.c.h.b16 %v540
  %v623 = vunpack.c.l.b16 %v541
  %v624 = vunpack.c.l.b16 %v542
  %v625 = vunpack.c.h.b16 %v542
  %v626 = vunpack.c.l.b16 %v543
  %v627 = vunpack.c.l.b16 %v544
  %v628 = vunpack.c.h.b16 %v544
  %v629 = vunpack.c.l.b16 %v545
  %v630 = vunpack.c.l.b16 %v546
  %v631 = vunpack.c.h.b16 %v546
  %v632 = vunpack.c.l.b16 %v547
  %v633 = vunpack.c.l.b16 %v548
  %v634 = vunpack.c.h.b16 %v548
  %v635 = vunpack.c.l.b16 %v549
  %v636 = vunpack.c.l.b16 %v550
  %v637 = vunpack.c.h.b16 %v550
  %v638 = vunpack.c.l.b16 %v551
  %v639 = vunpack.c.l.b16 %v552
  %v640 = vunpack.c.h.b16 %v552
  %v641 = vunpack.c.l.b16 %v553
  %v642 = vunpack.c.l.b16 %v554
  %v643 = vunpack.c.h.b16 %v554
  %v644 = vunpack.c.l.b16 %v555
  %v645 = vunpack.c.l.b16 %v556
  %v646 = vunpack.c.h.b16 %v556
  %v647 = vunpack.c.l.b16 %v557
  %v648 = vunpack.c.l.b16 %v558
  %v649 = vunpack.c.h.b16 %v558
  %v650 = vunpack.c.l.b16 %v559
  %v651 = vunpack.c.l.b16 %v560
  %v652 = vunpack.c.h.b16 %v560
  %v653 = vunpack.c.l.b16 %v561
  %v654 = vunpack.c.l.b16 %v562
  %v655 = vunpack.c.h.b16 %v562
  %v656 = vunpack.c.l.b16 %v563
  %v657 = vunpack.c.l.b16 %v564
  %v658 = vunpack.c.h.b16 %v564
  %v659 = vunpack.c.l.b16 %v565
  %v660 = vunpack.c.l.b16 %v566
  %v661 = vunpack.c.h.b16 %v566
  %v662 = vunpack.c.l.b16 %v567
  %v663 = vunpack.c.l.b16 %v568
  %v664 = vunpack.c.h.b16 %v568
  %v665 = vunpack.c.l.b16 %v569
  %v666 = vunpack.c.l.b16 %v570
  %v667 = vunpack.c.h.b16 %v570
  %v668 = vunpack.c.l.b16 %v571
  %v669 = vpack.c.b16 %v624, %v621
  %v670 = vpack.c.b16 %v625, %v622
  %v671 = vpack.c.b16 %v626, %v623
  %v672 = vpack.c.b16 %v630, %v627
  %v673 = vpack.c.b16 %v631, %v628
  %v674 = vpack.c.b16 %v632, %v629
  %v675 = vpack.c.b16 %v636, %v633
  %v676 = vpack.c.b16 %v637, %v634
  %v677 = vpack.c.b16 %v638, %v635
  %v678 = vpack.c.b16 %v642, %v639
  %v679 = vpack.c.b16 %v643, %v640
  %v680 = vpack.c.b16 %v644, %v641
  %v681 = vpack.c.b16 %v648, %v645
  %v682 = vpack.c.b16 %v649, %v646
  %v683 = vpack.c.b16 %v650, %v647
  %v684 = vpack.c.b16 %v654, %v651
  %v685 = vpack.c.b16 %v655, %v652
  %v686 = vpack.c.b16 %v656, %v653
  %v687 = vpack.c.b16 %v660, %v657
  %v688 = vpack.c.b16 %v661, %v658
  %v689 = vpack.c.b16 %v662, %v659
  %v690 = vpack.c.b16 %v666, %v663
  %v691 = vpack.c.b16 %v667, %v664
  %v692 = vpack.c.b16 %v668, %v665
  %717 = vmatprep.subr.bf16.mxu0 %v670
  %718 = vmatpush1.bf16.msra.mxu0 %v669
  %719 = vmatprep.subr.bf16.mxu0 %v673
  %720 = vmatpush1.bf16.msra.mxu0 %v672
  %721 = vmatprep.subr.bf16.mxu0 %v676
  %722 = vmatpush1.bf16.msra.mxu0 %v675
  %723 = vmatprep.subr.bf16.mxu0 %v679
  %724 = vmatpush1.bf16.msra.mxu0 %v678
  %725 = vmatprep.subr.bf16.mxu0 %v682
  %726 = vmatpush1.bf16.msra.mxu0 %v681
  %727 = vmatprep.subr.bf16.mxu0 %v685
  %728 = vmatpush1.bf16.msra.mxu0 %v684
  %729 = vmatprep.subr.bf16.mxu0 %v688
  %730 = vmatpush1.bf16.msra.mxu0 %v687
  %731 = vmatprep.subr.bf16.mxu0 %v691
  %732 = vmatpush1.bf16.msra.mxu0 %v690
  %733 = vmatprep.subr.bf16.mxu0 0
  %734 = vmatpush1.bf16.msra.mxu0 0
  %735 = vmatprep.subr.bf16.mxu0 0
  %736 = vmatpush1.bf16.msra.mxu0 0
  %737 = vmatprep.subr.bf16.mxu0 0
  %738 = vmatpush1.bf16.msra.mxu0 0
  %739 = vmatprep.subr.bf16.mxu0 0
  %740 = vmatpush1.bf16.msra.mxu0 0
  %741 = vmatprep.subr.bf16.mxu0 0
  %742 = vmatpush1.bf16.msra.mxu0 0
  %743 = vmatprep.subr.bf16.mxu0 0
  %744 = vmatpush1.bf16.msra.mxu0 0
  %745 = vmatprep.subr.bf16.mxu0 0
  %746 = vmatpush1.bf16.msra.mxu0 0
  %747 = vmatprep.subr.bf16.mxu0 0
  %748 = vmatpush1.bf16.msra.mxu0 0
  %749 = vmatprep.mubr.bf16.mxu0 0
  %750 = vmatmul.mubr.bf16.gmra.mrb[0].mxu0 %v197
  %v751 = vpop.f32.mrb[0].mxu0
  %v752 = vadd.f32 %v577, %v751
  %v753 = vpop.f32.mrb[0].mxu0
  %v754 = vadd.f32 %v581, %v753
  %v755 = vpop.f32.mrb[0].mxu0
  %v756 = vadd.f32 %v577, %v755
  %v757 = vpop.f32.mrb[0].mxu0
  %v758 = vadd.f32 %v581, %v757
  %759 = vmatprep.mubr.bf16.mxu0 0
  %760 = vmatmul.mubr.bf16.gmra.mrb[0].mxu0 %v198
  %v761 = vpop.f32.mrb[0].mxu0
  %v762 = vadd.f32 %v577, %v761
  %v763 = vpop.f32.mrb[0].mxu0
  %v764 = vadd.f32 %v581, %v763
  %v765 = vpop.f32.mrb[0].mxu0
  %v766 = vadd.f32 %v577, %v765
  %v767 = vpop.f32.mrb[0].mxu0
  %v768 = vadd.f32 %v581, %v767
  %769 = vmatprep.mubr.bf16.mxu0 0
  %770 = vmatmul.mubr.bf16.gmra.mrb[0].mxu0 %v199
  %v771 = vpop.f32.mrb[0].mxu0
  %v772 = vadd.f32 %v577, %v771
  %v773 = vpop.f32.mrb[0].mxu0
  %v774 = vadd.f32 %v581, %v773
  %v775 = vpop.f32.mrb[0].mxu0
  %v776 = vadd.f32 %v577, %v775
  %v777 = vpop.f32.mrb[0].mxu0
  %v778 = vadd.f32 %v581, %v777
  %779 = vmatprep.mubr.bf16.mxu0 0
  %780 = vmatmul.mubr.bf16.gmra.mrb[0].mxu0 %v200
  %v781 = vpop.f32.mrb[0].mxu0
  %v782 = vadd.f32 %v577, %v781
  %v783 = vpop.f32.mrb[0].mxu0
  %v784 = vadd.f32 %v581, %v783
  %v785 = vpop.f32.mrb[0].mxu0
  %v786 = vadd.f32 %v577, %v785
  %v787 = vpop.f32.mrb[0].mxu0
  %v788 = vadd.f32 %v581, %v787
  %789 = vdwg.mxu0
  %790 = vmatprep.subr.bf16.mxu0 0
  %791 = vmatpush1.bf16.msra.mxu0 %v671
  %792 = vmatprep.subr.bf16.mxu0 0
  %793 = vmatpush1.bf16.msra.mxu0 %v674
  %794 = vmatprep.subr.bf16.mxu0 0
  %795 = vmatpush1.bf16.msra.mxu0 %v677
  %796 = vmatprep.subr.bf16.mxu0 0
  %797 = vmatpush1.bf16.msra.mxu0 %v680
  %798 = vmatprep.subr.bf16.mxu0 0
  %799 = vmatpush1.bf16.msra.mxu0 %v683
  %800 = vmatprep.subr.bf16.mxu0 0
  %801 = vmatpush1.bf16.msra.mxu0 %v686
  %802 = vmatprep.subr.bf16.mxu0 0
  %803 = vmatpush1.bf16.msra.mxu0 %v689
  %804 = vmatprep.subr.bf16.mxu0 0
  %805 = vmatpush1.bf16.msra.mxu0 %v692
  %806 = vmatprep.subr.bf16.mxu0 0
  %807 = vmatpush1.bf16.msra.mxu0 0
  %808 = vmatprep.subr.bf16.mxu0 0
  %809 = vmatpush1.bf16.msra.mxu0 0
  %810 = vmatprep.subr.bf16.mxu0 0
  %811 = vmatpush1.bf16.msra.mxu0 0
  %812 = vmatprep.subr.bf16.mxu0 0
  %813 = vmatpush1.bf16.msra.mxu0 0
  %814 = vmatprep.subr.bf16.mxu0 0
  %815 = vmatpush1.bf16.msra.mxu0 0
  %816 = vmatprep.subr.bf16.mxu0 0
  %817 = vmatpush1.bf16.msra.mxu0 0
  %818 = vmatprep.subr.bf16.mxu0 0
  %819 = vmatpush1.bf16.msra.mxu0 0
  %820 = vmatprep.subr.bf16.mxu0 0
  %821 = vmatpush1.bf16.msra.mxu0 0
  %822 = vmatprep.mubr.bf16.mxu0 0
  %823 = vmatmul.mubr.bf16.gmra.mrb[0].mxu0 %v197
  %v824 = vpop.f32.mrb[0].mxu0
  %v825 = vadd.f32 %v585, %v824
  %v826 = vpop.f32.mrb[0].mxu0
  %v827 = vpop.f32.mrb[0].mxu0
  %v828 = vadd.f32 %v585, %v827
  %v829 = vpop.f32.mrb[0].mxu0
  %830 = vmatprep.mubr.bf16.mxu0 0
  %831 = vmatmul.mubr.bf16.gmra.mrb[0].mxu0 %v198
  %v832 = vpop.f32.mrb[0].mxu0
  %v833 = vadd.f32 %v585, %v832
  %v834 = vpop.f32.mrb[0].mxu0
  %v835 = vpop.f32.mrb[0].mxu0
  %v836 = vadd.f32 %v585, %v835
  %v837 = vpop.f32.mrb[0].mxu0
  %838 = vmatprep.mubr.bf16.mxu0 0
  %839 = vmatmul.mubr.bf16.gmra.mrb[0].mxu0 %v199
  %v840 = vpop.f32.mrb[0].mxu0
  %v841 = vadd.f32 %v585, %v840
  %v842 = vpop.f32.mrb[0].mxu0
  %v843 = vpop.f32.mrb[0].mxu0
  %v844 = vadd.f32 %v585, %v843
  %v845 = vpop.f32.mrb[0].mxu0
  %846 = vmatprep.mubr.bf16.mxu0 0
  %847 = vmatmul.mubr.bf16.gmra.mrb[0].mxu0 %v200
  %v848 = vpop.f32.mrb[0].mxu0
  %v849 = vadd.f32 %v585, %v848
  %v850 = vpop.f32.mrb[0].mxu0
  %v851 = vpop.f32.mrb[0].mxu0
  %v852 = vadd.f32 %v585, %v851
  %v853 = vpop.f32.mrb[0].mxu0
  %854 = vdwg.mxu0
  %855 = vst [vmem:[#allocation3] sm:$0xff] %v752
  %856 = vst [vmem:[#allocation3 + $0x8] sm:$0xff] %v754
  %857 = vst [vmem:[#allocation3 + $0x10] sm:$0xff] %v825
  %858 = vst [vmem:[#allocation3 + $0x18] sm:$0xff] %v756
  %859 = vst [vmem:[#allocation3 + $0x20] sm:$0xff] %v758
  %860 = vst [vmem:[#allocation3 + $0x28] sm:$0xff] %v828
  %861 = vst [vmem:[#allocation3 + $0x30] sm:$0xff] %v762
  %862 = vst [vmem:[#allocation3 + $0x38] sm:$0xff] %v764
  %863 = vst [vmem:[#allocation3 + $0x40] sm:$0xff] %v833
  %864 = vst [vmem:[#allocation3 + $0x48] sm:$0xff] %v766
  %865 = vst [vmem:[#allocation3 + $0x50] sm:$0xff] %v768
  %866 = vst [vmem:[#allocation3 + $0x58] sm:$0xff] %v836
  %867 = vst [vmem:[#allocation3 + $0x60] sm:$0xff] %v772
  %868 = vst [vmem:[#allocation3 + $0x68] sm:$0xff] %v774
  %869 = vst [vmem:[#allocation3 + $0x70] sm:$0xff] %v841
  %870 = vst [vmem:[#allocation3 + $0x78] sm:$0xff] %v776
  %871 = vst [vmem:[#allocation3 + $0x80] sm:$0xff] %v778
  %872 = vst [vmem:[#allocation3 + $0x88] sm:$0xff] %v844
  %873 = vst [vmem:[#allocation3 + $0x90] sm:$0xff] %v782
  %874 = vst [vmem:[#allocation3 + $0x98] sm:$0xff] %v784
  %875 = vst [vmem:[#allocation3 + $0xa0] sm:$0xff] %v849
  %876 = vst [vmem:[#allocation3 + $0xa8] sm:$0xff] %v786
  %877 = vst [vmem:[#allocation3 + $0xb0] sm:$0xff] %v788
  %878 = vst [vmem:[#allocation3 + $0xb8] sm:$0xff] %v852
  %v879 = vld [vmem:[%s7] sm:$0xff]
  %v880 = vld [vmem:[%s7 + $0x8] sm:$0xf]
  %v881 = vld [vmem:[%s7 + $0xc] sm:$0xff]
  %v882 = vld [vmem:[%s7 + $0x14] sm:$0xf]
  %v883 = vld [vmem:[%s7 + $0x18] sm:$0xff]
  %v884 = vld [vmem:[%s7 + $0x20] sm:$0xf]
  %v885 = vld [vmem:[%s7 + $0x24] sm:$0xff]
  %v886 = vld [vmem:[%s7 + $0x2c] sm:$0xf]
  %v887 = vld [vmem:[%s7 + $0x30] sm:$0xff]
  %v888 = vld [vmem:[%s7 + $0x38] sm:$0xf]
  %v889 = vld [vmem:[%s7 + $0x3c] sm:$0xff]
  %v890 = vld [vmem:[%s7 + $0x44] sm:$0xf]
  %v891 = vld [vmem:[%s7 + $0x48] sm:$0xff]
  %v892 = vld [vmem:[%s7 + $0x50] sm:$0xf]
  %v893 = vld [vmem:[%s7 + $0x54] sm:$0xff]
  %v894 = vld [vmem:[%s7 + $0x5c] sm:$0xf]
  %v895 = vld [vmem:[%s7 + $0x60] sm:$0xff]
  %v896 = vld [vmem:[%s7 + $0x68] sm:$0xf]
  %v897 = vld [vmem:[%s7 + $0x6c] sm:$0xff]
  %v898 = vld [vmem:[%s7 + $0x74] sm:$0xf]
  %v899 = vld [vmem:[%s7 + $0x78] sm:$0xff]
  %v900 = vld [vmem:[%s7 + $0x80] sm:$0xf]
  %v901 = vld [vmem:[%s7 + $0x84] sm:$0xff]
  %v902 = vld [vmem:[%s7 + $0x8c] sm:$0xf]
  %v903 = vld [vmem:[%s7 + $0x90] sm:$0xff]
  %v904 = vld [vmem:[%s7 + $0x98] sm:$0xf]
  %v905 = vld [vmem:[%s7 + $0x9c] sm:$0xff]
  %v906 = vld [vmem:[%s7 + $0xa4] sm:$0xf]
  %v907 = vld [vmem:[%s7 + $0xa8] sm:$0xff]
  %v908 = vld [vmem:[%s7 + $0xb0] sm:$0xf]
  %v909 = vld [vmem:[%s7 + $0xb4] sm:$0xff]
  %v910 = vld [vmem:[%s7 + $0xbc] sm:$0xf]
  %v911 = vld [vmem:[%s8] sm:$0xff]
  %v912 = vld [vmem:[%s8 + $0x8] sm:$0xf]
  %v913 = vld [vmem:[%s8 + $0xc] sm:$0xff]
  %v914 = vld [vmem:[%s8 + $0x14] sm:$0xf]
  %v915 = vld [vmem:[%s8 + $0x18] sm:$0xff]
  %v916 = vld [vmem:[%s8 + $0x20] sm:$0xf]
  %v917 = vld [vmem:[%s8 + $0x24] sm:$0xff]
  %v918 = vld [vmem:[%s8 + $0x2c] sm:$0xf]
  %v919 = vld [vmem:[%s8 + $0x30] sm:$0xff]
  %v920 = vld [vmem:[%s8 + $0x38] sm:$0xf]
  %v921 = vld [vmem:[%s8 + $0x3c] sm:$0xff]
  %v922 = vld [vmem:[%s8 + $0x44] sm:$0xf]
  %v923 = vld [vmem:[%s8 + $0x48] sm:$0xff]
  %v924 = vld [vmem:[%s8 + $0x50] sm:$0xf]
  %v925 = vld [vmem:[%s8 + $0x54] sm:$0xff]
  %v926 = vld [vmem:[%s8 + $0x5c] sm:$0xf]
  %v927 = vld [vmem:[%s8 + $0x60] sm:$0xff]
  %v928 = vld [vmem:[%s8 + $0x68] sm:$0xf]
  %v929 = vld [vmem:[%s8 + $0x6c] sm:$0xff]
  %v930 = vld [vmem:[%s8 + $0x74] sm:$0xf]
  %v931 = vld [vmem:[%s8 + $0x78] sm:$0xff]
  %v932 = vld [vmem:[%s8 + $0x80] sm:$0xf]
  %v933 = vld [vmem:[%s8 + $0x84] sm:$0xff]
  %v934 = vld [vmem:[%s8 + $0x8c] sm:$0xf]
  %v935 = vld [vmem:[%s8 + $0x90] sm:$0xff]
  %v936 = vld [vmem:[%s8 + $0x98] sm:$0xf]
  %v937 = vld [vmem:[%s8 + $0x9c] sm:$0xff]
  %v938 = vld [vmem:[%s8 + $0xa4] sm:$0xf]
  %v939 = vld [vmem:[%s8 + $0xa8] sm:$0xff]
  %v940 = vld [vmem:[%s8 + $0xb0] sm:$0xf]
  %v941 = vld [vmem:[%s8 + $0xb4] sm:$0xff]
  %v942 = vld [vmem:[%s8 + $0xbc] sm:$0xf]
  %v943 = vld [vmem:[%s9] sm:$0x7]
  %v944 = vld [vmem:[%s10] sm:$0x7]
  loop: start=0, step=1, limit=8
  $region46: #{wrnn_forward.3} parent=0 // loop_pre_header
    _
  $region47: #{wrnn_forward.3} parent=0 // loop_header
    %s946 = sphi 0, %s950
    %p947 = scmp.ge.s32.totalorder %s946, 8
    %v951 = vphi 0.0, %v1438
    %v952 = vphi 0.0, %v1459
  $region48: #{wrnn_forward.3} parent=0 // loop_header_branch
    %949 = sbr.rel (%p947) target = $region52
  $region49: #{wrnn_forward.3} parent=0 // loop_body
    %s953 = smul.u32 %s946, 3
    %s954 = smul.addr %s953, 8
    %s955 = scalar_lea.vmem [#allocation2], %s954
    %v956 = vld [vmem:[%s955] sm:$0xff]
    %v957 = vld [vmem:[%s955 + $0x8] sm:$0xff]
    %v958 = vld [vmem:[%s955 + $0x10] sm:$0xff]
    %s959 = ssub.s32 7, %s946
    %s960 = smul.u32 %s959, 3
    %s961 = smul.addr %s960, 8
    %s962 = scalar_lea.vmem [#allocation3], %s961
    %v963 = vld [vmem:[%s962] sm:$0xff]
    %v964 = vld [vmem:[%s962 + $0x8] sm:$0xff]
    %v965 = vld [vmem:[%s962 + $0x10] sm:$0xff]
    %v966 = vpack.c.bf16 %v951, %v951
    %v968 = vlaneseq
    %v969 = vshrl.u32 %v968, 7
    %v970 = vsub.s32 0, %v969
    %v971 = vrot.slane %v943, %v970
    %v972 = vlaneseq
    %v973 = vshrl.u32 %v972, 7
    %v974 = vsub.s32 1, %v973
    %v975 = vrot.slane %v943, %v974
    %v976 = vlaneseq
    %v977 = vshrl.u32 %v976, 7
    %v978 = vsub.s32 2, %v977
    %v979 = vrot.slane %v943, %v978
    %v1015 = vunpack.c.l.b16 %v879
    %v1016 = vunpack.c.h.b16 %v879
    %v1017 = vunpack.c.l.b16 %v880
    %v1018 = vunpack.c.l.b16 %v881
    %v1019 = vunpack.c.h.b16 %v881
    %v1020 = vunpack.c.l.b16 %v882
    %v1021 = vunpack.c.l.b16 %v883
    %v1022 = vunpack.c.h.b16 %v883
    %v1023 = vunpack.c.l.b16 %v884
    %v1024 = vunpack.c.l.b16 %v885
    %v1025 = vunpack.c.h.b16 %v885
    %v1026 = vunpack.c.l.b16 %v886
    %v1027 = vunpack.c.l.b16 %v887
    %v1028 = vunpack.c.h.b16 %v887
    %v1029 = vunpack.c.l.b16 %v888
    %v1030 = vunpack.c.l.b16 %v889
    %v1031 = vunpack.c.h.b16 %v889
    %v1032 = vunpack.c.l.b16 %v890
    %v1033 = vunpack.c.l.b16 %v891
    %v1034 = vunpack.c.h.b16 %v891
    %v1035 = vunpack.c.l.b16 %v892
    %v1036 = vunpack.c.l.b16 %v893
    %v1037 = vunpack.c.h.b16 %v893
    %v1038 = vunpack.c.l.b16 %v894
    %v1039 = vunpack.c.l.b16 %v895
    %v1040 = vunpack.c.h.b16 %v895
    %v1041 = vunpack.c.l.b16 %v896
    %v1042 = vunpack.c.l.b16 %v897
    %v1043 = vunpack.c.h.b16 %v897
    %v1044 = vunpack.c.l.b16 %v898
    %v1045 = vunpack.c.l.b16 %v899
    %v1046 = vunpack.c.h.b16 %v899
    %v1047 = vunpack.c.l.b16 %v900
    %v1048 = vunpack.c.l.b16 %v901
    %v1049 = vunpack.c.h.b16 %v901
    %v1050 = vunpack.c.l.b16 %v902
    %v1051 = vunpack.c.l.b16 %v903
    %v1052 = vunpack.c.h.b16 %v903
    %v1053 = vunpack.c.l.b16 %v904
    %v1054 = vunpack.c.l.b16 %v905
    %v1055 = vunpack.c.h.b16 %v905
    %v1056 = vunpack.c.l.b16 %v906
    %v1057 = vunpack.c.l.b16 %v907
    %v1058 = vunpack.c.h.b16 %v907
    %v1059 = vunpack.c.l.b16 %v908
    %v1060 = vunpack.c.l.b16 %v909
    %v1061 = vunpack.c.h.b16 %v909
    %v1062 = vunpack.c.l.b16 %v910
    %v1063 = vpack.c.b16 %v1018, %v1015
    %v1064 = vpack.c.b16 %v1019, %v1016
    %v1065 = vpack.c.b16 %v1020, %v1017
    %v1066 = vpack.c.b16 %v1024, %v1021
    %v1067 = vpack.c.b16 %v1025, %v1022
    %v1068 = vpack.c.b16 %v1026, %v1023
    %v1069 = vpack.c.b16 %v1030, %v1027
    %v1070 = vpack.c.b16 %v1031, %v1028
    %v1071 = vpack.c.b16 %v1032, %v1029
    %v1072 = vpack.c.b16 %v1036, %v1033
    %v1073 = vpack.c.b16 %v1037, %v1034
    %v1074 = vpack.c.b16 %v1038, %v1035
    %v1075 = vpack.c.b16 %v1042, %v1039
    %v1076 = vpack.c.b16 %v1043, %v1040
    %v1077 = vpack.c.b16 %v1044, %v1041
    %v1078 = vpack.c.b16 %v1048, %v1045
    %v1079 = vpack.c.b16 %v1049, %v1046
    %v1080 = vpack.c.b16 %v1050, %v1047
    %v1081 = vpack.c.b16 %v1054, %v1051
    %v1082 = vpack.c.b16 %v1055, %v1052
    %v1083 = vpack.c.b16 %v1056, %v1053
    %v1084 = vpack.c.b16 %v1060, %v1057
    %v1085 = vpack.c.b16 %v1061, %v1058
    %v1086 = vpack.c.b16 %v1062, %v1059
    %1111 = vmatprep.subr.bf16.mxu0 %v1064
    %1112 = vmatpush1.bf16.msra.mxu0 %v1063
    %1113 = vmatprep.subr.bf16.mxu0 %v1067
    %1114 = vmatpush1.bf16.msra.mxu0 %v1066
    %1115 = vmatprep.subr.bf16.mxu0 %v1070
    %1116 = vmatpush1.bf16.msra.mxu0 %v1069
    %1117 = vmatprep.subr.bf16.mxu0 %v1073
    %1118 = vmatpush1.bf16.msra.mxu0 %v1072
    %1119 = vmatprep.subr.bf16.mxu0 %v1076
    %1120 = vmatpush1.bf16.msra.mxu0 %v1075
    %1121 = vmatprep.subr.bf16.mxu0 %v1079
    %1122 = vmatpush1.bf16.msra.mxu0 %v1078
    %1123 = vmatprep.subr.bf16.mxu0 %v1082
    %1124 = vmatpush1.bf16.msra.mxu0 %v1081
    %1125 = vmatprep.subr.bf16.mxu0 %v1085
    %1126 = vmatpush1.bf16.msra.mxu0 %v1084
    %1127 = vmatprep.subr.bf16.mxu0 0
    %1128 = vmatpush1.bf16.msra.mxu0 0
    %1129 = vmatprep.subr.bf16.mxu0 0
    %1130 = vmatpush1.bf16.msra.mxu0 0
    %1131 = vmatprep.subr.bf16.mxu0 0
    %1132 = vmatpush1.bf16.msra.mxu0 0
    %1133 = vmatprep.subr.bf16.mxu0 0
    %1134 = vmatpush1.bf16.msra.mxu0 0
    %1135 = vmatprep.subr.bf16.mxu0 0
    %1136 = vmatpush1.bf16.msra.mxu0 0
    %1137 = vmatprep.subr.bf16.mxu0 0
    %1138 = vmatpush1.bf16.msra.mxu0 0
    %1139 = vmatprep.subr.bf16.mxu0 0
    %1140 = vmatpush1.bf16.msra.mxu0 0
    %1141 = vmatprep.subr.bf16.mxu0 0
    %1142 = vmatpush1.bf16.msra.mxu0 0
    %1143 = vmatprep.mubr.bf16.mxu0 0
    %1144 = vmatmul.mubr.bf16.gmra.mrb[0].mxu0 %v966
    %v1145 = vpop.f32.mrb[0].mxu0
    %v1146 = vadd.f32 %v971, %v1145
    %v1147 = vpop.f32.mrb[0].mxu0
    %v1148 = vadd.f32 %v975, %v1147
    %v1149 = vpop.f32.mrb[0].mxu0
    %v1150 = vpop.f32.mrb[0].mxu0
    %1151 = vdwg.mxu0
    %1152 = vmatprep.subr.bf16.mxu0 0
    %1153 = vmatpush1.bf16.msra.mxu0 %v1065
    %1154 = vmatprep.subr.bf16.mxu0 0
    %1155 = vmatpush1.bf16.msra.mxu0 %v1068
    %1156 = vmatprep.subr.bf16.mxu0 0
    %1157 = vmatpush1.bf16.msra.mxu0 %v1071
    %1158 = vmatprep.subr.bf16.mxu0 0
    %1159 = vmatpush1.bf16.msra.mxu0 %v1074
    %1160 = vmatprep.subr.bf16.mxu0 0
    %1161 = vmatpush1.bf16.msra.mxu0 %v1077
    %1162 = vmatprep.subr.bf16.mxu0 0
    %1163 = vmatpush1.bf16.msra.mxu0 %v1080
    %1164 = vmatprep.subr.bf16.mxu0 0
    %1165 = vmatpush1.bf16.msra.mxu0 %v1083
    %1166 = vmatprep.subr.bf16.mxu0 0
    %1167 = vmatpush1.bf16.msra.mxu0 %v1086
    %1168 = vmatprep.subr.bf16.mxu0 0
    %1169 = vmatpush1.bf16.msra.mxu0 0
    %1170 = vmatprep.subr.bf16.mxu0 0
    %1171 = vmatpush1.bf16.msra.mxu0 0
    %1172 = vmatprep.subr.bf16.mxu0 0
    %1173 = vmatpush1.bf16.msra.mxu0 0
    %1174 = vmatprep.subr.bf16.mxu0 0
    %1175 = vmatpush1.bf16.msra.mxu0 0
    %1176 = vmatprep.subr.bf16.mxu0 0
    %1177 = vmatpush1.bf16.msra.mxu0 0
    %1178 = vmatprep.subr.bf16.mxu0 0
    %1179 = vmatpush1.bf16.msra.mxu0 0
    %1180 = vmatprep.subr.bf16.mxu0 0
    %1181 = vmatpush1.bf16.msra.mxu0 0
    %1182 = vmatprep.subr.bf16.mxu0 0
    %1183 = vmatpush1.bf16.msra.mxu0 0
    %1184 = vmatprep.mubr.bf16.mxu0 0
    %1185 = vmatmul.mubr.bf16.gmra.mrb[0].mxu0 %v966
    %v1186 = vpop.f32.mrb[0].mxu0
    %v1187 = vadd.f32 %v979, %v1186
    %v1188 = vpop.f32.mrb[0].mxu0
    %v1189 = vpop.f32.mrb[0].mxu0
    %v1190 = vpop.f32.mrb[0].mxu0
    %1191 = vdwg.mxu0
    %v1192 = vpack.c.bf16 %v952, %v952
    %v1194 = vlaneseq
    %v1195 = vshrl.u32 %v1194, 7
    %v1196 = vsub.s32 0, %v1195
    %v1197 = vrot.slane %v944, %v1196
    %v1198 = vlaneseq
    %v1199 = vshrl.u32 %v1198, 7
    %v1200 = vsub.s32 1, %v1199
    %v1201 = vrot.slane %v944, %v1200
    %v1202 = vlaneseq
    %v1203 = vshrl.u32 %v1202, 7
    %v1204 = vsub.s32 2, %v1203
    %v1205 = vrot.slane %v944, %v1204
    %v1241 = vunpack.c.l.b16 %v911
    %v1242 = vunpack.c.h.b16 %v911
    %v1243 = vunpack.c.l.b16 %v912
    %v1244 = vunpack.c.l.b16 %v913
    %v1245 = vunpack.c.h.b16 %v913
    %v1246 = vunpack.c.l.b16 %v914
    %v1247 = vunpack.c.l.b16 %v915
    %v1248 = vunpack.c.h.b16 %v915
    %v1249 = vunpack.c.l.b16 %v916
    %v1250 = vunpack.c.l.b16 %v917
    %v1251 = vunpack.c.h.b16 %v917
    %v1252 = vunpack.c.l.b16 %v918
    %v1253 = vunpack.c.l.b16 %v919
    %v1254 = vunpack.c.h.b16 %v919
    %v1255 = vunpack.c.l.b16 %v920
    %v1256 = vunpack.c.l.b16 %v921
    %v1257 = vunpack.c.h.b16 %v921
    %v1258 = vunpack.c.l.b16 %v922
    %v1259 = vunpack.c.l.b16 %v923
    %v1260 = vunpack.c.h.b16 %v923
    %v1261 = vunpack.c.l.b16 %v924
    %v1262 = vunpack.c.l.b16 %v925
    %v1263 = vunpack.c.h.b16 %v925
    %v1264 = vunpack.c.l.b16 %v926
    %v1265 = vunpack.c.l.b16 %v927
    %v1266 = vunpack.c.h.b16 %v927
    %v1267 = vunpack.c.l.b16 %v928
    %v1268 = vunpack.c.l.b16 %v929
    %v1269 = vunpack.c.h.b16 %v929
    %v1270 = vunpack.c.l.b16 %v930
    %v1271 = vunpack.c.l.b16 %v931
    %v1272 = vunpack.c.h.b16 %v931
    %v1273 = vunpack.c.l.b16 %v932
    %v1274 = vunpack.c.l.b16 %v933
    %v1275 = vunpack.c.h.b16 %v933
    %v1276 = vunpack.c.l.b16 %v934
    %v1277 = vunpack.c.l.b16 %v935
    %v1278 = vunpack.c.h.b16 %v935
    %v1279 = vunpack.c.l.b16 %v936
    %v1280 = vunpack.c.l.b16 %v937
    %v1281 = vunpack.c.h.b16 %v937
    %v1282 = vunpack.c.l.b16 %v938
    %v1283 = vunpack.c.l.b16 %v939
    %v1284 = vunpack.c.h.b16 %v939
    %v1285 = vunpack.c.l.b16 %v940
    %v1286 = vunpack.c.l.b16 %v941
    %v1287 = vunpack.c.h.b16 %v941
    %v1288 = vunpack.c.l.b16 %v942
    %v1289 = vpack.c.b16 %v1244, %v1241
    %v1290 = vpack.c.b16 %v1245, %v1242
    %v1291 = vpack.c.b16 %v1246, %v1243
    %v1292 = vpack.c.b16 %v1250, %v1247
    %v1293 = vpack.c.b16 %v1251, %v1248
    %v1294 = vpack.c.b16 %v1252, %v1249
    %v1295 = vpack.c.b16 %v1256, %v1253
    %v1296 = vpack.c.b16 %v1257, %v1254
    %v1297 = vpack.c.b16 %v1258, %v1255
    %v1298 = vpack.c.b16 %v1262, %v1259
    %v1299 = vpack.c.b16 %v1263, %v1260
    %v1300 = vpack.c.b16 %v1264, %v1261
    %v1301 = vpack.c.b16 %v1268, %v1265
    %v1302 = vpack.c.b16 %v1269, %v1266
    %v1303 = vpack.c.b16 %v1270, %v1267
    %v1304 = vpack.c.b16 %v1274, %v1271
    %v1305 = vpack.c.b16 %v1275, %v1272
    %v1306 = vpack.c.b16 %v1276, %v1273
    %v1307 = vpack.c.b16 %v1280, %v1277
    %v1308 = vpack.c.b16 %v1281, %v1278
    %v1309 = vpack.c.b16 %v1282, %v1279
    %v1310 = vpack.c.b16 %v1286, %v1283
    %v1311 = vpack.c.b16 %v1287, %v1284
    %v1312 = vpack.c.b16 %v1288, %v1285
    %1337 = vmatprep.subr.bf16.mxu0 %v1290
    %1338 = vmatpush1.bf16.msra.mxu0 %v1289
    %1339 = vmatprep.subr.bf16.mxu0 %v1293
    %1340 = vmatpush1.bf16.msra.mxu0 %v1292
    %1341 = vmatprep.subr.bf16.mxu0 %v1296
    %1342 = vmatpush1.bf16.msra.mxu0 %v1295
    %1343 = vmatprep.subr.bf16.mxu0 %v1299
    %1344 = vmatpush1.bf16.msra.mxu0 %v1298
    %1345 = vmatprep.subr.bf16.mxu0 %v1302
    %1346 = vmatpush1.bf16.msra.mxu0 %v1301
    %1347 = vmatprep.subr.bf16.mxu0 %v1305
    %1348 = vmatpush1.bf16.msra.mxu0 %v1304
    %1349 = vmatprep.subr.bf16.mxu0 %v1308
    %1350 = vmatpush1.bf16.msra.mxu0 %v1307
    %1351 = vmatprep.subr.bf16.mxu0 %v1311
    %1352 = vmatpush1.bf16.msra.mxu0 %v1310
    %1353 = vmatprep.subr.bf16.mxu0 0
    %1354 = vmatpush1.bf16.msra.mxu0 0
    %1355 = vmatprep.subr.bf16.mxu0 0
    %1356 = vmatpush1.bf16.msra.mxu0 0
    %1357 = vmatprep.subr.bf16.mxu0 0
    %1358 = vmatpush1.bf16.msra.mxu0 0
    %1359 = vmatprep.subr.bf16.mxu0 0
    %1360 = vmatpush1.bf16.msra.mxu0 0
    %1361 = vmatprep.subr.bf16.mxu0 0
    %1362 = vmatpush1.bf16.msra.mxu0 0
    %1363 = vmatprep.subr.bf16.mxu0 0
    %1364 = vmatpush1.bf16.msra.mxu0 0
    %1365 = vmatprep.subr.bf16.mxu0 0
    %1366 = vmatpush1.bf16.msra.mxu0 0
    %1367 = vmatprep.subr.bf16.mxu0 0
    %1368 = vmatpush1.bf16.msra.mxu0 0
    %1369 = vmatprep.mubr.bf16.mxu0 0
    %1370 = vmatmul.mubr.bf16.gmra.mrb[0].mxu0 %v1192
    %v1371 = vpop.f32.mrb[0].mxu0
    %v1372 = vadd.f32 %v1197, %v1371
    %v1373 = vpop.f32.mrb[0].mxu0
    %v1374 = vadd.f32 %v1201, %v1373
    %v1375 = vpop.f32.mrb[0].mxu0
    %v1376 = vpop.f32.mrb[0].mxu0
    %1377 = vdwg.mxu0
    %1378 = vmatprep.subr.bf16.mxu0 0
    %1379 = vmatpush1.bf16.msra.mxu0 %v1291
    %1380 = vmatprep.subr.bf16.mxu0 0
    %1381 = vmatpush1.bf16.msra.mxu0 %v1294
    %1382 = vmatprep.subr.bf16.mxu0 0
    %1383 = vmatpush1.bf16.msra.mxu0 %v1297
    %1384 = vmatprep.subr.bf16.mxu0 0
    %1385 = vmatpush1.bf16.msra.mxu0 %v1300
    %1386 = vmatprep.subr.bf16.mxu0 0
    %1387 = vmatpush1.bf16.msra.mxu0 %v1303
    %1388 = vmatprep.subr.bf16.mxu0 0
    %1389 = vmatpush1.bf16.msra.mxu0 %v1306
    %1390 = vmatprep.subr.bf16.mxu0 0
    %1391 = vmatpush1.bf16.msra.mxu0 %v1309
    %1392 = vmatprep.subr.bf16.mxu0 0
    %1393 = vmatpush1.bf16.msra.mxu0 %v1312
    %1394 = vmatprep.subr.bf16.mxu0 0
    %1395 = vmatpush1.bf16.msra.mxu0 0
    %1396 = vmatprep.subr.bf16.mxu0 0
    %1397 = vmatpush1.bf16.msra.mxu0 0
    %1398 = vmatprep.subr.bf16.mxu0 0
    %1399 = vmatpush1.bf16.msra.mxu0 0
    %1400 = vmatprep.subr.bf16.mxu0 0
    %1401 = vmatpush1.bf16.msra.mxu0 0
    %1402 = vmatprep.subr.bf16.mxu0 0
    %1403 = vmatpush1.bf16.msra.mxu0 0
    %1404 = vmatprep.subr.bf16.mxu0 0
    %1405 = vmatpush1.bf16.msra.mxu0 0
    %1406 = vmatprep.subr.bf16.mxu0 0
    %1407 = vmatpush1.bf16.msra.mxu0 0
    %1408 = vmatprep.subr.bf16.mxu0 0
    %1409 = vmatpush1.bf16.msra.mxu0 0
    %1410 = vmatprep.mubr.bf16.mxu0 0
    %1411 = vmatmul.mubr.bf16.gmra.mrb[0].mxu0 %v1192
    %v1412 = vpop.f32.mrb[0].mxu0
    %v1413 = vadd.f32 %v1205, %v1412
    %v1414 = vpop.f32.mrb[0].mxu0
    %v1415 = vpop.f32.mrb[0].mxu0
    %v1416 = vpop.f32.mrb[0].mxu0
    %1417 = vdwg.mxu0
    %v1418 = vadd.f32 %v956, %v1146
    %v1419 = vxor.u32 %v1418, 2147483648
    %v1420 = vmul.f32 %v1419, 1.442695
    %v1421 = vpow.pop %v1420
    %v1422 = vadd.f32 %v1421, 1.0
    %v1423 = vrcp.pop %v1422
    %v1424 = vmul.f32 1.0, %v1423
    %v1425 = vadd.f32 %v957, %v1148
    %v1426 = vxor.u32 %v1425, 2147483648
    %v1427 = vmul.f32 %v1426, 1.442695
    %v1428 = vpow.pop %v1427
    %v1429 = vadd.f32 %v1428, 1.0
    %v1430 = vrcp.pop %v1429
    %v1431 = vmul.f32 1.0, %v1430
    %v1432 = vmul.f32 %v1424, %v1187
    %v1433 = vadd.f32 %v958, %v1432
    %v1434 = vtanh.pop %v1433
    %v1435 = vsub.f32 1.0, %v1431
    %v1436 = vmul.f32 %v1435, %v1434
    %v1437 = vmul.f32 %v1431, %v951
    %v1438 = vadd.f32 %v1436, %v1437
    %v1439 = vadd.f32 %v963, %v1372
    %v1440 = vxor.u32 %v1439, 2147483648
    %v1441 = vmul.f32 %v1440, 1.442695
    %v1442 = vpow.pop %v1441
    %v1443 = vadd.f32 %v1442, 1.0
    %v1444 = vrcp.pop %v1443
    %v1445 = vmul.f32 1.0, %v1444
    %v1446 = vadd.f32 %v964, %v1374
    %v1447 = vxor.u32 %v1446, 2147483648
    %v1448 = vmul.f32 %v1447, 1.442695
    %v1449 = vpow.pop %v1448
    %v1450 = vadd.f32 %v1449, 1.0
    %v1451 = vrcp.pop %v1450
    %v1452 = vmul.f32 1.0, %v1451
    %v1453 = vmul.f32 %v1445, %v1413
    %v1454 = vadd.f32 %v965, %v1453
    %v1455 = vtanh.pop %v1454
    %v1456 = vsub.f32 1.0, %v1452
    %v1457 = vmul.f32 %v1456, %v1455
    %v1458 = vmul.f32 %v1452, %v952
    %v1459 = vadd.f32 %v1457, %v1458
    %v1460 = vpack.c.bf16 %v1438, %v1438
    %s1461 = smul.addr %s946, 4
    %s1462 = scalar_lea.vmem %s11, %s1461
    %1463 = vst [vmem:[%s1462] sm:$0xf] %v1460
    %v1464 = vpack.c.bf16 %v1459, %v1459
    %s1465 = smul.addr %s959, 4
    %s1466 = scalar_lea.vmem %s12, %s1465
    %1467 = vst [vmem:[%s1466] sm:$0xf] %v1464
  $region50: #{wrnn_forward.3} parent=0 // loop_footer
    %s950 = sadd.s32 1, %s946
  $region51: #{wrnn_forward.3} parent=0 // loop_footer_branch
    %945 = sbr.rel target = $region47
  $region52: #{wrnn_forward.3} parent=0 // loop_exit
    _
  // Predicated region
  $region53: #{wrnn_forward.3} parent=0 // pred_check
    _
  $region54: #{wrnn_forward.3} parent=0 // pred_check_branch
    %1469 = sbr.rel (0) target = $region56
  $region55: #{wrnn_forward.3} parent=0 // pred_region
    _
  $region56: #{wrnn_forward.3} parent=0 // pred_fallthru
    _
  // Predicated region
  $region57: #{wrnn_forward.3} parent=0 // pred_check
    _
  $region58: #{wrnn_forward.3} parent=0 // pred_check_branch
    %1471 = sbr.rel (0) target = $region60
  $region59: #{wrnn_forward.3} parent=0 // pred_region
    _
  $region60: #{wrnn_forward.3} parent=0 // pred_fallthru
    _
  // Predicated region
  $region61: #{wrnn_forward.3} parent=0 // pred_check
    _
  $region62: #{wrnn_forward.3} parent=0 // pred_check_branch
    %1473 = sbr.rel (0) target = $region64
  $region63: #{wrnn_forward.3} parent=0 // pred_region
    _
  $region64: #{wrnn_forward.3} parent=0 // pred_fallthru
    _
  // Predicated region
  $region65: #{wrnn_forward.3} parent=0 // pred_check
    _
  $region66: #{wrnn_forward.3} parent=0 // pred_check_branch
    %1475 = sbr.rel (0) target = $region68
  $region67: #{wrnn_forward.3} parent=0 // pred_region
    _
  $region68: #{wrnn_forward.3} parent=0 // pred_fallthru
    _

// kernel: wrnn_forward.4
$region0: #{wrnn_forward.4}
  #allocation0 [shape = 'u32[]', space=smem, size = 0x4, offset = 0x4, fixed_abs, tag = 'smem constant byte address 0x4 - core index']
  #allocation1 [shape = 'u32[144,128]{1,0:T(1,128)}', space=vmem, size = 0x12000, scoped, tag = 'internal scratch']
  #allocation2 [shape = 'f32[8,8,384]{2,1,0:T(8,128)}', space=vmem, size = 0x18000, scoped, tag = 'scratch operand']
  #allocation3 [shape = 'f32[8,8,384]{2,1,0:T(8,128)}', space=vmem, size = 0x18000, scoped, tag = 'scratch operand']
  %s0 = inlined_call_operand.vmem [shape: bf16[8,8,128], index: 0, kind: input, shape index: {}]
  %s1 = inlined_call_operand.vmem [shape: bf16[8,8,128], index: 1, kind: input, shape index: {}]
  %s2 = inlined_call_operand.vmem [shape: bf16[256,384], index: 2, kind: input, shape index: {}]
  %s3 = inlined_call_operand.vmem [shape: f32[1,384], index: 3, kind: input, shape index: {}]
  %s4 = inlined_call_operand.vmem [shape: bf16[256,384], index: 4, kind: input, shape index: {}]
  %s5 = inlined_call_operand.vmem [shape: f32[1,384], index: 5, kind: input, shape index: {}]
  %s6 = inlined_call_operand.vmem [shape: bf16[128,384], index: 6, kind: input, shape index: {}]
  %s7 = inlined_call_operand.vmem [shape: bf16[128,384], index: 7, kind: input, shape index: {}]
  %s8 = inlined_call_operand.vmem [shape: f32[1,384], index: 8, kind: input, shape index: {}]
  %s9 = inlined_call_operand.vmem [shape: f32[1,384], index: 9, kind: input, shape index: {}]
  %s10 = inlined_call_operand.vmem [shape: bf16[8,8,128], index: 10, kind: output, shape index: {0}]
  %s11 = inlined_call_operand.vmem [shape: bf16[8,8,128], index: 11, kind: output, shape index: {1}]
  %12 = xla_tuple %s10, %s11
  %s13 = sld [smem:[#allocation0]]
  $region65: #{wrnn_forward.4} parent=0
    _
  %s15 = ssub.s32 1, %s13
  %s16 = scalar_select 0, %s15, %s13
  // Predicated region
  $region2: #{wrnn_forward.4} parent=0 // pred_check
    _
  $region3: #{wrnn_forward.4} parent=0 // pred_check_branch
    %18 = sbr.rel (0) target = $region5
  $region4: #{wrnn_forward.4} parent=0 // pred_region
    _
  $region5: #{wrnn_forward.4} parent=0 // pred_fallthru
    _
  // Predicated region
  $region6: #{wrnn_forward.4} parent=0 // pred_check
    _
  $region7: #{wrnn_forward.4} parent=0 // pred_check_branch
    %20 = sbr.rel (0) target = $region9
  $region8: #{wrnn_forward.4} parent=0 // pred_region
    _
  $region9: #{wrnn_forward.4} parent=0 // pred_fallthru
    _
  // Predicated region
  $region10: #{wrnn_forward.4} parent=0 // pred_check
    _
  $region11: #{wrnn_forward.4} parent=0 // pred_check_branch
    %22 = sbr.rel (0) target = $region13
  $region12: #{wrnn_forward.4} parent=0 // pred_region
    _
  $region13: #{wrnn_forward.4} parent=0 // pred_fallthru
    _
  // Predicated region
  $region14: #{wrnn_forward.4} parent=0 // pred_check
    _
  $region15: #{wrnn_forward.4} parent=0 // pred_check_branch
    %24 = sbr.rel (0) target = $region17
  $region16: #{wrnn_forward.4} parent=0 // pred_region
    _
  $region17: #{wrnn_forward.4} parent=0 // pred_fallthru
    _
  // Predicated region
  $region18: #{wrnn_forward.4} parent=0 // pred_check
    _
  $region19: #{wrnn_forward.4} parent=0 // pred_check_branch
    %26 = sbr.rel (0) target = $region21
  $region20: #{wrnn_forward.4} parent=0 // pred_region
    _
  $region21: #{wrnn_forward.4} parent=0 // pred_fallthru
    _
  // Predicated region
  $region22: #{wrnn_forward.4} parent=0 // pred_check
    _
  $region23: #{wrnn_forward.4} parent=0 // pred_check_branch
    %28 = sbr.rel (0) target = $region25
  $region24: #{wrnn_forward.4} parent=0 // pred_region
    _
  $region25: #{wrnn_forward.4} parent=0 // pred_fallthru
    _
  // Predicated region
  $region26: #{wrnn_forward.4} parent=0 // pred_check
    _
  $region27: #{wrnn_forward.4} parent=0 // pred_check_branch
    %30 = sbr.rel (0) target = $region29
  $region28: #{wrnn_forward.4} parent=0 // pred_region
    _
  $region29: #{wrnn_forward.4} parent=0 // pred_fallthru
    _
  // Predicated region
  $region30: #{wrnn_forward.4} parent=0 // pred_check
    _
  $region31: #{wrnn_forward.4} parent=0 // pred_check_branch
    %32 = sbr.rel (0) target = $region33
  $region32: #{wrnn_forward.4} parent=0 // pred_region
    _
  $region33: #{wrnn_forward.4} parent=0 // pred_fallthru
    _
  // Predicated region
  $region34: #{wrnn_forward.4} parent=0 // pred_check
    _
  $region35: #{wrnn_forward.4} parent=0 // pred_check_branch
    %34 = sbr.rel (0) target = $region37
  $region36: #{wrnn_forward.4} parent=0 // pred_region
    _
  $region37: #{wrnn_forward.4} parent=0 // pred_fallthru
    _
  // Predicated region
  $region38: #{wrnn_forward.4} parent=0 // pred_check
    _
  $region39: #{wrnn_forward.4} parent=0 // pred_check_branch
    %36 = sbr.rel (0) target = $region41
  $region40: #{wrnn_forward.4} parent=0 // pred_region
    _
  $region41: #{wrnn_forward.4} parent=0 // pred_fallthru
    _
  %v38 = vld [vmem:[%s0] sm:$0xf]
  %v39 = vld [vmem:[%s0 + $0x4] sm:$0xf]
  %v40 = vld [vmem:[%s0 + $0x8] sm:$0xf]
  %v41 = vld [vmem:[%s0 + $0xc] sm:$0xf]
  %v42 = vld [vmem:[%s0 + $0x10] sm:$0xf]
  %v43 = vld [vmem:[%s0 + $0x14] sm:$0xf]
  %v44 = vld [vmem:[%s0 + $0x18] sm:$0xf]
  %v45 = vld [vmem:[%s0 + $0x1c] sm:$0xf]
  %v46 = vld [vmem:[%s1] sm:$0xf]
  %v47 = vld [vmem:[%s1 + $0x4] sm:$0xf]
  %v48 = vld [vmem:[%s1 + $0x8] sm:$0xf]
  %v49 = vld [vmem:[%s1 + $0xc] sm:$0xf]
  %v50 = vld [vmem:[%s1 + $0x10] sm:$0xf]
  %v51 = vld [vmem:[%s1 + $0x14] sm:$0xf]
  %v52 = vld [vmem:[%s1 + $0x18] sm:$0xf]
  %v53 = vld [vmem:[%s1 + $0x1c] sm:$0xf]
  %v54 = vld [vmem:[%s2] sm:$0xff]
  %v55 = vld [vmem:[%s2 + $0x8] sm:$0xf]
  %v56 = vld [vmem:[%s2 + $0xc] sm:$0xff]
  %v57 = vld [vmem:[%s2 + $0x14] sm:$0xf]
  %v58 = vld [vmem:[%s2 + $0x18] sm:$0xff]
  %v59 = vld [vmem:[%s2 + $0x20] sm:$0xf]
  %v60 = vld [vmem:[%s2 + $0x24] sm:$0xff]
  %v61 = vld [vmem:[%s2 + $0x2c] sm:$0xf]
  %v62 = vld [vmem:[%s2 + $0x30] sm:$0xff]
  %v63 = vld [vmem:[%s2 + $0x38] sm:$0xf]
  %v64 = vld [vmem:[%s2 + $0x3c] sm:$0xff]
  %v65 = vld [vmem:[%s2 + $0x44] sm:$0xf]
  %v66 = vld [vmem:[%s2 + $0x48] sm:$0xff]
  %v67 = vld [vmem:[%s2 + $0x50] sm:$0xf]
  %v68 = vld [vmem:[%s2 + $0x54] sm:$0xff]
  %v69 = vld [vmem:[%s2 + $0x5c] sm:$0xf]
  %v70 = vld [vmem:[%s2 + $0x60] sm:$0xff]
  %v71 = vld [vmem:[%s2 + $0x68] sm:$0xf]
  %v72 = vld [vmem:[%s2 + $0x6c] sm:$0xff]
  %v73 = vld [vmem:[%s2 + $0x74] sm:$0xf]
  %v74 = vld [vmem:[%s2 + $0x78] sm:$0xff]
  %v75 = vld [vmem:[%s2 + $0x80] sm:$0xf]
  %v76 = vld [vmem:[%s2 + $0x84] sm:$0xff]
  %v77 = vld [vmem:[%s2 + $0x8c] sm:$0xf]
  %v78 = vld [vmem:[%s2 + $0x90] sm:$0xff]
  %v79 = vld [vmem:[%s2 + $0x98] sm:$0xf]
  %v80 = vld [vmem:[%s2 + $0x9c] sm:$0xff]
  %v81 = vld [vmem:[%s2 + $0xa4] sm:$0xf]
  %v82 = vld [vmem:[%s2 + $0xa8] sm:$0xff]
  %v83 = vld [vmem:[%s2 + $0xb0] sm:$0xf]
  %v84 = vld [vmem:[%s2 + $0xb4] sm:$0xff]
  %v85 = vld [vmem:[%s2 + $0xbc] sm:$0xf]
  %v86 = vld [vmem:[%s2 + $0xc0] sm:$0xff]
  %v87 = vld [vmem:[%s2 + $0xc8] sm:$0xf]
  %v88 = vld [vmem:[%s2 + $0xcc] sm:$0xff]
  %v89 = vld [vmem:[%s2 + $0xd4] sm:$0xf]
  %v90 = vld [vmem:[%s2 + $0xd8] sm:$0xff]
  %v91 = vld [vmem:[%s2 + $0xe0] sm:$0xf]
  %v92 = vld [vmem:[%s2 + $0xe4] sm:$0xff]
  %v93 = vld [vmem:[%s2 + $0xec] sm:$0xf]
  %v94 = vld [vmem:[%s2 + $0xf0] sm:$0xff]
  %v95 = vld [vmem:[%s2 + $0xf8] sm:$0xf]
  %v96 = vld [vmem:[%s2 + $0xfc] sm:$0xff]
  %v97 = vld [vmem:[%s2 + $0x104] sm:$0xf]
  %v98 = vld [vmem:[%s2 + $0x108] sm:$0xff]
  %v99 = vld [vmem:[%s2 + $0x110] sm:$0xf]
  %v100 = vld [vmem:[%s2 + $0x114] sm:$0xff]
  %v101 = vld [vmem:[%s2 + $0x11c] sm:$0xf]
  %v102 = vld [vmem:[%s2 + $0x120] sm:$0xff]
  %v103 = vld [vmem:[%s2 + $0x128] sm:$0xf]
  %v104 = vld [vmem:[%s2 + $0x12c] sm:$0xff]
  %v105 = vld [vmem:[%s2 + $0x134] sm:$0xf]
  %v106 = vld [vmem:[%s2 + $0x138] sm:$0xff]
  %v107 = vld [vmem:[%s2 + $0x140] sm:$0xf]
  %v108 = vld [vmem:[%s2 + $0x144] sm:$0xff]
  %v109 = vld [vmem:[%s2 + $0x14c] sm:$0xf]
  %v110 = vld [vmem:[%s2 + $0x150] sm:$0xff]
  %v111 = vld [vmem:[%s2 + $0x158] sm:$0xf]
  %v112 = vld [vmem:[%s2 + $0x15c] sm:$0xff]
  %v113 = vld [vmem:[%s2 + $0x164] sm:$0xf]
  %v114 = vld [vmem:[%s2 + $0x168] sm:$0xff]
  %v115 = vld [vmem:[%s2 + $0x170] sm:$0xf]
  %v116 = vld [vmem:[%s2 + $0x174] sm:$0xff]
  %v117 = vld [vmem:[%s2 + $0x17c] sm:$0xf]
  %v118 = vld [vmem:[%s4] sm:$0xff]
  %v119 = vld [vmem:[%s4 + $0x8] sm:$0xf]
  %v120 = vld [vmem:[%s4 + $0xc] sm:$0xff]
  %v121 = vld [vmem:[%s4 + $0x14] sm:$0xf]
  %v122 = vld [vmem:[%s4 + $0x18] sm:$0xff]
  %v123 = vld [vmem:[%s4 + $0x20] sm:$0xf]
  %v124 = vld [vmem:[%s4 + $0x24] sm:$0xff]
  %v125 = vld [vmem:[%s4 + $0x2c] sm:$0xf]
  %v126 = vld [vmem:[%s4 + $0x30] sm:$0xff]
  %v127 = vld [vmem:[%s4 + $0x38] sm:$0xf]
  %v128 = vld [vmem:[%s4 + $0x3c] sm:$0xff]
  %v129 = vld [vmem:[%s4 + $0x44] sm:$0xf]
  %v130 = vld [vmem:[%s4 + $0x48] sm:$0xff]
  %v131 = vld [vmem:[%s4 + $0x50] sm:$0xf]
  %v132 = vld [vmem:[%s4 + $0x54] sm:$0xff]
  %v133 = vld [vmem:[%s4 + $0x5c] sm:$0xf]
  %v134 = vld [vmem:[%s4 + $0x60] sm:$0xff]
  %v135 = vld [vmem:[%s4 + $0x68] sm:$0xf]
  %v136 = vld [vmem:[%s4 + $0x6c] sm:$0xff]
  %v137 = vld [vmem:[%s4 + $0x74] sm:$0xf]
  %v138 = vld [vmem:[%s4 + $0x78] sm:$0xff]
  %v139 = vld [vmem:[%s4 + $0x80] sm:$0xf]
  %v140 = vld [vmem:[%s4 + $0x84] sm:$0xff]
  %v141 = vld [vmem:[%s4 + $0x8c] sm:$0xf]
  %v142 = vld [vmem:[%s4 + $0x90] sm:$0xff]
  %v143 = vld [vmem:[%s4 + $0x98] sm:$0xf]
  %v144 = vld [vmem:[%s4 + $0x9c] sm:$0xff]
  %v145 = vld [vmem:[%s4 + $0xa4] sm:$0xf]
  %v146 = vld [vmem:[%s4 + $0xa8] sm:$0xff]
  %v147 = vld [vmem:[%s4 + $0xb0] sm:$0xf]
  %v148 = vld [vmem:[%s4 + $0xb4] sm:$0xff]
  %v149 = vld [vmem:[%s4 + $0xbc] sm:$0xf]
  %v150 = vld [vmem:[%s4 + $0xc0] sm:$0xff]
  %v151 = vld [vmem:[%s4 + $0xc8] sm:$0xf]
  %v152 = vld [vmem:[%s4 + $0xcc] sm:$0xff]
  %v153 = vld [vmem:[%s4 + $0xd4] sm:$0xf]
  %v154 = vld [vmem:[%s4 + $0xd8] sm:$0xff]
  %v155 = vld [vmem:[%s4 + $0xe0] sm:$0xf]
  %v156 = vld [vmem:[%s4 + $0xe4] sm:$0xff]
  %v157 = vld [vmem:[%s4 + $0xec] sm:$0xf]
  %v158 = vld [vmem:[%s4 + $0xf0] sm:$0xff]
  %v159 = vld [vmem:[%s4 + $0xf8] sm:$0xf]
  %v160 = vld [vmem:[%s4 + $0xfc] sm:$0xff]
  %v161 = vld [vmem:[%s4 + $0x104] sm:$0xf]
  %v162 = vld [vmem:[%s4 + $0x108] sm:$0xff]
  %v163 = vld [vmem:[%s4 + $0x110] sm:$0xf]
  %v164 = vld [vmem:[%s4 + $0x114] sm:$0xff]
  %v165 = vld [vmem:[%s4 + $0x11c] sm:$0xf]
  %v166 = vld [vmem:[%s4 + $0x120] sm:$0xff]
  %v167 = vld [vmem:[%s4 + $0x128] sm:$0xf]
  %v168 = vld [vmem:[%s4 + $0x12c] sm:$0xff]
  %v169 = vld [vmem:[%s4 + $0x134] sm:$0xf]
  %v170 = vld [vmem:[%s4 + $0x138] sm:$0xff]
  %v171 = vld [vmem:[%s4 + $0x140] sm:$0xf]
  %v172 = vld [vmem:[%s4 + $0x144] sm:$0xff]
  %v173 = vld [vmem:[%s4 + $0x14c] sm:$0xf]
  %v174 = vld [vmem:[%s4 + $0x150] sm:$0xff]
  %v175 = vld [vmem:[%s4 + $0x158] sm:$0xf]
  %v176 = vld [vmem:[%s4 + $0x15c] sm:$0xff]
  %v177 = vld [vmem:[%s4 + $0x164] sm:$0xf]
  %v178 = vld [vmem:[%s4 + $0x168] sm:$0xff]
  %v179 = vld [vmem:[%s4 + $0x170] sm:$0xf]
  %v180 = vld [vmem:[%s4 + $0x174] sm:$0xff]
  %v181 = vld [vmem:[%s4 + $0x17c] sm:$0xf]
  %v190 = vunpack.c.l.b16 %v46
  %v191 = vunpack.c.l.b16 %v47
  %v192 = vunpack.c.l.b16 %v48
  %v193 = vunpack.c.l.b16 %v49
  %v194 = vunpack.c.l.b16 %v50
  %v195 = vunpack.c.l.b16 %v51
  %v196 = vunpack.c.l.b16 %v52
  %v197 = vunpack.c.l.b16 %v53
  %v198 = vpack.c.b16 %v191, %v190
  %v199 = vpack.c.b16 %v193, %v192
  %v200 = vpack.c.b16 %v195, %v194
  %v201 = vpack.c.b16 %v197, %v196
  %v238 = vunpack.c.l.b16 %v86
  %v239 = vunpack.c.h.b16 %v86
  %v240 = vunpack.c.l.b16 %v87
  %v241 = vunpack.c.l.b16 %v88
  %v242 = vunpack.c.h.b16 %v88
  %v243 = vunpack.c.l.b16 %v89
  %v244 = vunpack.c.l.b16 %v90
  %v245 = vunpack.c.h.b16 %v90
  %v246 = vunpack.c.l.b16 %v91
  %v247 = vunpack.c.l.b16 %v92
  %v248 = vunpack.c.h.b16 %v92
  %v249 = vunpack.c.l.b16 %v93
  %v250 = vunpack.c.l.b16 %v94
  %v251 = vunpack.c.h.b16 %v94
  %v252 = vunpack.c.l.b16 %v95
  %v253 = vunpack.c.l.b16 %v96
  %v254 = vunpack.c.h.b16 %v96
  %v255 = vunpack.c.l.b16 %v97
  %v256 = vunpack.c.l.b16 %v98
  %v257 = vunpack.c.h.b16 %v98
  %v258 = vunpack.c.l.b16 %v99
  %v259 = vunpack.c.l.b16 %v100
  %v260 = vunpack.c.h.b16 %v100
  %v261 = vunpack.c.l.b16 %v101
  %v262 = vunpack.c.l.b16 %v102
  %v263 = vunpack.c.h.b16 %v102
  %v264 = vunpack.c.l.b16 %v103
  %v265 = vunpack.c.l.b16 %v104
  %v266 = vunpack.c.h.b16 %v104
  %v267 = vunpack.c.l.b16 %v105
  %v268 = vunpack.c.l.b16 %v106
  %v269 = vunpack.c.h.b16 %v106
  %v270 = vunpack.c.l.b16 %v107
  %v271 = vunpack.c.l.b16 %v108
  %v272 = vunpack.c.h.b16 %v108
  %v273 = vunpack.c.l.b16 %v109
  %v274 = vunpack.c.l.b16 %v110
  %v275 = vunpack.c.h.b16 %v110
  %v276 = vunpack.c.l.b16 %v111
  %v277 = vunpack.c.l.b16 %v112
  %v278 = vunpack.c.h.b16 %v112
  %v279 = vunpack.c.l.b16 %v113
  %v280 = vunpack.c.l.b16 %v114
  %v281 = vunpack.c.h.b16 %v114
  %v282 = vunpack.c.l.b16 %v115
  %v283 = vunpack.c.l.b16 %v116
  %v284 = vunpack.c.h.b16 %v116
  %v285 = vunpack.c.l.b16 %v117
  %v286 = vpack.c.b16 %v241, %v238
  %v287 = vpack.c.b16 %v242, %v239
  %v288 = vpack.c.b16 %v243, %v240
  %v289 = vpack.c.b16 %v247, %v244
  %v290 = vpack.c.b16 %v248, %v245
  %v291 = vpack.c.b16 %v249, %v246
  %v292 = vpack.c.b16 %v253, %v250
  %v293 = vpack.c.b16 %v254, %v251
  %v294 = vpack.c.b16 %v255, %v252
  %v295 = vpack.c.b16 %v259, %v256
  %v296 = vpack.c.b16 %v260, %v257
  %v297 = vpack.c.b16 %v261, %v258
  %v298 = vpack.c.b16 %v265, %v262
  %v299 = vpack.c.b16 %v266, %v263
  %v300 = vpack.c.b16 %v267, %v264
  %v301 = vpack.c.b16 %v271, %v268
  %v302 = vpack.c.b16 %v272, %v269
  %v303 = vpack.c.b16 %v273, %v270
  %v304 = vpack.c.b16 %v277, %v274
  %v305 = vpack.c.b16 %v278, %v275
  %v306 = vpack.c.b16 %v279, %v276
  %v307 = vpack.c.b16 %v283, %v280
  %v308 = vpack.c.b16 %v284, %v281
  %v309 = vpack.c.b16 %v285, %v282
  %334 = vmatprep.subr.bf16.mxu0 %v287
  %335 = vmatpush1.bf16.msra.mxu0 %v286
  %336 = vmatprep.subr.bf16.mxu0 %v290
  %337 = vmatpush1.bf16.msra.mxu0 %v289
  %338 = vmatprep.subr.bf16.mxu0 %v293
  %339 = vmatpush1.bf16.msra.mxu0 %v292
  %340 = vmatprep.subr.bf16.mxu0 %v296
  %341 = vmatpush1.bf16.msra.mxu0 %v295
  %342 = vmatprep.subr.bf16.mxu0 %v299
  %343 = vmatpush1.bf16.msra.mxu0 %v298
  %344 = vmatprep.subr.bf16.mxu0 %v302
  %345 = vmatpush1.bf16.msra.mxu0 %v301
  %346 = vmatprep.subr.bf16.mxu0 %v305
  %347 = vmatpush1.bf16.msra.mxu0 %v304
  %348 = vmatprep.subr.bf16.mxu0 %v308
  %349 = vmatpush1.bf16.msra.mxu0 %v307
  %350 = vmatprep.subr.bf16.mxu0 0
  %351 = vmatpush1.bf16.msra.mxu0 0
  %352 = vmatprep.subr.bf16.mxu0 0
  %353 = vmatpush1.bf16.msra.mxu0 0
  %354 = vmatprep.subr.bf16.mxu0 0
  %355 = vmatpush1.bf16.msra.mxu0 0
  %356 = vmatprep.subr.bf16.mxu0 0
  %357 = vmatpush1.bf16.msra.mxu0 0
  %358 = vmatprep.subr.bf16.mxu0 0
  %359 = vmatpush1.bf16.msra.mxu0 0
  %360 = vmatprep.subr.bf16.mxu0 0
  %361 = vmatpush1.bf16.msra.mxu0 0
  %362 = vmatprep.subr.bf16.mxu0 0
  %363 = vmatpush1.bf16.msra.mxu0 0
  %364 = vmatprep.subr.bf16.mxu0 0
  %365 = vmatpush1.bf16.msra.mxu0 0
  %366 = vmatprep.mubr.bf16.mxu0 0
  %367 = vmatmul.mubr.bf16.gmra.mrb[0].mxu0 %v198
  %v368 = vpop.f32.mrb[0].mxu0
  %v369 = vadd.f32 0.0, %v368
  %v370 = vpop.f32.mrb[0].mxu0
  %v371 = vadd.f32 0.0, %v370
  %v372 = vpop.f32.mrb[0].mxu0
  %v373 = vadd.f32 0.0, %v372
  %v374 = vpop.f32.mrb[0].mxu0
  %v375 = vadd.f32 0.0, %v374
  %376 = vmatprep.mubr.bf16.mxu0 0
  %377 = vmatmul.mubr.bf16.gmra.mrb[0].mxu0 %v199
  %v378 = vpop.f32.mrb[0].mxu0
  %v379 = vadd.f32 0.0, %v378
  %v380 = vpop.f32.mrb[0].mxu0
  %v381 = vadd.f32 0.0, %v380
  %v382 = vpop.f32.mrb[0].mxu0
  %v383 = vadd.f32 0.0, %v382
  %v384 = vpop.f32.mrb[0].mxu0
  %v385 = vadd.f32 0.0, %v384
  %386 = vmatprep.mubr.bf16.mxu0 0
  %387 = vmatmul.mubr.bf16.gmra.mrb[0].mxu0 %v200
  %v388 = vpop.f32.mrb[0].mxu0
  %v389 = vadd.f32 0.0, %v388
  %v390 = vpop.f32.mrb[0].mxu0
  %v391 = vadd.f32 0.0, %v390
  %v392 = vpop.f32.mrb[0].mxu0
  %v393 = vadd.f32 0.0, %v392
  %v394 = vpop.f32.mrb[0].mxu0
  %v395 = vadd.f32 0.0, %v394
  %396 = vmatprep.mubr.bf16.mxu0 0
  %397 = vmatmul.mubr.bf16.gmra.mrb[0].mxu0 %v201
  %v398 = vpop.f32.mrb[0].mxu0
  %v399 = vadd.f32 0.0, %v398
  %v400 = vpop.f32.mrb[0].mxu0
  %v401 = vadd.f32 0.0, %v400
  %v402 = vpop.f32.mrb[0].mxu0
  %v403 = vadd.f32 0.0, %v402
  %v404 = vpop.f32.mrb[0].mxu0
  %v405 = vadd.f32 0.0, %v404
  %406 = vdwg.mxu0
  %407 = vmatprep.subr.bf16.mxu0 0
  %408 = vmatpush1.bf16.msra.mxu0 %v288
  %409 = vmatprep.subr.bf16.mxu0 0
  %410 = vmatpush1.bf16.msra.mxu0 %v291
  %411 = vmatprep.subr.bf16.mxu0 0
  %412 = vmatpush1.bf16.msra.mxu0 %v294
  %413 = vmatprep.subr.bf16.mxu0 0
  %414 = vmatpush1.bf16.msra.mxu0 %v297
  %415 = vmatprep.subr.bf16.mxu0 0
  %416 = vmatpush1.bf16.msra.mxu0 %v300
  %417 = vmatprep.subr.bf16.mxu0 0
  %418 = vmatpush1.bf16.msra.mxu0 %v303
  %419 = vmatprep.subr.bf16.mxu0 0
  %420 = vmatpush1.bf16.msra.mxu0 %v306
  %421 = vmatprep.subr.bf16.mxu0 0
  %422 = vmatpush1.bf16.msra.mxu0 %v309
  %423 = vmatprep.subr.bf16.mxu0 0
  %424 = vmatpush1.bf16.msra.mxu0 0
  %425 = vmatprep.subr.bf16.mxu0 0
  %426 = vmatpush1.bf16.msra.mxu0 0
  %427 = vmatprep.subr.bf16.mxu0 0
  %428 = vmatpush1.bf16.msra.mxu0 0
  %429 = vmatprep.subr.bf16.mxu0 0
  %430 = vmatpush1.bf16.msra.mxu0 0
  %431 = vmatprep.subr.bf16.mxu0 0
  %432 = vmatpush1.bf16.msra.mxu0 0
  %433 = vmatprep.subr.bf16.mxu0 0
  %434 = vmatpush1.bf16.msra.mxu0 0
  %435 = vmatprep.subr.bf16.mxu0 0
  %436 = vmatpush1.bf16.msra.mxu0 0
  %437 = vmatprep.subr.bf16.mxu0 0
  %438 = vmatpush1.bf16.msra.mxu0 0
  %439 = vmatprep.mubr.bf16.mxu0 0
  %440 = vmatmul.mubr.bf16.gmra.mrb[0].mxu0 %v198
  %v441 = vpop.f32.mrb[0].mxu0
  %v442 = vadd.f32 0.0, %v441
  %v443 = vpop.f32.mrb[0].mxu0
  %v444 = vpop.f32.mrb[0].mxu0
  %v445 = vadd.f32 0.0, %v444
  %v446 = vpop.f32.mrb[0].mxu0
  %447 = vmatprep.mubr.bf16.mxu0 0
  %448 = vmatmul.mubr.bf16.gmra.mrb[0].mxu0 %v199
  %v449 = vpop.f32.mrb[0].mxu0
  %v450 = vadd.f32 0.0, %v449
  %v451 = vpop.f32.mrb[0].mxu0
  %v452 = vpop.f32.mrb[0].mxu0
  %v453 = vadd.f32 0.0, %v452
  %v454 = vpop.f32.mrb[0].mxu0
  %455 = vmatprep.mubr.bf16.mxu0 0
  %456 = vmatmul.mubr.bf16.gmra.mrb[0].mxu0 %v200
  %v457 = vpop.f32.mrb[0].mxu0
  %v458 = vadd.f32 0.0, %v457
  %v459 = vpop.f32.mrb[0].mxu0
  %v460 = vpop.f32.mrb[0].mxu0
  %v461 = vadd.f32 0.0, %v460
  %v462 = vpop.f32.mrb[0].mxu0
  %463 = vmatprep.mubr.bf16.mxu0 0
  %464 = vmatmul.mubr.bf16.gmra.mrb[0].mxu0 %v201
  %v465 = vpop.f32.mrb[0].mxu0
  %v466 = vadd.f32 0.0, %v465
  %v467 = vpop.f32.mrb[0].mxu0
  %v468 = vpop.f32.mrb[0].mxu0
  %v469 = vadd.f32 0.0, %v468
  %v470 = vpop.f32.mrb[0].mxu0
  %471 = vdwg.mxu0
  %v480 = vunpack.c.l.b16 %v38
  %v481 = vunpack.c.l.b16 %v39
  %v482 = vunpack.c.l.b16 %v40
  %v483 = vunpack.c.l.b16 %v41
  %v484 = vunpack.c.l.b16 %v42
  %v485 = vunpack.c.l.b16 %v43
  %v486 = vunpack.c.l.b16 %v44
  %v487 = vunpack.c.l.b16 %v45
  %v488 = vpack.c.b16 %v481, %v480
  %v489 = vpack.c.b16 %v483, %v482
  %v490 = vpack.c.b16 %v485, %v484
  %v491 = vpack.c.b16 %v487, %v486
  %v528 = vunpack.c.l.b16 %v54
  %v529 = vunpack.c.h.b16 %v54
  %v530 = vunpack.c.l.b16 %v55
  %v531 = vunpack.c.l.b16 %v56
  %v532 = vunpack.c.h.b16 %v56
  %v533 = vunpack.c.l.b16 %v57
  %v534 = vunpack.c.l.b16 %v58
  %v535 = vunpack.c.h.b16 %v58
  %v536 = vunpack.c.l.b16 %v59
  %v537 = vunpack.c.l.b16 %v60
  %v538 = vunpack.c.h.b16 %v60
  %v539 = vunpack.c.l.b16 %v61
  %v540 = vunpack.c.l.b16 %v62
  %v541 = vunpack.c.h.b16 %v62
  %v542 = vunpack.c.l.b16 %v63
  %v543 = vunpack.c.l.b16 %v64
  %v544 = vunpack.c.h.b16 %v64
  %v545 = vunpack.c.l.b16 %v65
  %v546 = vunpack.c.l.b16 %v66
  %v547 = vunpack.c.h.b16 %v66
  %v548 = vunpack.c.l.b16 %v67
  %v549 = vunpack.c.l.b16 %v68
  %v550 = vunpack.c.h.b16 %v68
  %v551 = vunpack.c.l.b16 %v69
  %v552 = vunpack.c.l.b16 %v70
  %v553 = vunpack.c.h.b16 %v70
  %v554 = vunpack.c.l.b16 %v71
  %v555 = vunpack.c.l.b16 %v72
  %v556 = vunpack.c.h.b16 %v72
  %v557 = vunpack.c.l.b16 %v73
  %v558 = vunpack.c.l.b16 %v74
  %v559 = vunpack.c.h.b16 %v74
  %v560 = vunpack.c.l.b16 %v75
  %v561 = vunpack.c.l.b16 %v76
  %v562 = vunpack.c.h.b16 %v76
  %v563 = vunpack.c.l.b16 %v77
  %v564 = vunpack.c.l.b16 %v78
  %v565 = vunpack.c.h.b16 %v78
  %v566 = vunpack.c.l.b16 %v79
  %v567 = vunpack.c.l.b16 %v80
  %v568 = vunpack.c.h.b16 %v80
  %v569 = vunpack.c.l.b16 %v81
  %v570 = vunpack.c.l.b16 %v82
  %v571 = vunpack.c.h.b16 %v82
  %v572 = vunpack.c.l.b16 %v83
  %v573 = vunpack.c.l.b16 %v84
  %v574 = vunpack.c.h.b16 %v84
  %v575 = vunpack.c.l.b16 %v85
  %v576 = vpack.c.b16 %v531, %v528
  %v577 = vpack.c.b16 %v532, %v529
  %v578 = vpack.c.b16 %v533, %v530
  %v579 = vpack.c.b16 %v537, %v534
  %v580 = vpack.c.b16 %v538, %v535
  %v581 = vpack.c.b16 %v539, %v536
  %v582 = vpack.c.b16 %v543, %v540
  %v583 = vpack.c.b16 %v544, %v541
  %v584 = vpack.c.b16 %v545, %v542
  %v585 = vpack.c.b16 %v549, %v546
  %v586 = vpack.c.b16 %v550, %v547
  %v587 = vpack.c.b16 %v551, %v548
  %v588 = vpack.c.b16 %v555, %v552
  %v589 = vpack.c.b16 %v556, %v553
  %v590 = vpack.c.b16 %v557, %v554
  %v591 = vpack.c.b16 %v561, %v558
  %v592 = vpack.c.b16 %v562, %v559
  %v593 = vpack.c.b16 %v563, %v560
  %v594 = vpack.c.b16 %v567, %v564
  %v595 = vpack.c.b16 %v568, %v565
  %v596 = vpack.c.b16 %v569, %v566
  %v597 = vpack.c.b16 %v573, %v570
  %v598 = vpack.c.b16 %v574, %v571
  %v599 = vpack.c.b16 %v575, %v572
  %624 = vmatprep.subr.bf16.mxu0 %v577
  %625 = vmatpush1.bf16.msra.mxu0 %v576
  %626 = vmatprep.subr.bf16.mxu0 %v580
  %627 = vmatpush1.bf16.msra.mxu0 %v579
  %628 = vmatprep.subr.bf16.mxu0 %v583
  %629 = vmatpush1.bf16.msra.mxu0 %v582
  %630 = vmatprep.subr.bf16.mxu0 %v586
  %631 = vmatpush1.bf16.msra.mxu0 %v585
  %632 = vmatprep.subr.bf16.mxu0 %v589
  %633 = vmatpush1.bf16.msra.mxu0 %v588
  %634 = vmatprep.subr.bf16.mxu0 %v592
  %635 = vmatpush1.bf16.msra.mxu0 %v591
  %636 = vmatprep.subr.bf16.mxu0 %v595
  %637 = vmatpush1.bf16.msra.mxu0 %v594
  %638 = vmatprep.subr.bf16.mxu0 %v598
  %639 = vmatpush1.bf16.msra.mxu0 %v597
  %640 = vmatprep.subr.bf16.mxu0 0
  %641 = vmatpush1.bf16.msra.mxu0 0
  %642 = vmatprep.subr.bf16.mxu0 0
  %643 = vmatpush1.bf16.msra.mxu0 0
  %644 = vmatprep.subr.bf16.mxu0 0
  %645 = vmatpush1.bf16.msra.mxu0 0
  %646 = vmatprep.subr.bf16.mxu0 0
  %647 = vmatpush1.bf16.msra.mxu0 0
  %648 = vmatprep.subr.bf16.mxu0 0
  %649 = vmatpush1.bf16.msra.mxu0 0
  %650 = vmatprep.subr.bf16.mxu0 0
  %651 = vmatpush1.bf16.msra.mxu0 0
  %652 = vmatprep.subr.bf16.mxu0 0
  %653 = vmatpush1.bf16.msra.mxu0 0
  %654 = vmatprep.subr.bf16.mxu0 0
  %655 = vmatpush1.bf16.msra.mxu0 0
  %656 = vmatprep.mubr.bf16.mxu0 0
  %657 = vmatmul.mubr.bf16.gmra.mrb[0].mxu0 %v488
  %v658 = vpop.f32.mrb[0].mxu0
  %v659 = vadd.f32 %v369, %v658
  %v660 = vpop.f32.mrb[0].mxu0
  %v661 = vadd.f32 %v371, %v660
  %v662 = vpop.f32.mrb[0].mxu0
  %v663 = vadd.f32 %v373, %v662
  %v664 = vpop.f32.mrb[0].mxu0
  %v665 = vadd.f32 %v375, %v664
  %666 = vmatprep.mubr.bf16.mxu0 0
  %667 = vmatmul.mubr.bf16.gmra.mrb[0].mxu0 %v489
  %v668 = vpop.f32.mrb[0].mxu0
  %v669 = vadd.f32 %v379, %v668
  %v670 = vpop.f32.mrb[0].mxu0
  %v671 = vadd.f32 %v381, %v670
  %v672 = vpop.f32.mrb[0].mxu0
  %v673 = vadd.f32 %v383, %v672
  %v674 = vpop.f32.mrb[0].mxu0
  %v675 = vadd.f32 %v385, %v674
  %676 = vmatprep.mubr.bf16.mxu0 0
  %677 = vmatmul.mubr.bf16.gmra.mrb[0].mxu0 %v490
  %v678 = vpop.f32.mrb[0].mxu0
  %v679 = vadd.f32 %v389, %v678
  %v680 = vpop.f32.mrb[0].mxu0
  %v681 = vadd.f32 %v391, %v680
  %v682 = vpop.f32.mrb[0].mxu0
  %v683 = vadd.f32 %v393, %v682
  %v684 = vpop.f32.mrb[0].mxu0
  %v685 = vadd.f32 %v395, %v684
  %686 = vmatprep.mubr.bf16.mxu0 0
  %687 = vmatmul.mubr.bf16.gmra.mrb[0].mxu0 %v491
  %v688 = vpop.f32.mrb[0].mxu0
  %v689 = vadd.f32 %v399, %v688
  %v690 = vpop.f32.mrb[0].mxu0
  %v691 = vadd.f32 %v401, %v690
  %v692 = vpop.f32.mrb[0].mxu0
  %v693 = vadd.f32 %v403, %v692
  %v694 = vpop.f32.mrb[0].mxu0
  %v695 = vadd.f32 %v405, %v694
  %696 = vdwg.mxu0
  %697 = vmatprep.subr.bf16.mxu0 0
  %698 = vmatpush1.bf16.msra.mxu0 %v578
  %699 = vmatprep.subr.bf16.mxu0 0
  %700 = vmatpush1.bf16.msra.mxu0 %v581
  %701 = vmatprep.subr.bf16.mxu0 0
  %702 = vmatpush1.bf16.msra.mxu0 %v584
  %703 = vmatprep.subr.bf16.mxu0 0
  %704 = vmatpush1.bf16.msra.mxu0 %v587
  %705 = vmatprep.subr.bf16.mxu0 0
  %706 = vmatpush1.bf16.msra.mxu0 %v590
  %707 = vmatprep.subr.bf16.mxu0 0
  %708 = vmatpush1.bf16.msra.mxu0 %v593
  %709 = vmatprep.subr.bf16.mxu0 0
  %710 = vmatpush1.bf16.msra.mxu0 %v596
  %711 = vmatprep.subr.bf16.mxu0 0
  %712 = vmatpush1.bf16.msra.mxu0 %v599
  %713 = vmatprep.subr.bf16.mxu0 0
  %714 = vmatpush1.bf16.msra.mxu0 0
  %715 = vmatprep.subr.bf16.mxu0 0
  %716 = vmatpush1.bf16.msra.mxu0 0
  %717 = vmatprep.subr.bf16.mxu0 0
  %718 = vmatpush1.bf16.msra.mxu0 0
  %719 = vmatprep.subr.bf16.mxu0 0
  %720 = vmatpush1.bf16.msra.mxu0 0
  %721 = vmatprep.subr.bf16.mxu0 0
  %722 = vmatpush1.bf16.msra.mxu0 0
  %723 = vmatprep.subr.bf16.mxu0 0
  %724 = vmatpush1.bf16.msra.mxu0 0
  %725 = vmatprep.subr.bf16.mxu0 0
  %726 = vmatpush1.bf16.msra.mxu0 0
  %727 = vmatprep.subr.bf16.mxu0 0
  %728 = vmatpush1.bf16.msra.mxu0 0
  %729 = vmatprep.mubr.bf16.mxu0 0
  %730 = vmatmul.mubr.bf16.gmra.mrb[0].mxu0 %v488
  %v731 = vpop.f32.mrb[0].mxu0
  %v732 = vadd.f32 %v442, %v731
  %v733 = vpop.f32.mrb[0].mxu0
  %v734 = vpop.f32.mrb[0].mxu0
  %v735 = vadd.f32 %v445, %v734
  %v736 = vpop.f32.mrb[0].mxu0
  %737 = vmatprep.mubr.bf16.mxu0 0
  %738 = vmatmul.mubr.bf16.gmra.mrb[0].mxu0 %v489
  %v739 = vpop.f32.mrb[0].mxu0
  %v740 = vadd.f32 %v450, %v739
  %v741 = vpop.f32.mrb[0].mxu0
  %v742 = vpop.f32.mrb[0].mxu0
  %v743 = vadd.f32 %v453, %v742
  %v744 = vpop.f32.mrb[0].mxu0
  %745 = vmatprep.mubr.bf16.mxu0 0
  %746 = vmatmul.mubr.bf16.gmra.mrb[0].mxu0 %v490
  %v747 = vpop.f32.mrb[0].mxu0
  %v748 = vadd.f32 %v458, %v747
  %v749 = vpop.f32.mrb[0].mxu0
  %v750 = vpop.f32.mrb[0].mxu0
  %v751 = vadd.f32 %v461, %v750
  %v752 = vpop.f32.mrb[0].mxu0
  %753 = vmatprep.mubr.bf16.mxu0 0
  %754 = vmatmul.mubr.bf16.gmra.mrb[0].mxu0 %v491
  %v755 = vpop.f32.mrb[0].mxu0
  %v756 = vadd.f32 %v466, %v755
  %v757 = vpop.f32.mrb[0].mxu0
  %v758 = vpop.f32.mrb[0].mxu0
  %v759 = vadd.f32 %v469, %v758
  %v760 = vpop.f32.mrb[0].mxu0
  %761 = vdwg.mxu0
  %v762 = vld [vmem:[%s3] sm:$0x7]
  %v764 = vlaneseq
  %v765 = vshrl.u32 %v764, 7
  %v766 = vsub.s32 0, %v765
  %v767 = vrot.slane %v762, %v766
  %v768 = vlaneseq
  %v769 = vshrl.u32 %v768, 7
  %v770 = vsub.s32 1, %v769
  %v771 = vrot.slane %v762, %v770
  %v772 = vlaneseq
  %v773 = vshrl.u32 %v772, 7
  %v774 = vsub.s32 2, %v773
  %v775 = vrot.slane %v762, %v774
  %v779 = vadd.f32 %v659, %v767
  %v780 = vadd.f32 %v661, %v771
  %v781 = vadd.f32 %v732, %v775
  %v782 = vadd.f32 %v663, %v767
  %v783 = vadd.f32 %v665, %v771
  %v784 = vadd.f32 %v735, %v775
  %v785 = vadd.f32 %v669, %v767
  %v786 = vadd.f32 %v671, %v771
  %v787 = vadd.f32 %v740, %v775
  %v788 = vadd.f32 %v673, %v767
  %v789 = vadd.f32 %v675, %v771
  %v790 = vadd.f32 %v743, %v775
  %v791 = vadd.f32 %v679, %v767
  %v792 = vadd.f32 %v681, %v771
  %v793 = vadd.f32 %v748, %v775
  %v794 = vadd.f32 %v683, %v767
  %v795 = vadd.f32 %v685, %v771
  %v796 = vadd.f32 %v751, %v775
  %v797 = vadd.f32 %v689, %v767
  %v798 = vadd.f32 %v691, %v771
  %v799 = vadd.f32 %v756, %v775
  %v800 = vadd.f32 %v693, %v767
  %v801 = vadd.f32 %v695, %v771
  %v802 = vadd.f32 %v759, %v775
  %803 = vst [vmem:[#allocation2] sm:$0xff] %v779
  %804 = vst [vmem:[#allocation2 + $0x8] sm:$0xff] %v780
  %805 = vst [vmem:[#allocation2 + $0x10] sm:$0xff] %v781
  %806 = vst [vmem:[#allocation2 + $0x18] sm:$0xff] %v782
  %807 = vst [vmem:[#allocation2 + $0x20] sm:$0xff] %v783
  %808 = vst [vmem:[#allocation2 + $0x28] sm:$0xff] %v784
  %809 = vst [vmem:[#allocation2 + $0x30] sm:$0xff] %v785
  %810 = vst [vmem:[#allocation2 + $0x38] sm:$0xff] %v786
  %811 = vst [vmem:[#allocation2 + $0x40] sm:$0xff] %v787
  %812 = vst [vmem:[#allocation2 + $0x48] sm:$0xff] %v788
  %813 = vst [vmem:[#allocation2 + $0x50] sm:$0xff] %v789
  %814 = vst [vmem:[#allocation2 + $0x58] sm:$0xff] %v790
  %815 = vst [vmem:[#allocation2 + $0x60] sm:$0xff] %v791
  %816 = vst [vmem:[#allocation2 + $0x68] sm:$0xff] %v792
  %817 = vst [vmem:[#allocation2 + $0x70] sm:$0xff] %v793
  %818 = vst [vmem:[#allocation2 + $0x78] sm:$0xff] %v794
  %819 = vst [vmem:[#allocation2 + $0x80] sm:$0xff] %v795
  %820 = vst [vmem:[#allocation2 + $0x88] sm:$0xff] %v796
  %821 = vst [vmem:[#allocation2 + $0x90] sm:$0xff] %v797
  %822 = vst [vmem:[#allocation2 + $0x98] sm:$0xff] %v798
  %823 = vst [vmem:[#allocation2 + $0xa0] sm:$0xff] %v799
  %824 = vst [vmem:[#allocation2 + $0xa8] sm:$0xff] %v800
  %825 = vst [vmem:[#allocation2 + $0xb0] sm:$0xff] %v801
  %826 = vst [vmem:[#allocation2 + $0xb8] sm:$0xff] %v802
  %v859 = vunpack.c.l.b16 %v150
  %v860 = vunpack.c.h.b16 %v150
  %v861 = vunpack.c.l.b16 %v151
  %v862 = vunpack.c.l.b16 %v152
  %v863 = vunpack.c.h.b16 %v152
  %v864 = vunpack.c.l.b16 %v153
  %v865 = vunpack.c.l.b16 %v154
  %v866 = vunpack.c.h.b16 %v154
  %v867 = vunpack.c.l.b16 %v155
  %v868 = vunpack.c.l.b16 %v156
  %v869 = vunpack.c.h.b16 %v156
  %v870 = vunpack.c.l.b16 %v157
  %v871 = vunpack.c.l.b16 %v158
  %v872 = vunpack.c.h.b16 %v158
  %v873 = vunpack.c.l.b16 %v159
  %v874 = vunpack.c.l.b16 %v160
  %v875 = vunpack.c.h.b16 %v160
  %v876 = vunpack.c.l.b16 %v161
  %v877 = vunpack.c.l.b16 %v162
  %v878 = vunpack.c.h.b16 %v162
  %v879 = vunpack.c.l.b16 %v163
  %v880 = vunpack.c.l.b16 %v164
  %v881 = vunpack.c.h.b16 %v164
  %v882 = vunpack.c.l.b16 %v165
  %v883 = vunpack.c.l.b16 %v166
  %v884 = vunpack.c.h.b16 %v166
  %v885 = vunpack.c.l.b16 %v167
  %v886 = vunpack.c.l.b16 %v168
  %v887 = vunpack.c.h.b16 %v168
  %v888 = vunpack.c.l.b16 %v169
  %v889 = vunpack.c.l.b16 %v170
  %v890 = vunpack.c.h.b16 %v170
  %v891 = vunpack.c.l.b16 %v171
  %v892 = vunpack.c.l.b16 %v172
  %v893 = vunpack.c.h.b16 %v172
  %v894 = vunpack.c.l.b16 %v173
  %v895 = vunpack.c.l.b16 %v174
  %v896 = vunpack.c.h.b16 %v174
  %v897 = vunpack.c.l.b16 %v175
  %v898 = vunpack.c.l.b16 %v176
  %v899 = vunpack.c.h.b16 %v176
  %v900 = vunpack.c.l.b16 %v177
  %v901 = vunpack.c.l.b16 %v178
  %v902 = vunpack.c.h.b16 %v178
  %v903 = vunpack.c.l.b16 %v179
  %v904 = vunpack.c.l.b16 %v180
  %v905 = vunpack.c.h.b16 %v180
  %v906 = vunpack.c.l.b16 %v181
  %v907 = vpack.c.b16 %v862, %v859
  %v908 = vpack.c.b16 %v863, %v860
  %v909 = vpack.c.b16 %v864, %v861
  %v910 = vpack.c.b16 %v868, %v865
  %v911 = vpack.c.b16 %v869, %v866
  %v912 = vpack.c.b16 %v870, %v867
  %v913 = vpack.c.b16 %v874, %v871
  %v914 = vpack.c.b16 %v875, %v872
  %v915 = vpack.c.b16 %v876, %v873
  %v916 = vpack.c.b16 %v880, %v877
  %v917 = vpack.c.b16 %v881, %v878
  %v918 = vpack.c.b16 %v882, %v879
  %v919 = vpack.c.b16 %v886, %v883
  %v920 = vpack.c.b16 %v887, %v884
  %v921 = vpack.c.b16 %v888, %v885
  %v922 = vpack.c.b16 %v892, %v889
  %v923 = vpack.c.b16 %v893, %v890
  %v924 = vpack.c.b16 %v894, %v891
  %v925 = vpack.c.b16 %v898, %v895
  %v926 = vpack.c.b16 %v899, %v896
  %v927 = vpack.c.b16 %v900, %v897
  %v928 = vpack.c.b16 %v904, %v901
  %v929 = vpack.c.b16 %v905, %v902
  %v930 = vpack.c.b16 %v906, %v903
  %955 = vmatprep.subr.bf16.mxu0 %v908
  %956 = vmatpush1.bf16.msra.mxu0 %v907
  %957 = vmatprep.subr.bf16.mxu0 %v911
  %958 = vmatpush1.bf16.msra.mxu0 %v910
  %959 = vmatprep.subr.bf16.mxu0 %v914
  %960 = vmatpush1.bf16.msra.mxu0 %v913
  %961 = vmatprep.subr.bf16.mxu0 %v917
  %962 = vmatpush1.bf16.msra.mxu0 %v916
  %963 = vmatprep.subr.bf16.mxu0 %v920
  %964 = vmatpush1.bf16.msra.mxu0 %v919
  %965 = vmatprep.subr.bf16.mxu0 %v923
  %966 = vmatpush1.bf16.msra.mxu0 %v922
  %967 = vmatprep.subr.bf16.mxu0 %v926
  %968 = vmatpush1.bf16.msra.mxu0 %v925
  %969 = vmatprep.subr.bf16.mxu0 %v929
  %970 = vmatpush1.bf16.msra.mxu0 %v928
  %971 = vmatprep.subr.bf16.mxu0 0
  %972 = vmatpush1.bf16.msra.mxu0 0
  %973 = vmatprep.subr.bf16.mxu0 0
  %974 = vmatpush1.bf16.msra.mxu0 0
  %975 = vmatprep.subr.bf16.mxu0 0
  %976 = vmatpush1.bf16.msra.mxu0 0
  %977 = vmatprep.subr.bf16.mxu0 0
  %978 = vmatpush1.bf16.msra.mxu0 0
  %979 = vmatprep.subr.bf16.mxu0 0
  %980 = vmatpush1.bf16.msra.mxu0 0
  %981 = vmatprep.subr.bf16.mxu0 0
  %982 = vmatpush1.bf16.msra.mxu0 0
  %983 = vmatprep.subr.bf16.mxu0 0
  %984 = vmatpush1.bf16.msra.mxu0 0
  %985 = vmatprep.subr.bf16.mxu0 0
  %986 = vmatpush1.bf16.msra.mxu0 0
  %987 = vmatprep.mubr.bf16.mxu0 0
  %988 = vmatmul.mubr.bf16.gmra.mrb[0].mxu0 %v198
  %v989 = vpop.f32.mrb[0].mxu0
  %v990 = vadd.f32 0.0, %v989
  %v991 = vpop.f32.mrb[0].mxu0
  %v992 = vadd.f32 0.0, %v991
  %v993 = vpop.f32.mrb[0].mxu0
  %v994 = vadd.f32 0.0, %v993
  %v995 = vpop.f32.mrb[0].mxu0
  %v996 = vadd.f32 0.0, %v995
  %997 = vmatprep.mubr.bf16.mxu0 0
  %998 = vmatmul.mubr.bf16.gmra.mrb[0].mxu0 %v199
  %v999 = vpop.f32.mrb[0].mxu0
  %v1000 = vadd.f32 0.0, %v999
  %v1001 = vpop.f32.mrb[0].mxu0
  %v1002 = vadd.f32 0.0, %v1001
  %v1003 = vpop.f32.mrb[0].mxu0
  %v1004 = vadd.f32 0.0, %v1003
  %v1005 = vpop.f32.mrb[0].mxu0
  %v1006 = vadd.f32 0.0, %v1005
  %1007 = vmatprep.mubr.bf16.mxu0 0
  %1008 = vmatmul.mubr.bf16.gmra.mrb[0].mxu0 %v200
  %v1009 = vpop.f32.mrb[0].mxu0
  %v1010 = vadd.f32 0.0, %v1009
  %v1011 = vpop.f32.mrb[0].mxu0
  %v1012 = vadd.f32 0.0, %v1011
  %v1013 = vpop.f32.mrb[0].mxu0
  %v1014 = vadd.f32 0.0, %v1013
  %v1015 = vpop.f32.mrb[0].mxu0
  %v1016 = vadd.f32 0.0, %v1015
  %1017 = vmatprep.mubr.bf16.mxu0 0
  %1018 = vmatmul.mubr.bf16.gmra.mrb[0].mxu0 %v201
  %v1019 = vpop.f32.mrb[0].mxu0
  %v1020 = vadd.f32 0.0, %v1019
  %v1021 = vpop.f32.mrb[0].mxu0
  %v1022 = vadd.f32 0.0, %v1021
  %v1023 = vpop.f32.mrb[0].mxu0
  %v1024 = vadd.f32 0.0, %v1023
  %v1025 = vpop.f32.mrb[0].mxu0
  %v1026 = vadd.f32 0.0, %v1025
  %1027 = vdwg.mxu0
  %1028 = vmatprep.subr.bf16.mxu0 0
  %1029 = vmatpush1.bf16.msra.mxu0 %v909
  %1030 = vmatprep.subr.bf16.mxu0 0
  %1031 = vmatpush1.bf16.msra.mxu0 %v912
  %1032 = vmatprep.subr.bf16.mxu0 0
  %1033 = vmatpush1.bf16.msra.mxu0 %v915
  %1034 = vmatprep.subr.bf16.mxu0 0
  %1035 = vmatpush1.bf16.msra.mxu0 %v918
  %1036 = vmatprep.subr.bf16.mxu0 0
  %1037 = vmatpush1.bf16.msra.mxu0 %v921
  %1038 = vmatprep.subr.bf16.mxu0 0
  %1039 = vmatpush1.bf16.msra.mxu0 %v924
  %1040 = vmatprep.subr.bf16.mxu0 0
  %1041 = vmatpush1.bf16.msra.mxu0 %v927
  %1042 = vmatprep.subr.bf16.mxu0 0
  %1043 = vmatpush1.bf16.msra.mxu0 %v930
  %1044 = vmatprep.subr.bf16.mxu0 0
  %1045 = vmatpush1.bf16.msra.mxu0 0
  %1046 = vmatprep.subr.bf16.mxu0 0
  %1047 = vmatpush1.bf16.msra.mxu0 0
  %1048 = vmatprep.subr.bf16.mxu0 0
  %1049 = vmatpush1.bf16.msra.mxu0 0
  %1050 = vmatprep.subr.bf16.mxu0 0
  %1051 = vmatpush1.bf16.msra.mxu0 0
  %1052 = vmatprep.subr.bf16.mxu0 0
  %1053 = vmatpush1.bf16.msra.mxu0 0
  %1054 = vmatprep.subr.bf16.mxu0 0
  %1055 = vmatpush1.bf16.msra.mxu0 0
  %1056 = vmatprep.subr.bf16.mxu0 0
  %1057 = vmatpush1.bf16.msra.mxu0 0
  %1058 = vmatprep.subr.bf16.mxu0 0
  %1059 = vmatpush1.bf16.msra.mxu0 0
  %1060 = vmatprep.mubr.bf16.mxu0 0
  %1061 = vmatmul.mubr.bf16.gmra.mrb[0].mxu0 %v198
  %v1062 = vpop.f32.mrb[0].mxu0
  %v1063 = vadd.f32 0.0, %v1062
  %v1064 = vpop.f32.mrb[0].mxu0
  %v1065 = vpop.f32.mrb[0].mxu0
  %v1066 = vadd.f32 0.0, %v1065
  %v1067 = vpop.f32.mrb[0].mxu0
  %1068 = vmatprep.mubr.bf16.mxu0 0
  %1069 = vmatmul.mubr.bf16.gmra.mrb[0].mxu0 %v199
  %v1070 = vpop.f32.mrb[0].mxu0
  %v1071 = vadd.f32 0.0, %v1070
  %v1072 = vpop.f32.mrb[0].mxu0
  %v1073 = vpop.f32.mrb[0].mxu0
  %v1074 = vadd.f32 0.0, %v1073
  %v1075 = vpop.f32.mrb[0].mxu0
  %1076 = vmatprep.mubr.bf16.mxu0 0
  %1077 = vmatmul.mubr.bf16.gmra.mrb[0].mxu0 %v200
  %v1078 = vpop.f32.mrb[0].mxu0
  %v1079 = vadd.f32 0.0, %v1078
  %v1080 = vpop.f32.mrb[0].mxu0
  %v1081 = vpop.f32.mrb[0].mxu0
  %v1082 = vadd.f32 0.0, %v1081
  %v1083 = vpop.f32.mrb[0].mxu0
  %1084 = vmatprep.mubr.bf16.mxu0 0
  %1085 = vmatmul.mubr.bf16.gmra.mrb[0].mxu0 %v201
  %v1086 = vpop.f32.mrb[0].mxu0
  %v1087 = vadd.f32 0.0, %v1086
  %v1088 = vpop.f32.mrb[0].mxu0
  %v1089 = vpop.f32.mrb[0].mxu0
  %v1090 = vadd.f32 0.0, %v1089
  %v1091 = vpop.f32.mrb[0].mxu0
  %1092 = vdwg.mxu0
  %v1125 = vunpack.c.l.b16 %v118
  %v1126 = vunpack.c.h.b16 %v118
  %v1127 = vunpack.c.l.b16 %v119
  %v1128 = vunpack.c.l.b16 %v120
  %v1129 = vunpack.c.h.b16 %v120
  %v1130 = vunpack.c.l.b16 %v121
  %v1131 = vunpack.c.l.b16 %v122
  %v1132 = vunpack.c.h.b16 %v122
  %v1133 = vunpack.c.l.b16 %v123
  %v1134 = vunpack.c.l.b16 %v124
  %v1135 = vunpack.c.h.b16 %v124
  %v1136 = vunpack.c.l.b16 %v125
  %v1137 = vunpack.c.l.b16 %v126
  %v1138 = vunpack.c.h.b16 %v126
  %v1139 = vunpack.c.l.b16 %v127
  %v1140 = vunpack.c.l.b16 %v128
  %v1141 = vunpack.c.h.b16 %v128
  %v1142 = vunpack.c.l.b16 %v129
  %v1143 = vunpack.c.l.b16 %v130
  %v1144 = vunpack.c.h.b16 %v130
  %v1145 = vunpack.c.l.b16 %v131
  %v1146 = vunpack.c.l.b16 %v132
  %v1147 = vunpack.c.h.b16 %v132
  %v1148 = vunpack.c.l.b16 %v133
  %v1149 = vunpack.c.l.b16 %v134
  %v1150 = vunpack.c.h.b16 %v134
  %v1151 = vunpack.c.l.b16 %v135
  %v1152 = vunpack.c.l.b16 %v136
  %v1153 = vunpack.c.h.b16 %v136
  %v1154 = vunpack.c.l.b16 %v137
  %v1155 = vunpack.c.l.b16 %v138
  %v1156 = vunpack.c.h.b16 %v138
  %v1157 = vunpack.c.l.b16 %v139
  %v1158 = vunpack.c.l.b16 %v140
  %v1159 = vunpack.c.h.b16 %v140
  %v1160 = vunpack.c.l.b16 %v141
  %v1161 = vunpack.c.l.b16 %v142
  %v1162 = vunpack.c.h.b16 %v142
  %v1163 = vunpack.c.l.b16 %v143
  %v1164 = vunpack.c.l.b16 %v144
  %v1165 = vunpack.c.h.b16 %v144
  %v1166 = vunpack.c.l.b16 %v145
  %v1167 = vunpack.c.l.b16 %v146
  %v1168 = vunpack.c.h.b16 %v146
  %v1169 = vunpack.c.l.b16 %v147
  %v1170 = vunpack.c.l.b16 %v148
  %v1171 = vunpack.c.h.b16 %v148
  %v1172 = vunpack.c.l.b16 %v149
  %v1173 = vpack.c.b16 %v1128, %v1125
  %v1174 = vpack.c.b16 %v1129, %v1126
  %v1175 = vpack.c.b16 %v1130, %v1127
  %v1176 = vpack.c.b16 %v1134, %v1131
  %v1177 = vpack.c.b16 %v1135, %v1132
  %v1178 = vpack.c.b16 %v1136, %v1133
  %v1179 = vpack.c.b16 %v1140, %v1137
  %v1180 = vpack.c.b16 %v1141, %v1138
  %v1181 = vpack.c.b16 %v1142, %v1139
  %v1182 = vpack.c.b16 %v1146, %v1143
  %v1183 = vpack.c.b16 %v1147, %v1144
  %v1184 = vpack.c.b16 %v1148, %v1145
  %v1185 = vpack.c.b16 %v1152, %v1149
  %v1186 = vpack.c.b16 %v1153, %v1150
  %v1187 = vpack.c.b16 %v1154, %v1151
  %v1188 = vpack.c.b16 %v1158, %v1155
  %v1189 = vpack.c.b16 %v1159, %v1156
  %v1190 = vpack.c.b16 %v1160, %v1157
  %v1191 = vpack.c.b16 %v1164, %v1161
  %v1192 = vpack.c.b16 %v1165, %v1162
  %v1193 = vpack.c.b16 %v1166, %v1163
  %v1194 = vpack.c.b16 %v1170, %v1167
  %v1195 = vpack.c.b16 %v1171, %v1168
  %v1196 = vpack.c.b16 %v1172, %v1169
  %1221 = vmatprep.subr.bf16.mxu0 %v1174
  %1222 = vmatpush1.bf16.msra.mxu0 %v1173
  %1223 = vmatprep.subr.bf16.mxu0 %v1177
  %1224 = vmatpush1.bf16.msra.mxu0 %v1176
  %1225 = vmatprep.subr.bf16.mxu0 %v1180
  %1226 = vmatpush1.bf16.msra.mxu0 %v1179
  %1227 = vmatprep.subr.bf16.mxu0 %v1183
  %1228 = vmatpush1.bf16.msra.mxu0 %v1182
  %1229 = vmatprep.subr.bf16.mxu0 %v1186
  %1230 = vmatpush1.bf16.msra.mxu0 %v1185
  %1231 = vmatprep.subr.bf16.mxu0 %v1189
  %1232 = vmatpush1.bf16.msra.mxu0 %v1188
  %1233 = vmatprep.subr.bf16.mxu0 %v1192
  %1234 = vmatpush1.bf16.msra.mxu0 %v1191
  %1235 = vmatprep.subr.bf16.mxu0 %v1195
  %1236 = vmatpush1.bf16.msra.mxu0 %v1194
  %1237 = vmatprep.subr.bf16.mxu0 0
  %1238 = vmatpush1.bf16.msra.mxu0 0
  %1239 = vmatprep.subr.bf16.mxu0 0
  %1240 = vmatpush1.bf16.msra.mxu0 0
  %1241 = vmatprep.subr.bf16.mxu0 0
  %1242 = vmatpush1.bf16.msra.mxu0 0
  %1243 = vmatprep.subr.bf16.mxu0 0
  %1244 = vmatpush1.bf16.msra.mxu0 0
  %1245 = vmatprep.subr.bf16.mxu0 0
  %1246 = vmatpush1.bf16.msra.mxu0 0
  %1247 = vmatprep.subr.bf16.mxu0 0
  %1248 = vmatpush1.bf16.msra.mxu0 0
  %1249 = vmatprep.subr.bf16.mxu0 0
  %1250 = vmatpush1.bf16.msra.mxu0 0
  %1251 = vmatprep.subr.bf16.mxu0 0
  %1252 = vmatpush1.bf16.msra.mxu0 0
  %1253 = vmatprep.mubr.bf16.mxu0 0
  %1254 = vmatmul.mubr.bf16.gmra.mrb[0].mxu0 %v488
  %v1255 = vpop.f32.mrb[0].mxu0
  %v1256 = vadd.f32 %v990, %v1255
  %v1257 = vpop.f32.mrb[0].mxu0
  %v1258 = vadd.f32 %v992, %v1257
  %v1259 = vpop.f32.mrb[0].mxu0
  %v1260 = vadd.f32 %v994, %v1259
  %v1261 = vpop.f32.mrb[0].mxu0
  %v1262 = vadd.f32 %v996, %v1261
  %1263 = vmatprep.mubr.bf16.mxu0 0
  %1264 = vmatmul.mubr.bf16.gmra.mrb[0].mxu0 %v489
  %v1265 = vpop.f32.mrb[0].mxu0
  %v1266 = vadd.f32 %v1000, %v1265
  %v1267 = vpop.f32.mrb[0].mxu0
  %v1268 = vadd.f32 %v1002, %v1267
  %v1269 = vpop.f32.mrb[0].mxu0
  %v1270 = vadd.f32 %v1004, %v1269
  %v1271 = vpop.f32.mrb[0].mxu0
  %v1272 = vadd.f32 %v1006, %v1271
  %1273 = vmatprep.mubr.bf16.mxu0 0
  %1274 = vmatmul.mubr.bf16.gmra.mrb[0].mxu0 %v490
  %v1275 = vpop.f32.mrb[0].mxu0
  %v1276 = vadd.f32 %v1010, %v1275
  %v1277 = vpop.f32.mrb[0].mxu0
  %v1278 = vadd.f32 %v1012, %v1277
  %v1279 = vpop.f32.mrb[0].mxu0
  %v1280 = vadd.f32 %v1014, %v1279
  %v1281 = vpop.f32.mrb[0].mxu0
  %v1282 = vadd.f32 %v1016, %v1281
  %1283 = vmatprep.mubr.bf16.mxu0 0
  %1284 = vmatmul.mubr.bf16.gmra.mrb[0].mxu0 %v491
  %v1285 = vpop.f32.mrb[0].mxu0
  %v1286 = vadd.f32 %v1020, %v1285
  %v1287 = vpop.f32.mrb[0].mxu0
  %v1288 = vadd.f32 %v1022, %v1287
  %v1289 = vpop.f32.mrb[0].mxu0
  %v1290 = vadd.f32 %v1024, %v1289
  %v1291 = vpop.f32.mrb[0].mxu0
  %v1292 = vadd.f32 %v1026, %v1291
  %1293 = vdwg.mxu0
  %1294 = vmatprep.subr.bf16.mxu0 0
  %1295 = vmatpush1.bf16.msra.mxu0 %v1175
  %1296 = vmatprep.subr.bf16.mxu0 0
  %1297 = vmatpush1.bf16.msra.mxu0 %v1178
  %1298 = vmatprep.subr.bf16.mxu0 0
  %1299 = vmatpush1.bf16.msra.mxu0 %v1181
  %1300 = vmatprep.subr.bf16.mxu0 0
  %1301 = vmatpush1.bf16.msra.mxu0 %v1184
  %1302 = vmatprep.subr.bf16.mxu0 0
  %1303 = vmatpush1.bf16.msra.mxu0 %v1187
  %1304 = vmatprep.subr.bf16.mxu0 0
  %1305 = vmatpush1.bf16.msra.mxu0 %v1190
  %1306 = vmatprep.subr.bf16.mxu0 0
  %1307 = vmatpush1.bf16.msra.mxu0 %v1193
  %1308 = vmatprep.subr.bf16.mxu0 0
  %1309 = vmatpush1.bf16.msra.mxu0 %v1196
  %1310 = vmatprep.subr.bf16.mxu0 0
  %1311 = vmatpush1.bf16.msra.mxu0 0
  %1312 = vmatprep.subr.bf16.mxu0 0
  %1313 = vmatpush1.bf16.msra.mxu0 0
  %1314 = vmatprep.subr.bf16.mxu0 0
  %1315 = vmatpush1.bf16.msra.mxu0 0
  %1316 = vmatprep.subr.bf16.mxu0 0
  %1317 = vmatpush1.bf16.msra.mxu0 0
  %1318 = vmatprep.subr.bf16.mxu0 0
  %1319 = vmatpush1.bf16.msra.mxu0 0
  %1320 = vmatprep.subr.bf16.mxu0 0
  %1321 = vmatpush1.bf16.msra.mxu0 0
  %1322 = vmatprep.subr.bf16.mxu0 0
  %1323 = vmatpush1.bf16.msra.mxu0 0
  %1324 = vmatprep.subr.bf16.mxu0 0
  %1325 = vmatpush1.bf16.msra.mxu0 0
  %1326 = vmatprep.mubr.bf16.mxu0 0
  %1327 = vmatmul.mubr.bf16.gmra.mrb[0].mxu0 %v488
  %v1328 = vpop.f32.mrb[0].mxu0
  %v1329 = vadd.f32 %v1063, %v1328
  %v1330 = vpop.f32.mrb[0].mxu0
  %v1331 = vpop.f32.mrb[0].mxu0
  %v1332 = vadd.f32 %v1066, %v1331
  %v1333 = vpop.f32.mrb[0].mxu0
  %1334 = vmatprep.mubr.bf16.mxu0 0
  %1335 = vmatmul.mubr.bf16.gmra.mrb[0].mxu0 %v489
  %v1336 = vpop.f32.mrb[0].mxu0
  %v1337 = vadd.f32 %v1071, %v1336
  %v1338 = vpop.f32.mrb[0].mxu0
  %v1339 = vpop.f32.mrb[0].mxu0
  %v1340 = vadd.f32 %v1074, %v1339
  %v1341 = vpop.f32.mrb[0].mxu0
  %1342 = vmatprep.mubr.bf16.mxu0 0
  %1343 = vmatmul.mubr.bf16.gmra.mrb[0].mxu0 %v490
  %v1344 = vpop.f32.mrb[0].mxu0
  %v1345 = vadd.f32 %v1079, %v1344
  %v1346 = vpop.f32.mrb[0].mxu0
  %v1347 = vpop.f32.mrb[0].mxu0
  %v1348 = vadd.f32 %v1082, %v1347
  %v1349 = vpop.f32.mrb[0].mxu0
  %1350 = vmatprep.mubr.bf16.mxu0 0
  %1351 = vmatmul.mubr.bf16.gmra.mrb[0].mxu0 %v491
  %v1352 = vpop.f32.mrb[0].mxu0
  %v1353 = vadd.f32 %v1087, %v1352
  %v1354 = vpop.f32.mrb[0].mxu0
  %v1355 = vpop.f32.mrb[0].mxu0
  %v1356 = vadd.f32 %v1090, %v1355
  %v1357 = vpop.f32.mrb[0].mxu0
  %1358 = vdwg.mxu0
  %v1359 = vld [vmem:[%s5] sm:$0x7]
  %v1361 = vlaneseq
  %v1362 = vshrl.u32 %v1361, 7
  %v1363 = vsub.s32 0, %v1362
  %v1364 = vrot.slane %v1359, %v1363
  %v1365 = vlaneseq
  %v1366 = vshrl.u32 %v1365, 7
  %v1367 = vsub.s32 1, %v1366
  %v1368 = vrot.slane %v1359, %v1367
  %v1369 = vlaneseq
  %v1370 = vshrl.u32 %v1369, 7
  %v1371 = vsub.s32 2, %v1370
  %v1372 = vrot.slane %v1359, %v1371
  %v1376 = vadd.f32 %v1256, %v1364
  %v1377 = vadd.f32 %v1258, %v1368
  %v1378 = vadd.f32 %v1329, %v1372
  %v1379 = vadd.f32 %v1260, %v1364
  %v1380 = vadd.f32 %v1262, %v1368
  %v1381 = vadd.f32 %v1332, %v1372
  %v1382 = vadd.f32 %v1266, %v1364
  %v1383 = vadd.f32 %v1268, %v1368
  %v1384 = vadd.f32 %v1337, %v1372
  %v1385 = vadd.f32 %v1270, %v1364
  %v1386 = vadd.f32 %v1272, %v1368
  %v1387 = vadd.f32 %v1340, %v1372
  %v1388 = vadd.f32 %v1276, %v1364
  %v1389 = vadd.f32 %v1278, %v1368
  %v1390 = vadd.f32 %v1345, %v1372
  %v1391 = vadd.f32 %v1280, %v1364
  %v1392 = vadd.f32 %v1282, %v1368
  %v1393 = vadd.f32 %v1348, %v1372
  %v1394 = vadd.f32 %v1286, %v1364
  %v1395 = vadd.f32 %v1288, %v1368
  %v1396 = vadd.f32 %v1353, %v1372
  %v1397 = vadd.f32 %v1290, %v1364
  %v1398 = vadd.f32 %v1292, %v1368
  %v1399 = vadd.f32 %v1356, %v1372
  %1400 = vst [vmem:[#allocation3] sm:$0xff] %v1376
  %1401 = vst [vmem:[#allocation3 + $0x8] sm:$0xff] %v1377
  %1402 = vst [vmem:[#allocation3 + $0x10] sm:$0xff] %v1378
  %1403 = vst [vmem:[#allocation3 + $0x18] sm:$0xff] %v1379
  %1404 = vst [vmem:[#allocation3 + $0x20] sm:$0xff] %v1380
  %1405 = vst [vmem:[#allocation3 + $0x28] sm:$0xff] %v1381
  %1406 = vst [vmem:[#allocation3 + $0x30] sm:$0xff] %v1382
  %1407 = vst [vmem:[#allocation3 + $0x38] sm:$0xff] %v1383
  %1408 = vst [vmem:[#allocation3 + $0x40] sm:$0xff] %v1384
  %1409 = vst [vmem:[#allocation3 + $0x48] sm:$0xff] %v1385
  %1410 = vst [vmem:[#allocation3 + $0x50] sm:$0xff] %v1386
  %1411 = vst [vmem:[#allocation3 + $0x58] sm:$0xff] %v1387
  %1412 = vst [vmem:[#allocation3 + $0x60] sm:$0xff] %v1388
  %1413 = vst [vmem:[#allocation3 + $0x68] sm:$0xff] %v1389
  %1414 = vst [vmem:[#allocation3 + $0x70] sm:$0xff] %v1390
  %1415 = vst [vmem:[#allocation3 + $0x78] sm:$0xff] %v1391
  %1416 = vst [vmem:[#allocation3 + $0x80] sm:$0xff] %v1392
  %1417 = vst [vmem:[#allocation3 + $0x88] sm:$0xff] %v1393
  %1418 = vst [vmem:[#allocation3 + $0x90] sm:$0xff] %v1394
  %1419 = vst [vmem:[#allocation3 + $0x98] sm:$0xff] %v1395
  %1420 = vst [vmem:[#allocation3 + $0xa0] sm:$0xff] %v1396
  %1421 = vst [vmem:[#allocation3 + $0xa8] sm:$0xff] %v1397
  %1422 = vst [vmem:[#allocation3 + $0xb0] sm:$0xff] %v1398
  %1423 = vst [vmem:[#allocation3 + $0xb8] sm:$0xff] %v1399
  %v1424 = vld [vmem:[%s6] sm:$0xff]
  %v1425 = vld [vmem:[%s6 + $0x8] sm:$0xf]
  %v1426 = vld [vmem:[%s6 + $0xc] sm:$0xff]
  %v1427 = vld [vmem:[%s6 + $0x14] sm:$0xf]
  %v1428 = vld [vmem:[%s6 + $0x18] sm:$0xff]
  %v1429 = vld [vmem:[%s6 + $0x20] sm:$0xf]
  %v1430 = vld [vmem:[%s6 + $0x24] sm:$0xff]
  %v1431 = vld [vmem:[%s6 + $0x2c] sm:$0xf]
  %v1432 = vld [vmem:[%s6 + $0x30] sm:$0xff]
  %v1433 = vld [vmem:[%s6 + $0x38] sm:$0xf]
  %v1434 = vld [vmem:[%s6 + $0x3c] sm:$0xff]
  %v1435 = vld [vmem:[%s6 + $0x44] sm:$0xf]
  %v1436 = vld [vmem:[%s6 + $0x48] sm:$0xff]
  %v1437 = vld [vmem:[%s6 + $0x50] sm:$0xf]
  %v1438 = vld [vmem:[%s6 + $0x54] sm:$0xff]
  %v1439 = vld [vmem:[%s6 + $0x5c] sm:$0xf]
  %v1440 = vld [vmem:[%s6 + $0x60] sm:$0xff]
  %v1441 = vld [vmem:[%s6 + $0x68] sm:$0xf]
  %v1442 = vld [vmem:[%s6 + $0x6c] sm:$0xff]
  %v1443 = vld [vmem:[%s6 + $0x74] sm:$0xf]
  %v1444 = vld [vmem:[%s6 + $0x78] sm:$0xff]
  %v1445 = vld [vmem:[%s6 + $0x80] sm:$0xf]
  %v1446 = vld [vmem:[%s6 + $0x84] sm:$0xff]
  %v1447 = vld [vmem:[%s6 + $0x8c] sm:$0xf]
  %v1448 = vld [vmem:[%s6 + $0x90] sm:$0xff]
  %v1449 = vld [vmem:[%s6 + $0x98] sm:$0xf]
  %v1450 = vld [vmem:[%s6 + $0x9c] sm:$0xff]
  %v1451 = vld [vmem:[%s6 + $0xa4] sm:$0xf]
  %v1452 = vld [vmem:[%s6 + $0xa8] sm:$0xff]
  %v1453 = vld [vmem:[%s6 + $0xb0] sm:$0xf]
  %v1454 = vld [vmem:[%s6 + $0xb4] sm:$0xff]
  %v1455 = vld [vmem:[%s6 + $0xbc] sm:$0xf]
  %v1456 = vld [vmem:[%s7] sm:$0xff]
  %v1457 = vld [vmem:[%s7 + $0x8] sm:$0xf]
  %v1458 = vld [vmem:[%s7 + $0xc] sm:$0xff]
  %v1459 = vld [vmem:[%s7 + $0x14] sm:$0xf]
  %v1460 = vld [vmem:[%s7 + $0x18] sm:$0xff]
  %v1461 = vld [vmem:[%s7 + $0x20] sm:$0xf]
  %v1462 = vld [vmem:[%s7 + $0x24] sm:$0xff]
  %v1463 = vld [vmem:[%s7 + $0x2c] sm:$0xf]
  %v1464 = vld [vmem:[%s7 + $0x30] sm:$0xff]
  %v1465 = vld [vmem:[%s7 + $0x38] sm:$0xf]
  %v1466 = vld [vmem:[%s7 + $0x3c] sm:$0xff]
  %v1467 = vld [vmem:[%s7 + $0x44] sm:$0xf]
  %v1468 = vld [vmem:[%s7 + $0x48] sm:$0xff]
  %v1469 = vld [vmem:[%s7 + $0x50] sm:$0xf]
  %v1470 = vld [vmem:[%s7 + $0x54] sm:$0xff]
  %v1471 = vld [vmem:[%s7 + $0x5c] sm:$0xf]
  %v1472 = vld [vmem:[%s7 + $0x60] sm:$0xff]
  %v1473 = vld [vmem:[%s7 + $0x68] sm:$0xf]
  %v1474 = vld [vmem:[%s7 + $0x6c] sm:$0xff]
  %v1475 = vld [vmem:[%s7 + $0x74] sm:$0xf]
  %v1476 = vld [vmem:[%s7 + $0x78] sm:$0xff]
  %v1477 = vld [vmem:[%s7 + $0x80] sm:$0xf]
  %v1478 = vld [vmem:[%s7 + $0x84] sm:$0xff]
  %v1479 = vld [vmem:[%s7 + $0x8c] sm:$0xf]
  %v1480 = vld [vmem:[%s7 + $0x90] sm:$0xff]
  %v1481 = vld [vmem:[%s7 + $0x98] sm:$0xf]
  %v1482 = vld [vmem:[%s7 + $0x9c] sm:$0xff]
  %v1483 = vld [vmem:[%s7 + $0xa4] sm:$0xf]
  %v1484 = vld [vmem:[%s7 + $0xa8] sm:$0xff]
  %v1485 = vld [vmem:[%s7 + $0xb0] sm:$0xf]
  %v1486 = vld [vmem:[%s7 + $0xb4] sm:$0xff]
  %v1487 = vld [vmem:[%s7 + $0xbc] sm:$0xf]
  %v1488 = vld [vmem:[%s8] sm:$0x7]
  %v1489 = vld [vmem:[%s9] sm:$0x7]
  loop: start=0, step=1, limit=8
  $region42: #{wrnn_forward.4} parent=0 // loop_pre_header
    _
  $region43: #{wrnn_forward.4} parent=0 // loop_header
    %s1491 = sphi 0, %s1495
    %p1492 = scmp.ge.s32.totalorder %s1491, 8
    %v1496 = vphi 0.0, %v1983
    %v1497 = vphi 0.0, %v2004
  $region44: #{wrnn_forward.4} parent=0 // loop_header_branch
    %1494 = sbr.rel (%p1492) target = $region48
  $region45: #{wrnn_forward.4} parent=0 // loop_body
    %s1498 = smul.u32 %s1491, 3
    %s1499 = smul.addr %s1498, 8
    %s1500 = scalar_lea.vmem [#allocation2], %s1499
    %v1501 = vld [vmem:[%s1500] sm:$0xff]
    %v1502 = vld [vmem:[%s1500 + $0x8] sm:$0xff]
    %v1503 = vld [vmem:[%s1500 + $0x10] sm:$0xff]
    %s1504 = ssub.s32 7, %s1491
    %s1505 = smul.u32 %s1504, 3
    %s1506 = smul.addr %s1505, 8
    %s1507 = scalar_lea.vmem [#allocation3], %s1506
    %v1508 = vld [vmem:[%s1507] sm:$0xff]
    %v1509 = vld [vmem:[%s1507 + $0x8] sm:$0xff]
    %v1510 = vld [vmem:[%s1507 + $0x10] sm:$0xff]
    %v1511 = vpack.c.bf16 %v1496, %v1496
    %v1513 = vlaneseq
    %v1514 = vshrl.u32 %v1513, 7
    %v1515 = vsub.s32 0, %v1514
    %v1516 = vrot.slane %v1488, %v1515
    %v1517 = vlaneseq
    %v1518 = vshrl.u32 %v1517, 7
    %v1519 = vsub.s32 1, %v1518
    %v1520 = vrot.slane %v1488, %v1519
    %v1521 = vlaneseq
    %v1522 = vshrl.u32 %v1521, 7
    %v1523 = vsub.s32 2, %v1522
    %v1524 = vrot.slane %v1488, %v1523
    %v1560 = vunpack.c.l.b16 %v1424
    %v1561 = vunpack.c.h.b16 %v1424
    %v1562 = vunpack.c.l.b16 %v1425
    %v1563 = vunpack.c.l.b16 %v1426
    %v1564 = vunpack.c.h.b16 %v1426
    %v1565 = vunpack.c.l.b16 %v1427
    %v1566 = vunpack.c.l.b16 %v1428
    %v1567 = vunpack.c.h.b16 %v1428
    %v1568 = vunpack.c.l.b16 %v1429
    %v1569 = vunpack.c.l.b16 %v1430
    %v1570 = vunpack.c.h.b16 %v1430
    %v1571 = vunpack.c.l.b16 %v1431
    %v1572 = vunpack.c.l.b16 %v1432
    %v1573 = vunpack.c.h.b16 %v1432
    %v1574 = vunpack.c.l.b16 %v1433
    %v1575 = vunpack.c.l.b16 %v1434
    %v1576 = vunpack.c.h.b16 %v1434
    %v1577 = vunpack.c.l.b16 %v1435
    %v1578 = vunpack.c.l.b16 %v1436
    %v1579 = vunpack.c.h.b16 %v1436
    %v1580 = vunpack.c.l.b16 %v1437
    %v1581 = vunpack.c.l.b16 %v1438
    %v1582 = vunpack.c.h.b16 %v1438
    %v1583 = vunpack.c.l.b16 %v1439
    %v1584 = vunpack.c.l.b16 %v1440
    %v1585 = vunpack.c.h.b16 %v1440
    %v1586 = vunpack.c.l.b16 %v1441
    %v1587 = vunpack.c.l.b16 %v1442
    %v1588 = vunpack.c.h.b16 %v1442
    %v1589 = vunpack.c.l.b16 %v1443
    %v1590 = vunpack.c.l.b16 %v1444
    %v1591 = vunpack.c.h.b16 %v1444
    %v1592 = vunpack.c.l.b16 %v1445
    %v1593 = vunpack.c.l.b16 %v1446
    %v1594 = vunpack.c.h.b16 %v1446
    %v1595 = vunpack.c.l.b16 %v1447
    %v1596 = vunpack.c.l.b16 %v1448
    %v1597 = vunpack.c.h.b16 %v1448
    %v1598 = vunpack.c.l.b16 %v1449
    %v1599 = vunpack.c.l.b16 %v1450
    %v1600 = vunpack.c.h.b16 %v1450
    %v1601 = vunpack.c.l.b16 %v1451
    %v1602 = vunpack.c.l.b16 %v1452
    %v1603 = vunpack.c.h.b16 %v1452
    %v1604 = vunpack.c.l.b16 %v1453
    %v1605 = vunpack.c.l.b16 %v1454
    %v1606 = vunpack.c.h.b16 %v1454
    %v1607 = vunpack.c.l.b16 %v1455
    %v1608 = vpack.c.b16 %v1563, %v1560
    %v1609 = vpack.c.b16 %v1564, %v1561
    %v1610 = vpack.c.b16 %v1565, %v1562
    %v1611 = vpack.c.b16 %v1569, %v1566
    %v1612 = vpack.c.b16 %v1570, %v1567
    %v1613 = vpack.c.b16 %v1571, %v1568
    %v1614 = vpack.c.b16 %v1575, %v1572
    %v1615 = vpack.c.b16 %v1576, %v1573
    %v1616 = vpack.c.b16 %v1577, %v1574
    %v1617 = vpack.c.b16 %v1581, %v1578
    %v1618 = vpack.c.b16 %v1582, %v1579
    %v1619 = vpack.c.b16 %v1583, %v1580
    %v1620 = vpack.c.b16 %v1587, %v1584
    %v1621 = vpack.c.b16 %v1588, %v1585
    %v1622 = vpack.c.b16 %v1589, %v1586
    %v1623 = vpack.c.b16 %v1593, %v1590
    %v1624 = vpack.c.b16 %v1594, %v1591
    %v1625 = vpack.c.b16 %v1595, %v1592
    %v1626 = vpack.c.b16 %v1599, %v1596
    %v1627 = vpack.c.b16 %v1600, %v1597
    %v1628 = vpack.c.b16 %v1601, %v1598
    %v1629 = vpack.c.b16 %v1605, %v1602
    %v1630 = vpack.c.b16 %v1606, %v1603
    %v1631 = vpack.c.b16 %v1607, %v1604
    %1656 = vmatprep.subr.bf16.mxu0 %v1609
    %1657 = vmatpush1.bf16.msra.mxu0 %v1608
    %1658 = vmatprep.subr.bf16.mxu0 %v1612
    %1659 = vmatpush1.bf16.msra.mxu0 %v1611
    %1660 = vmatprep.subr.bf16.mxu0 %v1615
    %1661 = vmatpush1.bf16.msra.mxu0 %v1614
    %1662 = vmatprep.subr.bf16.mxu0 %v1618
    %1663 = vmatpush1.bf16.msra.mxu0 %v1617
    %1664 = vmatprep.subr.bf16.mxu0 %v1621
    %1665 = vmatpush1.bf16.msra.mxu0 %v1620
    %1666 = vmatprep.subr.bf16.mxu0 %v1624
    %1667 = vmatpush1.bf16.msra.mxu0 %v1623
    %1668 = vmatprep.subr.bf16.mxu0 %v1627
    %1669 = vmatpush1.bf16.msra.mxu0 %v1626
    %1670 = vmatprep.subr.bf16.mxu0 %v1630
    %1671 = vmatpush1.bf16.msra.mxu0 %v1629
    %1672 = vmatprep.subr.bf16.mxu0 0
    %1673 = vmatpush1.bf16.msra.mxu0 0
    %1674 = vmatprep.subr.bf16.mxu0 0
    %1675 = vmatpush1.bf16.msra.mxu0 0
    %1676 = vmatprep.subr.bf16.mxu0 0
    %1677 = vmatpush1.bf16.msra.mxu0 0
    %1678 = vmatprep.subr.bf16.mxu0 0
    %1679 = vmatpush1.bf16.msra.mxu0 0
    %1680 = vmatprep.subr.bf16.mxu0 0
    %1681 = vmatpush1.bf16.msra.mxu0 0
    %1682 = vmatprep.subr.bf16.mxu0 0
    %1683 = vmatpush1.bf16.msra.mxu0 0
    %1684 = vmatprep.subr.bf16.mxu0 0
    %1685 = vmatpush1.bf16.msra.mxu0 0
    %1686 = vmatprep.subr.bf16.mxu0 0
    %1687 = vmatpush1.bf16.msra.mxu0 0
    %1688 = vmatprep.mubr.bf16.mxu0 0
    %1689 = vmatmul.mubr.bf16.gmra.mrb[0].mxu0 %v1511
    %v1690 = vpop.f32.mrb[0].mxu0
    %v1691 = vadd.f32 %v1516, %v1690
    %v1692 = vpop.f32.mrb[0].mxu0
    %v1693 = vadd.f32 %v1520, %v1692
    %v1694 = vpop.f32.mrb[0].mxu0
    %v1695 = vpop.f32.mrb[0].mxu0
    %1696 = vdwg.mxu0
    %1697 = vmatprep.subr.bf16.mxu0 0
    %1698 = vmatpush1.bf16.msra.mxu0 %v1610
    %1699 = vmatprep.subr.bf16.mxu0 0
    %1700 = vmatpush1.bf16.msra.mxu0 %v1613
    %1701 = vmatprep.subr.bf16.mxu0 0
    %1702 = vmatpush1.bf16.msra.mxu0 %v1616
    %1703 = vmatprep.subr.bf16.mxu0 0
    %1704 = vmatpush1.bf16.msra.mxu0 %v1619
    %1705 = vmatprep.subr.bf16.mxu0 0
    %1706 = vmatpush1.bf16.msra.mxu0 %v1622
    %1707 = vmatprep.subr.bf16.mxu0 0
    %1708 = vmatpush1.bf16.msra.mxu0 %v1625
    %1709 = vmatprep.subr.bf16.mxu0 0
    %1710 = vmatpush1.bf16.msra.mxu0 %v1628
    %1711 = vmatprep.subr.bf16.mxu0 0
    %1712 = vmatpush1.bf16.msra.mxu0 %v1631
    %1713 = vmatprep.subr.bf16.mxu0 0
    %1714 = vmatpush1.bf16.msra.mxu0 0
    %1715 = vmatprep.subr.bf16.mxu0 0
    %1716 = vmatpush1.bf16.msra.mxu0 0
    %1717 = vmatprep.subr.bf16.mxu0 0
    %1718 = vmatpush1.bf16.msra.mxu0 0
    %1719 = vmatprep.subr.bf16.mxu0 0
    %1720 = vmatpush1.bf16.msra.mxu0 0
    %1721 = vmatprep.subr.bf16.mxu0 0
    %1722 = vmatpush1.bf16.msra.mxu0 0
    %1723 = vmatprep.subr.bf16.mxu0 0
    %1724 = vmatpush1.bf16.msra.mxu0 0
    %1725 = vmatprep.subr.bf16.mxu0 0
    %1726 = vmatpush1.bf16.msra.mxu0 0
    %1727 = vmatprep.subr.bf16.mxu0 0
    %1728 = vmatpush1.bf16.msra.mxu0 0
    %1729 = vmatprep.mubr.bf16.mxu0 0
    %1730 = vmatmul.mubr.bf16.gmra.mrb[0].mxu0 %v1511
    %v1731 = vpop.f32.mrb[0].mxu0
    %v1732 = vadd.f32 %v1524, %v1731
    %v1733 = vpop.f32.mrb[0].mxu0
    %v1734 = vpop.f32.mrb[0].mxu0
    %v1735 = vpop.f32.mrb[0].mxu0
    %1736 = vdwg.mxu0
    %v1737 = vpack.c.bf16 %v1497, %v1497
    %v1739 = vlaneseq
    %v1740 = vshrl.u32 %v1739, 7
    %v1741 = vsub.s32 0, %v1740
    %v1742 = vrot.slane %v1489, %v1741
    %v1743 = vlaneseq
    %v1744 = vshrl.u32 %v1743, 7
    %v1745 = vsub.s32 1, %v1744
    %v1746 = vrot.slane %v1489, %v1745
    %v1747 = vlaneseq
    %v1748 = vshrl.u32 %v1747, 7
    %v1749 = vsub.s32 2, %v1748
    %v1750 = vrot.slane %v1489, %v1749
    %v1786 = vunpack.c.l.b16 %v1456
    %v1787 = vunpack.c.h.b16 %v1456
    %v1788 = vunpack.c.l.b16 %v1457
    %v1789 = vunpack.c.l.b16 %v1458
    %v1790 = vunpack.c.h.b16 %v1458
    %v1791 = vunpack.c.l.b16 %v1459
    %v1792 = vunpack.c.l.b16 %v1460
    %v1793 = vunpack.c.h.b16 %v1460
    %v1794 = vunpack.c.l.b16 %v1461
    %v1795 = vunpack.c.l.b16 %v1462
    %v1796 = vunpack.c.h.b16 %v1462
    %v1797 = vunpack.c.l.b16 %v1463
    %v1798 = vunpack.c.l.b16 %v1464
    %v1799 = vunpack.c.h.b16 %v1464
    %v1800 = vunpack.c.l.b16 %v1465
    %v1801 = vunpack.c.l.b16 %v1466
    %v1802 = vunpack.c.h.b16 %v1466
    %v1803 = vunpack.c.l.b16 %v1467
    %v1804 = vunpack.c.l.b16 %v1468
    %v1805 = vunpack.c.h.b16 %v1468
    %v1806 = vunpack.c.l.b16 %v1469
    %v1807 = vunpack.c.l.b16 %v1470
    %v1808 = vunpack.c.h.b16 %v1470
    %v1809 = vunpack.c.l.b16 %v1471
    %v1810 = vunpack.c.l.b16 %v1472
    %v1811 = vunpack.c.h.b16 %v1472
    %v1812 = vunpack.c.l.b16 %v1473
    %v1813 = vunpack.c.l.b16 %v1474
    %v1814 = vunpack.c.h.b16 %v1474
    %v1815 = vunpack.c.l.b16 %v1475
    %v1816 = vunpack.c.l.b16 %v1476
    %v1817 = vunpack.c.h.b16 %v1476
    %v1818 = vunpack.c.l.b16 %v1477
    %v1819 = vunpack.c.l.b16 %v1478
    %v1820 = vunpack.c.h.b16 %v1478
    %v1821 = vunpack.c.l.b16 %v1479
    %v1822 = vunpack.c.l.b16 %v1480
    %v1823 = vunpack.c.h.b16 %v1480
    %v1824 = vunpack.c.l.b16 %v1481
    %v1825 = vunpack.c.l.b16 %v1482
    %v1826 = vunpack.c.h.b16 %v1482
    %v1827 = vunpack.c.l.b16 %v1483
    %v1828 = vunpack.c.l.b16 %v1484
    %v1829 = vunpack.c.h.b16 %v1484
    %v1830 = vunpack.c.l.b16 %v1485
    %v1831 = vunpack.c.l.b16 %v1486
    %v1832 = vunpack.c.h.b16 %v1486
    %v1833 = vunpack.c.l.b16 %v1487
    %v1834 = vpack.c.b16 %v1789, %v1786
    %v1835 = vpack.c.b16 %v1790, %v1787
    %v1836 = vpack.c.b16 %v1791, %v1788
    %v1837 = vpack.c.b16 %v1795, %v1792
    %v1838 = vpack.c.b16 %v1796, %v1793
    %v1839 = vpack.c.b16 %v1797, %v1794
    %v1840 = vpack.c.b16 %v1801, %v1798
    %v1841 = vpack.c.b16 %v1802, %v1799
    %v1842 = vpack.c.b16 %v1803, %v1800
    %v1843 = vpack.c.b16 %v1807, %v1804
    %v1844 = vpack.c.b16 %v1808, %v1805
    %v1845 = vpack.c.b16 %v1809, %v1806
    %v1846 = vpack.c.b16 %v1813, %v1810
    %v1847 = vpack.c.b16 %v1814, %v1811
    %v1848 = vpack.c.b16 %v1815, %v1812
    %v1849 = vpack.c.b16 %v1819, %v1816
    %v1850 = vpack.c.b16 %v1820, %v1817
    %v1851 = vpack.c.b16 %v1821, %v1818
    %v1852 = vpack.c.b16 %v1825, %v1822
    %v1853 = vpack.c.b16 %v1826, %v1823
    %v1854 = vpack.c.b16 %v1827, %v1824
    %v1855 = vpack.c.b16 %v1831, %v1828
    %v1856 = vpack.c.b16 %v1832, %v1829
    %v1857 = vpack.c.b16 %v1833, %v1830
    %1882 = vmatprep.subr.bf16.mxu0 %v1835
    %1883 = vmatpush1.bf16.msra.mxu0 %v1834
    %1884 = vmatprep.subr.bf16.mxu0 %v1838
    %1885 = vmatpush1.bf16.msra.mxu0 %v1837
    %1886 = vmatprep.subr.bf16.mxu0 %v1841
    %1887 = vmatpush1.bf16.msra.mxu0 %v1840
    %1888 = vmatprep.subr.bf16.mxu0 %v1844
    %1889 = vmatpush1.bf16.msra.mxu0 %v1843
    %1890 = vmatprep.subr.bf16.mxu0 %v1847
    %1891 = vmatpush1.bf16.msra.mxu0 %v1846
    %1892 = vmatprep.subr.bf16.mxu0 %v1850
    %1893 = vmatpush1.bf16.msra.mxu0 %v1849
    %1894 = vmatprep.subr.bf16.mxu0 %v1853
    %1895 = vmatpush1.bf16.msra.mxu0 %v1852
    %1896 = vmatprep.subr.bf16.mxu0 %v1856
    %1897 = vmatpush1.bf16.msra.mxu0 %v1855
    %1898 = vmatprep.subr.bf16.mxu0 0
    %1899 = vmatpush1.bf16.msra.mxu0 0
    %1900 = vmatprep.subr.bf16.mxu0 0
    %1901 = vmatpush1.bf16.msra.mxu0 0
    %1902 = vmatprep.subr.bf16.mxu0 0
    %1903 = vmatpush1.bf16.msra.mxu0 0
    %1904 = vmatprep.subr.bf16.mxu0 0
    %1905 = vmatpush1.bf16.msra.mxu0 0
    %1906 = vmatprep.subr.bf16.mxu0 0
    %1907 = vmatpush1.bf16.msra.mxu0 0
    %1908 = vmatprep.subr.bf16.mxu0 0
    %1909 = vmatpush1.bf16.msra.mxu0 0
    %1910 = vmatprep.subr.bf16.mxu0 0
    %1911 = vmatpush1.bf16.msra.mxu0 0
    %1912 = vmatprep.subr.bf16.mxu0 0
    %1913 = vmatpush1.bf16.msra.mxu0 0
    %1914 = vmatprep.mubr.bf16.mxu0 0
    %1915 = vmatmul.mubr.bf16.gmra.mrb[0].mxu0 %v1737
    %v1916 = vpop.f32.mrb[0].mxu0
    %v1917 = vadd.f32 %v1742, %v1916
    %v1918 = vpop.f32.mrb[0].mxu0
    %v1919 = vadd.f32 %v1746, %v1918
    %v1920 = vpop.f32.mrb[0].mxu0
    %v1921 = vpop.f32.mrb[0].mxu0
    %1922 = vdwg.mxu0
    %1923 = vmatprep.subr.bf16.mxu0 0
    %1924 = vmatpush1.bf16.msra.mxu0 %v1836
    %1925 = vmatprep.subr.bf16.mxu0 0
    %1926 = vmatpush1.bf16.msra.mxu0 %v1839
    %1927 = vmatprep.subr.bf16.mxu0 0
    %1928 = vmatpush1.bf16.msra.mxu0 %v1842
    %1929 = vmatprep.subr.bf16.mxu0 0
    %1930 = vmatpush1.bf16.msra.mxu0 %v1845
    %1931 = vmatprep.subr.bf16.mxu0 0
    %1932 = vmatpush1.bf16.msra.mxu0 %v1848
    %1933 = vmatprep.subr.bf16.mxu0 0
    %1934 = vmatpush1.bf16.msra.mxu0 %v1851
    %1935 = vmatprep.subr.bf16.mxu0 0
    %1936 = vmatpush1.bf16.msra.mxu0 %v1854
    %1937 = vmatprep.subr.bf16.mxu0 0
    %1938 = vmatpush1.bf16.msra.mxu0 %v1857
    %1939 = vmatprep.subr.bf16.mxu0 0
    %1940 = vmatpush1.bf16.msra.mxu0 0
    %1941 = vmatprep.subr.bf16.mxu0 0
    %1942 = vmatpush1.bf16.msra.mxu0 0
    %1943 = vmatprep.subr.bf16.mxu0 0
    %1944 = vmatpush1.bf16.msra.mxu0 0
    %1945 = vmatprep.subr.bf16.mxu0 0
    %1946 = vmatpush1.bf16.msra.mxu0 0
    %1947 = vmatprep.subr.bf16.mxu0 0
    %1948 = vmatpush1.bf16.msra.mxu0 0
    %1949 = vmatprep.subr.bf16.mxu0 0
    %1950 = vmatpush1.bf16.msra.mxu0 0
    %1951 = vmatprep.subr.bf16.mxu0 0
    %1952 = vmatpush1.bf16.msra.mxu0 0
    %1953 = vmatprep.subr.bf16.mxu0 0
    %1954 = vmatpush1.bf16.msra.mxu0 0
    %1955 = vmatprep.mubr.bf16.mxu0 0
    %1956 = vmatmul.mubr.bf16.gmra.mrb[0].mxu0 %v1737
    %v1957 = vpop.f32.mrb[0].mxu0
    %v1958 = vadd.f32 %v1750, %v1957
    %v1959 = vpop.f32.mrb[0].mxu0
    %v1960 = vpop.f32.mrb[0].mxu0
    %v1961 = vpop.f32.mrb[0].mxu0
    %1962 = vdwg.mxu0
    %v1963 = vadd.f32 %v1501, %v1691
    %v1964 = vxor.u32 %v1963, 2147483648
    %v1965 = vmul.f32 %v1964, 1.442695
    %v1966 = vpow.pop %v1965
    %v1967 = vadd.f32 %v1966, 1.0
    %v1968 = vrcp.pop %v1967
    %v1969 = vmul.f32 1.0, %v1968
    %v1970 = vadd.f32 %v1502, %v1693
    %v1971 = vxor.u32 %v1970, 2147483648
    %v1972 = vmul.f32 %v1971, 1.442695
    %v1973 = vpow.pop %v1972
    %v1974 = vadd.f32 %v1973, 1.0
    %v1975 = vrcp.pop %v1974
    %v1976 = vmul.f32 1.0, %v1975
    %v1977 = vmul.f32 %v1969, %v1732
    %v1978 = vadd.f32 %v1503, %v1977
    %v1979 = vtanh.pop %v1978
    %v1980 = vsub.f32 1.0, %v1976
    %v1981 = vmul.f32 %v1980, %v1979
    %v1982 = vmul.f32 %v1976, %v1496
    %v1983 = vadd.f32 %v1981, %v1982
    %v1984 = vadd.f32 %v1508, %v1917
    %v1985 = vxor.u32 %v1984, 2147483648
    %v1986 = vmul.f32 %v1985, 1.442695
    %v1987 = vpow.pop %v1986
    %v1988 = vadd.f32 %v1987, 1.0
    %v1989 = vrcp.pop %v1988
    %v1990 = vmul.f32 1.0, %v1989
    %v1991 = vadd.f32 %v1509, %v1919
    %v1992 = vxor.u32 %v1991, 2147483648
    %v1993 = vmul.f32 %v1992, 1.442695
    %v1994 = vpow.pop %v1993
    %v1995 = vadd.f32 %v1994, 1.0
    %v1996 = vrcp.pop %v1995
    %v1997 = vmul.f32 1.0, %v1996
    %v1998 = vmul.f32 %v1990, %v1958
    %v1999 = vadd.f32 %v1510, %v1998
    %v2000 = vtanh.pop %v1999
    %v2001 = vsub.f32 1.0, %v1997
    %v2002 = vmul.f32 %v2001, %v2000
    %v2003 = vmul.f32 %v1997, %v1497
    %v2004 = vadd.f32 %v2002, %v2003
    %v2005 = vpack.c.bf16 %v1983, %v1983
    %s2006 = smul.addr %s1491, 4
    %s2007 = scalar_lea.vmem %s10, %s2006
    %2008 = vst [vmem:[%s2007] sm:$0xf] %v2005
    %v2009 = vpack.c.bf16 %v2004, %v2004
    %s2010 = smul.addr %s1504, 4
    %s2011 = scalar_lea.vmem %s11, %s2010
    %2012 = vst [vmem:[%s2011] sm:$0xf] %v2009
  $region46: #{wrnn_forward.4} parent=0 // loop_footer
    %s1495 = sadd.s32 1, %s1491
  $region47: #{wrnn_forward.4} parent=0 // loop_footer_branch
    %1490 = sbr.rel target = $region43
  $region48: #{wrnn_forward.4} parent=0 // loop_exit
    _
  // Predicated region
  $region49: #{wrnn_forward.4} parent=0 // pred_check
    _
  $region50: #{wrnn_forward.4} parent=0 // pred_check_branch
    %2014 = sbr.rel (0) target = $region52
  $region51: #{wrnn_forward.4} parent=0 // pred_region
    _
  $region52: #{wrnn_forward.4} parent=0 // pred_fallthru
    _
  // Predicated region
  $region53: #{wrnn_forward.4} parent=0 // pred_check
    _
  $region54: #{wrnn_forward.4} parent=0 // pred_check_branch
    %2016 = sbr.rel (0) target = $region56
  $region55: #{wrnn_forward.4} parent=0 // pred_region
    _
  $region56: #{wrnn_forward.4} parent=0 // pred_fallthru
    _
  // Predicated region
  $region57: #{wrnn_forward.4} parent=0 // pred_check
    _
  $region58: #{wrnn_forward.4} parent=0 // pred_check_branch
    %2018 = sbr.rel (0) target = $region60
  $region59: #{wrnn_forward.4} parent=0 // pred_region
    _
  $region60: #{wrnn_forward.4} parent=0 // pred_fallthru
    _
  // Predicated region
  $region61: #{wrnn_forward.4} parent=0 // pred_check
    _
  $region62: #{wrnn_forward.4} parent=0 // pred_check_branch
    %2020 = sbr.rel (0) target = $region64
  $region63: #{wrnn_forward.4} parent=0 // pred_region
    _
  $region64: #{wrnn_forward.4} parent=0 // pred_fallthru
    _

</llo_original>
